<compile_context>
chip_gen: v7x
topology: tpu7x:2x2x1
jax: 0.10.0
libtpu: 0.0.40
codegen_flags: <defaults>
</compile_context>

<pallas_src>
import jax
import jax.numpy as jnp
import numpy as np
from jax import lax
from jax.experimental import pallas as pl
from jax.experimental.pallas import tpu as pltpu


def _round_up(x, m):
    return (x + m - 1) // m * m


def _vmem_limit_bytes():
    """Generation-aware VMEM budget (v7x: 64 MiB/TC, v5e/v6e: 128 MiB)."""
    try:
        cap = int(pltpu.get_tpu_info().vmem_capacity_bytes)
    except Exception:
        cap = 64 * 1024 * 1024
    return int(min(cap * 3 // 4, 100 * 1024 * 1024))


def _pick_tile_rows(H, W):
    """Strip height: TH | H, TH*W a multiple of 128 (lane-dense NCHW store),
    and >= 512 rows when possible (HBM-roofline tile size)."""
    cands = [th for th in range(1, H + 1)
             if H % th == 0 and (th * W) % 128 == 0]
    if not cands:
        return H
    for th in cands:
        if th * W >= 512:
            return th
    return cands[-1]


# ----------------------------------------------------------------------------
# Kernel 1: 3x3 "same" conv (9 accumulated per-tap bf16 matmuls) + channel stats
# ----------------------------------------------------------------------------
def _conv3x3_stats_kernel(x_hbm, w_ref, y_ref, s1_ref, s2_ref, xs_ref, sem):
    # x_hbm : (N, H, W, Cinp) bf16  -- whole input, left in HBM (pl.ANY)
    # w_ref : (9, Cinp, TN)   bf16  -- weight tile for Cout tile `ct`
    # y_ref : (1, TH*W, TN)   bf16  -- conv activation strip (flattened rows)
    # s1/s2 : (1, 1, 1, TN)   f32   -- per-(image, strip, Cout-tile) sum/sumsq
    # xs_ref: (TH+2, W, Cinp) bf16  -- VMEM scratch: strip + 1-row halo
    # sem   : (3,) DMA semaphores
    n, ht, ct = pl.program_id(0), pl.program_id(1), pl.program_id(2)
    THp2, W, Cinp = xs_ref.shape
    TH = THp2 - 2
    H = x_hbm.shape[1]
    TN = w_ref.shape[2]

    # ---- strip + halo load (manual DMA; only when (n, ht) changes) ----------
    @pl.when(ct == 0)
    def _load_strip():
        r0 = ht * TH
        top = jnp.maximum(r0 - 1, 0)          # clamped; zeroed below at border
        bot = jnp.minimum(r0 + TH, H - 1)
        cp_mid = pltpu.make_async_copy(
            x_hbm.at[n, pl.ds(r0, TH), :, :], xs_ref.at[pl.ds(1, TH)], sem.at[0])
        cp_top = pltpu.make_async_copy(
            x_hbm.at[n, pl.ds(top, 1), :, :], xs_ref.at[pl.ds(0, 1)], sem.at[1])
        cp_bot = pltpu.make_async_copy(
            x_hbm.at[n, pl.ds(bot, 1), :, :], xs_ref.at[pl.ds(TH + 1, 1)], sem.at[2])
        cp_mid.start(); cp_top.start(); cp_bot.start()
        cp_mid.wait();  cp_top.wait();  cp_bot.wait()

        # zero ONLY the halo row at the image borders (no full-scratch memset)
        @pl.when(ht == 0)
        def _():
            xs_ref[0] = jnp.zeros((W, Cinp), xs_ref.dtype)

        @pl.when(ht == pl.num_programs(1) - 1)
        def _():
            xs_ref[TH + 1] = jnp.zeros((W, Cinp), xs_ref.dtype)

    # ---- 3x3 conv: 9 per-tap matmuls into an f32 accumulator ----------------
    R = THp2 * W
    x0 = xs_ref[...].reshape(R, Cinp)                        # bf16, lane-dense
    x0f = x0.astype(jnp.float32)
    col = lax.broadcasted_iota(jnp.int32, (R, 1), 0) % W     # column within a row
    # Column-shifted copies: a single whole-strip row shift + column mask gives
    # the "same" padding in W (replaces 9 misaligned 2-D slice+reshape copies).
    xm = jnp.where(col == 0, 0.0, jnp.roll(x0f, 1, axis=0)).astype(x0.dtype)
    xp = jnp.where(col == W - 1, 0.0, jnp.roll(x0f, -1, axis=0)).astype(x0.dtype)
    shifted = (xm, x0, xp)                                   # kw = 0, 1, 2

    acc = jnp.zeros((TH * W, TN), jnp.float32)
    for kh in range(3):
        for kw in range(3):
            op = shifted[kw][kh * W:kh * W + TH * W, :]      # contiguous rows
            acc = acc + jnp.dot(op, w_ref[kh * 3 + kw],
                                preferred_element_type=jnp.float32)

    y_ref[0] = acc.astype(y_ref.dtype)                       # bf16 activation
    # fused BatchNorm batch-stat partials, taken from the f32 accumulator
    s1_ref[0, 0] = jnp.sum(acc, axis=0, keepdims=True)
    s2_ref[0, 0] = jnp.sum(acc * acc, axis=0, keepdims=True)


def conv3x3_stats(x_pad, w3, *, TH, TN):
    """x_pad: (N, H, W, Cinp) bf16, w3: (9, Cinp, Cp) bf16.
    Returns y (N, H*W, Cp) bf16 and per-strip channel sum/sumsq (N, HT, 1, Cp)."""
    N, H, W, Cinp = x_pad.shape
    Cp = w3.shape[2]
    HT, CT, HW = H // TH, Cp // TN, H * W
    return pl.pallas_call(
        _conv3x3_stats_kernel,
        out_shape=(
            jax.ShapeDtypeStruct((N, HW, Cp), jnp.bfloat16),
            jax.ShapeDtypeStruct((N, HT, 1, Cp), jnp.float32),
            jax.ShapeDtypeStruct((N, HT, 1, Cp), jnp.float32),
        ),
        grid_spec=pltpu.PrefetchScalarGridSpec(
            num_scalar_prefetch=0,
            grid=(N, HT, CT),
            in_specs=[
                pl.BlockSpec(memory_space=pl.ANY),                 # x stays in HBM
                pl.BlockSpec((9, Cinp, TN), lambda n, h, c: (0, 0, c)),
            ],
            out_specs=(
                pl.BlockSpec((1, TH * W, TN), lambda n, h, c: (n, h, c)),
                pl.BlockSpec((1, 1, 1, TN), lambda n, h, c: (n, h, 0, c)),
                pl.BlockSpec((1, 1, 1, TN), lambda n, h, c: (n, h, 0, c)),
            ),
            scratch_shapes=[
                pltpu.VMEM((TH + 2, W, Cinp), jnp.bfloat16),
                pltpu.SemaphoreType.DMA((3,)),
            ],
        ),
        compiler_params=pltpu.CompilerParams(
            dimension_semantics=("parallel", "parallel", "arbitrary"),
            vmem_limit_bytes=_vmem_limit_bytes(),
        ),
    )(x_pad, w3)


# ----------------------------------------------------------------------------
# Kernel 2: BN affine (precomputed scale/shift) + LeakyReLU(0.1), NCHW output
# ----------------------------------------------------------------------------
def _bn_leaky_kernel(y_ref, scale_ref, shift_ref, o_ref):
    # y_ref: (1, T, TN) bf16 ; scale/shift: (1, TN) f32 ; o_ref: (1, TN, T) f32
    z = y_ref[0].astype(jnp.float32) * scale_ref[...] + shift_ref[...]
    z = jnp.where(z > 0, z, 0.1 * z)
    o_ref[0] = z.T            # output written directly in NCHW layout


def bn_leaky_nchw(y, scale_p, shift_p, *, T, TN):
    N, HW, Cp = y.shape
    HT, CT = HW // T, Cp // TN
    return pl.pallas_call(
        _bn_leaky_kernel,
        out_shape=jax.ShapeDtypeStruct((N, Cp, HW), jnp.float32),
        grid_spec=pltpu.PrefetchScalarGridSpec(
            num_scalar_prefetch=0,
            grid=(N, HT, CT),
            in_specs=[
                pl.BlockSpec((1, T, TN), lambda n, h, c: (n, h, c)),
                pl.BlockSpec((1, TN), lambda n, h, c: (0, c)),
                pl.BlockSpec((1, TN), lambda n, h, c: (0, c)),
            ],
            out_specs=pl.BlockSpec((1, TN, T), lambda n, h, c: (n, c, h)),
        ),
        compiler_params=pltpu.CompilerParams(
            dimension_semantics=("parallel", "parallel", "parallel"),
            vmem_limit_bytes=_vmem_limit_bytes(),
        ),
    )(y, scale_p, shift_p)


# ----------------------------------------------------------------------------
# Weight prep (static; hoist to parameter-load time in a real model)
# ----------------------------------------------------------------------------
def prepare_conv_weight(w_oihw, cin_pad, cout_pad):
    """OIHW (Cout, Cin, 3, 3) -> (9, Cinp, Cp) bf16, tap-major, zero-padded."""
    Cout, Cin, KH, KW = w_oihw.shape
    assert (KH, KW) == (3, 3)
    w = jnp.transpose(w_oihw.astype(jnp.float32), (2, 3, 1, 0))   # (kh, kw, cin, cout)
    w = w.reshape(9, Cin, Cout)
    w = jnp.pad(w, ((0, 0), (0, cin_pad - Cin), (0, cout_pad - Cout)))
    return w.astype(jnp.bfloat16)


# ----------------------------------------------------------------------------
# CNNBlock forward (bn_act=True path): leaky(bn(conv(x)))
# ----------------------------------------------------------------------------
def cnn_block_forward(x_nchw, w_oihw, gamma, beta, eps=1e-5, tile_rows=None):
    """Matches PyTorch CNNBlock.forward with bn_act=True, module in train mode
    (BatchNorm2d normalizes with biased batch statistics)."""
    N, Cin, H, W = x_nchw.shape
    Cout = w_oihw.shape[0]
    Cinp = _round_up(Cin, 128)                 # lane-dense K
    Cp = _round_up(Cout, 128)                  # lane-dense N
    TN = 256 if Cp % 256 == 0 else 128         # Cout tile (MXU-native width)
    TH = _pick_tile_rows(H, W) if tile_rows is None else tile_rows
    assert H % TH == 0, "tile_rows must divide H"
    assert (TH * W) % 128 == 0 or TH == H, "strip must be lane-aligned or full"

    # Module-boundary layout plumbing (NCHW -> NHWC, pad Cin, cast bf16).  In a
    # full network, keep the activation in this layout end-to-end.
    x = jnp.transpose(x_nchw, (0, 2, 3, 1)).astype(jnp.float32)
    x = jnp.pad(x, ((0, 0), (0, 0), (0, 0), (0, Cinp - Cin))).astype(jnp.bfloat16)
    w3 = prepare_conv_weight(w_oihw, Cinp, Cp)

    # Pass 1: conv (bf16 MXU, f32 accumulation) + fused per-strip channel stats.
    y, s1, s2 = conv3x3_stats(x, w3, TH=TH, TN=TN)          # y: (N, HW, Cp) bf16

    # Tiny reduction + BN scale/shift precompute (no HBM pass over activation).
    count = float(N * H * W)
    sum_c = jnp.sum(s1, axis=(0, 1, 2))[:Cout]
    sumsq_c = jnp.sum(s2, axis=(0, 1, 2))[:Cout]
    mean = sum_c / count
    var = jnp.maximum(sumsq_c / count - mean * mean, 0.0)   # biased (train-mode)
    scale = gamma.astype(jnp.float32) / jnp.sqrt(var + eps)
    shift = beta.astype(jnp.float32) - mean * scale
    scale_p = jnp.zeros((1, Cp), jnp.float32).at[0, :Cout].set(scale)
    shift_p = jnp.zeros((1, Cp), jnp.float32).at[0, :Cout].set(shift)

    # Pass 2: BN affine + LeakyReLU, stored directly as (N, C, H*W).
    out = bn_leaky_nchw(y, scale_p, shift_p, T=TH * W, TN=TN)   # (N, Cp, HW)
    if Cp != Cout:
        out = out[:, :Cout, :]        # only needed when Cout % 128 != 0
    return out.reshape(N, Cout, H, W)


# ----------------------------------------------------------------------------
# Pure-JAX reference with matching numerics (bf16 inputs / bf16 intermediate y)
# ----------------------------------------------------------------------------
def _reference(x_nchw, w_oihw, gamma, beta, eps=1e-5):
    xb = jnp.transpose(x_nchw, (0, 2, 3, 1)).astype(jnp.bfloat16)
    wb = jnp.transpose(w_oihw, (2, 3, 1, 0)).astype(jnp.bfloat16)
    y = lax.conv_general_dilated(
        xb, wb, window_strides=(1, 1), padding="SAME",
        dimension_numbers=("NHWC", "HWIO", "NHWC"),
        preferred_element_type=jnp.float32)
    mean = jnp.mean(y, axis=(0, 1, 2))
    var = jnp.maximum(jnp.mean(y * y, axis=(0, 1, 2)) - mean * mean, 0.0)
    scale = gamma.astype(jnp.float32) / jnp.sqrt(var + eps)
    shift = beta.astype(jnp.float32) - mean * scale
    z = y.astype(jnp.bfloat16).astype(jnp.float32) * scale + shift
    out = jnp.where(z > 0, z, 0.1 * z)
    return jnp.transpose(out, (0, 3, 1, 2))


if __name__ == "__main__":
    key = jax.random.PRNGKey(0)
    k_x, k_w = jax.random.split(key)

    N, Cin, Cout, H, W = 2, 4, 8, 16, 16

    # input (NCHW, like PyTorch)
    x = jax.random.normal(k_x, (N, Cin, H, W), dtype=jnp.float32)
    # CNNBlock params: conv.weight (Cout, Cin, 3, 3), no conv bias (bn_act=True),
    # bn.weight (gamma) = 1, bn.bias (beta) = 0  (PyTorch defaults).
    w = 0.1 * jax.random.normal(k_w, (Cout, Cin, 3, 3), dtype=jnp.float32)
    gamma = jnp.ones((Cout,), jnp.float32)
    beta = jnp.zeros((Cout,), jnp.float32)

    # tile_rows=8 -> two spatial strips, exercising the halo-DMA path.
    out = jax.block_until_ready(cnn_block_forward(x, w, gamma, beta, tile_rows=8))
    ref = jax.block_until_ready(_reference(x, w, gamma, beta))

    assert out.shape == (N, Cout, H, W)
    # bf16 MXU path: tolerance sized for bf16 rounding of the activation.
    np.testing.assert_allclose(np.asarray(out), np.asarray(ref),
                               atol=2e-2, rtol=2e-2)
    print("KERNEL_OK")
</pallas_src>

<mosaic_0001>
module attributes {stable_mosaic.version = 11 : i64} {
  func.func @_conv3x3_stats_kernel(%arg0: i32, %arg1: i32, %arg2: i32, %arg3: memref<2x16x16x128xbf16, #tpu.memory_space<any>>, %arg4: memref<9x128x128xbf16, #tpu.memory_space<vmem>>, %arg5: memref<1x128x128xbf16, #tpu.memory_space<vmem>>, %arg6: memref<1x1x1x128xf32, #tpu.memory_space<vmem>>, %arg7: memref<1x1x1x128xf32, #tpu.memory_space<vmem>>, %arg8: memref<10x16x128xbf16, #tpu.memory_space<vmem>>, %arg9: memref<3x!tpu.dma_semaphore, #tpu.memory_space<semaphore_mem>>) attributes {dimension_semantics = [#tpu.dimension_semantics<parallel>, #tpu.dimension_semantics<parallel>, #tpu.dimension_semantics<arbitrary>], iteration_bounds = array<i64: 2, 2, 1>, scalar_prefetch = 0 : i64, scratch_operands = 2 : i64, tpu.core_type = #tpu.core_type<tc>, window_params = [{}, {transform_indices = @transform_1, window_bounds = array<i64: 9, 128, 128>}, {transform_indices = @transform_2, window_bounds = array<i64: 1, 128, 128>}, {transform_indices = @transform_3, window_bounds = array<i64: 1, 1, 1, 128>}, {transform_indices = @transform_4, window_bounds = array<i64: 1, 1, 1, 128>}]} {
    %c0_i32 = arith.constant 0 : i32
    %0 = arith.cmpi eq, %arg2, %c0_i32 : i32
    %1 = arith.extui %0 : i1 to i32
    %c0_i32_0 = arith.constant 0 : i32
    %2 = arith.cmpi ne, %1, %c0_i32_0 : i32
    scf.if %2 {
      %c8_i32 = arith.constant 8 : i32
      %104 = arith.muli %arg1, %c8_i32 : i32
      %c1_i32_51 = arith.constant 1 : i32
      %105 = arith.subi %104, %c1_i32_51 : i32
      %c0_i32_52 = arith.constant 0 : i32
      %106 = arith.maxsi %105, %c0_i32_52 : i32
      %c8_i32_53 = arith.constant 8 : i32
      %107 = arith.addi %104, %c8_i32_53 : i32
      %c15_i32_54 = arith.constant 15 : i32
      %108 = arith.minsi %107, %c15_i32_54 : i32
      %c0_i32_55 = arith.constant 0 : i32
      %c0_i32_56 = arith.constant 0 : i32
      %c0_i32_57 = arith.constant 0 : i32
      %109 = tpu.memref_slice %arg3[%arg0, %104, %c0_i32_56, %c0_i32_57] : memref<2x16x16x128xbf16, #tpu.memory_space<any>> -> memref<1x8x16x128xbf16, #tpu.memory_space<any>>
      %110 = tpu.memref_squeeze %109 : memref<1x8x16x128xbf16, #tpu.memory_space<any>> -> memref<8x16x128xbf16, #tpu.memory_space<any>>
      %c1_i32_58 = arith.constant 1 : i32
      %c0_i32_59 = arith.constant 0 : i32
      %c0_i32_60 = arith.constant 0 : i32
      %111 = tpu.memref_slice %arg8[%c1_i32_58, %c0_i32_59, %c0_i32_60] : memref<10x16x128xbf16, #tpu.memory_space<vmem>> -> memref<8x16x128xbf16, #tpu.memory_space<vmem>>
      %112 = tpu.memref_slice %arg9[%c0_i32_55] : memref<3x!tpu.dma_semaphore, #tpu.memory_space<semaphore_mem>> -> memref<1x!tpu.dma_semaphore, #tpu.memory_space<semaphore_mem>>
      %113 = tpu.memref_squeeze %112 : memref<1x!tpu.dma_semaphore, #tpu.memory_space<semaphore_mem>> -> memref<!tpu.dma_semaphore, #tpu.memory_space<semaphore_mem>>
      tpu.enqueue_dma source(%110 : memref<8x16x128xbf16, #tpu.memory_space<any>>) target(%111 : memref<8x16x128xbf16, #tpu.memory_space<vmem>>) target_semaphore(%113 : memref<!tpu.dma_semaphore, #tpu.memory_space<semaphore_mem>>)
      %c1_i32_61 = arith.constant 1 : i32
      %c0_i32_62 = arith.constant 0 : i32
      %c0_i32_63 = arith.constant 0 : i32
      %114 = tpu.memref_slice %arg3[%arg0, %106, %c0_i32_62, %c0_i32_63] : memref<2x16x16x128xbf16, #tpu.memory_space<any>> -> memref<1x1x16x128xbf16, #tpu.memory_space<any>>
      %115 = tpu.memref_squeeze %114 : memref<1x1x16x128xbf16, #tpu.memory_space<any>> -> memref<1x16x128xbf16, #tpu.memory_space<any>>
      %c0_i32_64 = arith.constant 0 : i32
      %c0_i32_65 = arith.constant 0 : i32
      %c0_i32_66 = arith.constant 0 : i32
      %116 = tpu.memref_slice %arg8[%c0_i32_64, %c0_i32_65, %c0_i32_66] : memref<10x16x128xbf16, #tpu.memory_space<vmem>> -> memref<1x16x128xbf16, #tpu.memory_space<vmem>>
      %117 = tpu.memref_slice %arg9[%c1_i32_61] : memref<3x!tpu.dma_semaphore, #tpu.memory_space<semaphore_mem>> -> memref<1x!tpu.dma_semaphore, #tpu.memory_space<semaphore_mem>>
      %118 = tpu.memref_squeeze %117 : memref<1x!tpu.dma_semaphore, #tpu.memory_space<semaphore_mem>> -> memref<!tpu.dma_semaphore, #tpu.memory_space<semaphore_mem>>
      tpu.enqueue_dma source(%115 : memref<1x16x128xbf16, #tpu.memory_space<any>>) target(%116 : memref<1x16x128xbf16, #tpu.memory_space<vmem>>) target_semaphore(%118 : memref<!tpu.dma_semaphore, #tpu.memory_space<semaphore_mem>>)
      %c2_i32 = arith.constant 2 : i32
      %c0_i32_67 = arith.constant 0 : i32
      %c0_i32_68 = arith.constant 0 : i32
      %119 = tpu.memref_slice %arg3[%arg0, %108, %c0_i32_67, %c0_i32_68] : memref<2x16x16x128xbf16, #tpu.memory_space<any>> -> memref<1x1x16x128xbf16, #tpu.memory_space<any>>
      %120 = tpu.memref_squeeze %119 : memref<1x1x16x128xbf16, #tpu.memory_space<any>> -> memref<1x16x128xbf16, #tpu.memory_space<any>>
      %c9_i32 = arith.constant 9 : i32
      %c0_i32_69 = arith.constant 0 : i32
      %c0_i32_70 = arith.constant 0 : i32
      %121 = tpu.memref_slice %arg8[%c9_i32, %c0_i32_69, %c0_i32_70] : memref<10x16x128xbf16, #tpu.memory_space<vmem>> -> memref<1x16x128xbf16, #tpu.memory_space<vmem>>
      %122 = tpu.memref_slice %arg9[%c2_i32] : memref<3x!tpu.dma_semaphore, #tpu.memory_space<semaphore_mem>> -> memref<1x!tpu.dma_semaphore, #tpu.memory_space<semaphore_mem>>
      %123 = tpu.memref_squeeze %122 : memref<1x!tpu.dma_semaphore, #tpu.memory_space<semaphore_mem>> -> memref<!tpu.dma_semaphore, #tpu.memory_space<semaphore_mem>>
      tpu.enqueue_dma source(%120 : memref<1x16x128xbf16, #tpu.memory_space<any>>) target(%121 : memref<1x16x128xbf16, #tpu.memory_space<vmem>>) target_semaphore(%123 : memref<!tpu.dma_semaphore, #tpu.memory_space<semaphore_mem>>)
      %c0_i32_71 = arith.constant 0 : i32
      %c0_i32_72 = arith.constant 0 : i32
      %c0_i32_73 = arith.constant 0 : i32
      %124 = tpu.memref_slice %arg3[%arg0, %104, %c0_i32_72, %c0_i32_73] : memref<2x16x16x128xbf16, #tpu.memory_space<any>> -> memref<1x8x16x128xbf16, #tpu.memory_space<any>>
      %125 = tpu.memref_squeeze %124 : memref<1x8x16x128xbf16, #tpu.memory_space<any>> -> memref<8x16x128xbf16, #tpu.memory_space<any>>
      %c1_i32_74 = arith.constant 1 : i32
      %c0_i32_75 = arith.constant 0 : i32
      %c0_i32_76 = arith.constant 0 : i32
      %126 = tpu.memref_slice %arg8[%c1_i32_74, %c0_i32_75, %c0_i32_76] : memref<10x16x128xbf16, #tpu.memory_space<vmem>> -> memref<8x16x128xbf16, #tpu.memory_space<vmem>>
      %127 = tpu.memref_slice %arg9[%c0_i32_71] : memref<3x!tpu.dma_semaphore, #tpu.memory_space<semaphore_mem>> -> memref<1x!tpu.dma_semaphore, #tpu.memory_space<semaphore_mem>>
      %128 = tpu.memref_squeeze %127 : memref<1x!tpu.dma_semaphore, #tpu.memory_space<semaphore_mem>> -> memref<!tpu.dma_semaphore, #tpu.memory_space<semaphore_mem>>
      tpu.wait_dma2 semaphore(%128 : memref<!tpu.dma_semaphore, #tpu.memory_space<semaphore_mem>>) src(%125 : memref<8x16x128xbf16, #tpu.memory_space<any>>) dst(%126 : memref<8x16x128xbf16, #tpu.memory_space<vmem>>)
      %c1_i32_77 = arith.constant 1 : i32
      %c0_i32_78 = arith.constant 0 : i32
      %c0_i32_79 = arith.constant 0 : i32
      %129 = tpu.memref_slice %arg3[%arg0, %106, %c0_i32_78, %c0_i32_79] : memref<2x16x16x128xbf16, #tpu.memory_space<any>> -> memref<1x1x16x128xbf16, #tpu.memory_space<any>>
      %130 = tpu.memref_squeeze %129 : memref<1x1x16x128xbf16, #tpu.memory_space<any>> -> memref<1x16x128xbf16, #tpu.memory_space<any>>
      %c0_i32_80 = arith.constant 0 : i32
      %c0_i32_81 = arith.constant 0 : i32
      %c0_i32_82 = arith.constant 0 : i32
      %131 = tpu.memref_slice %arg8[%c0_i32_80, %c0_i32_81, %c0_i32_82] : memref<10x16x128xbf16, #tpu.memory_space<vmem>> -> memref<1x16x128xbf16, #tpu.memory_space<vmem>>
      %132 = tpu.memref_slice %arg9[%c1_i32_77] : memref<3x!tpu.dma_semaphore, #tpu.memory_space<semaphore_mem>> -> memref<1x!tpu.dma_semaphore, #tpu.memory_space<semaphore_mem>>
      %133 = tpu.memref_squeeze %132 : memref<1x!tpu.dma_semaphore, #tpu.memory_space<semaphore_mem>> -> memref<!tpu.dma_semaphore, #tpu.memory_space<semaphore_mem>>
      tpu.wait_dma2 semaphore(%133 : memref<!tpu.dma_semaphore, #tpu.memory_space<semaphore_mem>>) src(%130 : memref<1x16x128xbf16, #tpu.memory_space<any>>) dst(%131 : memref<1x16x128xbf16, #tpu.memory_space<vmem>>)
      %c2_i32_83 = arith.constant 2 : i32
      %c0_i32_84 = arith.constant 0 : i32
      %c0_i32_85 = arith.constant 0 : i32
      %134 = tpu.memref_slice %arg3[%arg0, %108, %c0_i32_84, %c0_i32_85] : memref<2x16x16x128xbf16, #tpu.memory_space<any>> -> memref<1x1x16x128xbf16, #tpu.memory_space<any>>
      %135 = tpu.memref_squeeze %134 : memref<1x1x16x128xbf16, #tpu.memory_space<any>> -> memref<1x16x128xbf16, #tpu.memory_space<any>>
      %c9_i32_86 = arith.constant 9 : i32
      %c0_i32_87 = arith.constant 0 : i32
      %c0_i32_88 = arith.constant 0 : i32
      %136 = tpu.memref_slice %arg8[%c9_i32_86, %c0_i32_87, %c0_i32_88] : memref<10x16x128xbf16, #tpu.memory_space<vmem>> -> memref<1x16x128xbf16, #tpu.memory_space<vmem>>
      %137 = tpu.memref_slice %arg9[%c2_i32_83] : memref<3x!tpu.dma_semaphore, #tpu.memory_space<semaphore_mem>> -> memref<1x!tpu.dma_semaphore, #tpu.memory_space<semaphore_mem>>
      %138 = tpu.memref_squeeze %137 : memref<1x!tpu.dma_semaphore, #tpu.memory_space<semaphore_mem>> -> memref<!tpu.dma_semaphore, #tpu.memory_space<semaphore_mem>>
      tpu.wait_dma2 semaphore(%138 : memref<!tpu.dma_semaphore, #tpu.memory_space<semaphore_mem>>) src(%135 : memref<1x16x128xbf16, #tpu.memory_space<any>>) dst(%136 : memref<1x16x128xbf16, #tpu.memory_space<vmem>>)
      %c0_i32_89 = arith.constant 0 : i32
      %139 = arith.cmpi eq, %arg1, %c0_i32_89 : i32
      %140 = arith.extui %139 : i1 to i32
      %c0_i32_90 = arith.constant 0 : i32
      %141 = arith.cmpi ne, %140, %c0_i32_90 : i32
      scf.if %141 {
        %cst_93 = arith.constant 0.000000e+00 : bf16
        %145 = vector.broadcast %cst_93 : bf16 to vector<16x128xbf16>
        %c0_94 = arith.constant 0 : index
        %c0_95 = arith.constant 0 : index
        %c0_96 = arith.constant 0 : index
        %146 = vector.load %arg8[%c0_94, %c0_95, %c0_96] : memref<10x16x128xbf16, #tpu.memory_space<vmem>>, vector<1x16x128xbf16>
        %147 = vector.shape_cast %146 : vector<1x16x128xbf16> to vector<16x128xbf16>
        %148 = vector.shape_cast %145 : vector<16x128xbf16> to vector<1x16x128xbf16>
        tpu.vector_store %arg8[%c0_94, %c0_95, %c0_96], %148 {strides = array<i32>} : memref<10x16x128xbf16, #tpu.memory_space<vmem>>, vector<1x16x128xbf16>,
      } else {
      }
      %c1_i32_91 = arith.constant 1 : i32
      %142 = arith.cmpi eq, %arg1, %c1_i32_91 : i32
      %143 = arith.extui %142 : i1 to i32
      %c0_i32_92 = arith.constant 0 : i32
      %144 = arith.cmpi ne, %143, %c0_i32_92 : i32
      scf.if %144 {
        %cst_93 = arith.constant 0.000000e+00 : bf16
        %145 = vector.broadcast %cst_93 : bf16 to vector<16x128xbf16>
        %c9 = arith.constant 9 : index
        %c0_94 = arith.constant 0 : index
        %c0_95 = arith.constant 0 : index
        %146 = vector.load %arg8[%c9, %c0_94, %c0_95] : memref<10x16x128xbf16, #tpu.memory_space<vmem>>, vector<1x16x128xbf16>
        %147 = vector.shape_cast %146 : vector<1x16x128xbf16> to vector<16x128xbf16>
        %148 = vector.shape_cast %145 : vector<16x128xbf16> to vector<1x16x128xbf16>
        tpu.vector_store %arg8[%c9, %c0_94, %c0_95], %148 {strides = array<i32>} : memref<10x16x128xbf16, #tpu.memory_space<vmem>>, vector<1x16x128xbf16>,
      } else {
      }
    } else {
    }
    %c0 = arith.constant 0 : index
    %c0_1 = arith.constant 0 : index
    %c0_2 = arith.constant 0 : index
    %3 = vector.load %arg8[%c0, %c0_1, %c0_2] : memref<10x16x128xbf16, #tpu.memory_space<vmem>>, vector<10x16x128xbf16>
    %4 = vector.shape_cast %3 : vector<10x16x128xbf16> to vector<160x128xbf16>
    %5 = arith.extf %4 : vector<160x128xbf16> to vector<160x128xf32>
    %6 = tpu.iota {dimensions = array<i32: 0>} : vector<160x1xi32>
    %c16_i32 = arith.constant 16 : i32
    %c0_i32_3 = arith.constant 0 : i32
    %7 = arith.cmpi eq, %c16_i32, %c0_i32_3 : i32
    %c1_i32 = arith.constant 1 : i32
    %8 = arith.select %7, %c1_i32, %c16_i32 : i32
    %9 = vector.broadcast %8 : i32 to vector<160x1xi32>
    %10 = arith.remsi %6, %9 : vector<160x1xi32>
    %c0_i32_4 = arith.constant 0 : i32
    %11 = vector.broadcast %c0_i32_4 : i32 to vector<160x1xi32>
    %12 = arith.cmpi ne, %10, %11 : vector<160x1xi32>
    %c0_i32_5 = arith.constant 0 : i32
    %13 = vector.broadcast %c0_i32_5 : i32 to vector<160x1xi32>
    %14 = arith.cmpi slt, %10, %13 : vector<160x1xi32>
    %c0_i32_6 = arith.constant 0 : i32
    %15 = arith.cmpi slt, %8, %c0_i32_6 : i32
    %16 = vector.broadcast %15 : i1 to vector<160x1xi1>
    %17 = vector.broadcast %16 : vector<160x1xi1> to vector<160x1xi1>
    %18 = arith.xori %14, %17 : vector<160x1xi1>
    %19 = arith.andi %18, %12 : vector<160x1xi1>
    %20 = vector.broadcast %8 : i32 to vector<160x1xi32>
    %21 = arith.addi %10, %20 : vector<160x1xi32>
    %22 = arith.select %19, %21, %10 : vector<160x1xi1>, vector<160x1xi32>
    %c0_i32_7 = arith.constant 0 : i32
    %23 = vector.broadcast %c0_i32_7 : i32 to vector<160x1xi32>
    %24 = arith.cmpi eq, %22, %23 : vector<160x1xi32>
    %25 = vector.extract_strided_slice %5 {offsets = [159, 0], sizes = [1, 128], strides = [1, 1]} : vector<160x128xf32> to vector<1x128xf32>
    %26 = vector.extract_strided_slice %5 {offsets = [0, 0], sizes = [159, 128], strides = [1, 1]} : vector<160x128xf32> to vector<159x128xf32>
    %27 = tpu.concatenate %25, %26 in 0 : vector<1x128xf32>, vector<159x128xf32> -> vector<160x128xf32>
    %cst = arith.constant 0.000000e+00 : f32
    %28 = vector.shape_cast %24 : vector<160x1xi1> to vector<160x1xi1>
    %29 = vector.broadcast %28 : vector<160x1xi1> to vector<160x128xi1>
    %30 = vector.broadcast %cst : f32 to vector<160x128xf32>
    %31 = arith.select %29, %30, %27 : vector<160x128xi1>, vector<160x128xf32>
    %32 = arith.truncf %31 : vector<160x128xf32> to vector<160x128xbf16>
    %c15_i32 = arith.constant 15 : i32
    %33 = vector.broadcast %c15_i32 : i32 to vector<160x1xi32>
    %34 = arith.cmpi eq, %22, %33 : vector<160x1xi32>
    %35 = vector.extract_strided_slice %5 {offsets = [1, 0], sizes = [159, 128], strides = [1, 1]} : vector<160x128xf32> to vector<159x128xf32>
    %36 = vector.extract_strided_slice %5 {offsets = [0, 0], sizes = [1, 128], strides = [1, 1]} : vector<160x128xf32> to vector<1x128xf32>
    %37 = tpu.concatenate %35, %36 in 0 : vector<159x128xf32>, vector<1x128xf32> -> vector<160x128xf32>
    %cst_8 = arith.constant 0.000000e+00 : f32
    %38 = vector.shape_cast %34 : vector<160x1xi1> to vector<160x1xi1>
    %39 = vector.broadcast %38 : vector<160x1xi1> to vector<160x128xi1>
    %40 = vector.broadcast %cst_8 : f32 to vector<160x128xf32>
    %41 = arith.select %39, %40, %37 : vector<160x128xi1>, vector<160x128xf32>
    %42 = arith.truncf %41 : vector<160x128xf32> to vector<160x128xbf16>
    %cst_9 = arith.constant 0.000000e+00 : f32
    %43 = vector.broadcast %cst_9 : f32 to vector<128x128xf32>
    %44 = vector.extract_strided_slice %32 {offsets = [0, 0], sizes = [128, 128], strides = [1, 1]} : vector<160x128xbf16> to vector<128x128xbf16>
    %c0_10 = arith.constant 0 : index
    %c0_11 = arith.constant 0 : index
    %c0_12 = arith.constant 0 : index
    %45 = vector.load %arg4[%c0_10, %c0_11, %c0_12] : memref<9x128x128xbf16, #tpu.memory_space<vmem>>, vector<1x128x128xbf16>
    %46 = vector.shape_cast %45 : vector<1x128x128xbf16> to vector<128x128xbf16>
    %cst_13 = arith.constant dense<0.000000e+00> : vector<128x128xf32>
    %47 = tpu.matmul %44, %46, %cst_13 {dimension_numbers = #tpu.dot_dimension_numbers<[1], [0], [0], [1], [0, 0, 1, 1], [], []>} : vector<128x128xbf16>, vector<128x128xbf16>, vector<128x128xf32> -> vector<128x128xf32>
    %48 = arith.addf %43, %47 : vector<128x128xf32>
    %49 = vector.extract_strided_slice %4 {offsets = [0, 0], sizes = [128, 128], strides = [1, 1]} : vector<160x128xbf16> to vector<128x128xbf16>
    %c1 = arith.constant 1 : index
    %c0_14 = arith.constant 0 : index
    %c0_15 = arith.constant 0 : index
    %50 = vector.load %arg4[%c1, %c0_14, %c0_15] : memref<9x128x128xbf16, #tpu.memory_space<vmem>>, vector<1x128x128xbf16>
    %51 = vector.shape_cast %50 : vector<1x128x128xbf16> to vector<128x128xbf16>
    %cst_16 = arith.constant dense<0.000000e+00> : vector<128x128xf32>
    %52 = tpu.matmul %49, %51, %cst_16 {dimension_numbers = #tpu.dot_dimension_numbers<[1], [0], [0], [1], [0, 0, 1, 1], [], []>} : vector<128x128xbf16>, vector<128x128xbf16>, vector<128x128xf32> -> vector<128x128xf32>
    %53 = arith.addf %48, %52 : vector<128x128xf32>
    %54 = vector.extract_strided_slice %42 {offsets = [0, 0], sizes = [128, 128], strides = [1, 1]} : vector<160x128xbf16> to vector<128x128xbf16>
    %c2 = arith.constant 2 : index
    %c0_17 = arith.constant 0 : index
    %c0_18 = arith.constant 0 : index
    %55 = vector.load %arg4[%c2, %c0_17, %c0_18] : memref<9x128x128xbf16, #tpu.memory_space<vmem>>, vector<1x128x128xbf16>
    %56 = vector.shape_cast %55 : vector<1x128x128xbf16> to vector<128x128xbf16>
    %cst_19 = arith.constant dense<0.000000e+00> : vector<128x128xf32>
    %57 = tpu.matmul %54, %56, %cst_19 {dimension_numbers = #tpu.dot_dimension_numbers<[1], [0], [0], [1], [0, 0, 1, 1], [], []>} : vector<128x128xbf16>, vector<128x128xbf16>, vector<128x128xf32> -> vector<128x128xf32>
    %58 = arith.addf %53, %57 : vector<128x128xf32>
    %59 = vector.extract_strided_slice %32 {offsets = [16, 0], sizes = [128, 128], strides = [1, 1]} : vector<160x128xbf16> to vector<128x128xbf16>
    %c3 = arith.constant 3 : index
    %c0_20 = arith.constant 0 : index
    %c0_21 = arith.constant 0 : index
    %60 = vector.load %arg4[%c3, %c0_20, %c0_21] : memref<9x128x128xbf16, #tpu.memory_space<vmem>>, vector<1x128x128xbf16>
    %61 = vector.shape_cast %60 : vector<1x128x128xbf16> to vector<128x128xbf16>
    %cst_22 = arith.constant dense<0.000000e+00> : vector<128x128xf32>
    %62 = tpu.matmul %59, %61, %cst_22 {dimension_numbers = #tpu.dot_dimension_numbers<[1], [0], [0], [1], [0, 0, 1, 1], [], []>} : vector<128x128xbf16>, vector<128x128xbf16>, vector<128x128xf32> -> vector<128x128xf32>
    %63 = arith.addf %58, %62 : vector<128x128xf32>
    %64 = vector.extract_strided_slice %4 {offsets = [16, 0], sizes = [128, 128], strides = [1, 1]} : vector<160x128xbf16> to vector<128x128xbf16>
    %c4 = arith.constant 4 : index
    %c0_23 = arith.constant 0 : index
    %c0_24 = arith.constant 0 : index
    %65 = vector.load %arg4[%c4, %c0_23, %c0_24] : memref<9x128x128xbf16, #tpu.memory_space<vmem>>, vector<1x128x128xbf16>
    %66 = vector.shape_cast %65 : vector<1x128x128xbf16> to vector<128x128xbf16>
    %cst_25 = arith.constant dense<0.000000e+00> : vector<128x128xf32>
    %67 = tpu.matmul %64, %66, %cst_25 {dimension_numbers = #tpu.dot_dimension_numbers<[1], [0], [0], [1], [0, 0, 1, 1], [], []>} : vector<128x128xbf16>, vector<128x128xbf16>, vector<128x128xf32> -> vector<128x128xf32>
    %68 = arith.addf %63, %67 : vector<128x128xf32>
    %69 = vector.extract_strided_slice %42 {offsets = [16, 0], sizes = [128, 128], strides = [1, 1]} : vector<160x128xbf16> to vector<128x128xbf16>
    %c5 = arith.constant 5 : index
    %c0_26 = arith.constant 0 : index
    %c0_27 = arith.constant 0 : index
    %70 = vector.load %arg4[%c5, %c0_26, %c0_27] : memref<9x128x128xbf16, #tpu.memory_space<vmem>>, vector<1x128x128xbf16>
    %71 = vector.shape_cast %70 : vector<1x128x128xbf16> to vector<128x128xbf16>
    %cst_28 = arith.constant dense<0.000000e+00> : vector<128x128xf32>
    %72 = tpu.matmul %69, %71, %cst_28 {dimension_numbers = #tpu.dot_dimension_numbers<[1], [0], [0], [1], [0, 0, 1, 1], [], []>} : vector<128x128xbf16>, vector<128x128xbf16>, vector<128x128xf32> -> vector<128x128xf32>
    %73 = arith.addf %68, %72 : vector<128x128xf32>
    %74 = vector.extract_strided_slice %32 {offsets = [32, 0], sizes = [128, 128], strides = [1, 1]} : vector<160x128xbf16> to vector<128x128xbf16>
    %c6 = arith.constant 6 : index
    %c0_29 = arith.constant 0 : index
    %c0_30 = arith.constant 0 : index
    %75 = vector.load %arg4[%c6, %c0_29, %c0_30] : memref<9x128x128xbf16, #tpu.memory_space<vmem>>, vector<1x128x128xbf16>
    %76 = vector.shape_cast %75 : vector<1x128x128xbf16> to vector<128x128xbf16>
    %cst_31 = arith.constant dense<0.000000e+00> : vector<128x128xf32>
    %77 = tpu.matmul %74, %76, %cst_31 {dimension_numbers = #tpu.dot_dimension_numbers<[1], [0], [0], [1], [0, 0, 1, 1], [], []>} : vector<128x128xbf16>, vector<128x128xbf16>, vector<128x128xf32> -> vector<128x128xf32>
    %78 = arith.addf %73, %77 : vector<128x128xf32>
    %79 = vector.extract_strided_slice %4 {offsets = [32, 0], sizes = [128, 128], strides = [1, 1]} : vector<160x128xbf16> to vector<128x128xbf16>
    %c7 = arith.constant 7 : index
    %c0_32 = arith.constant 0 : index
    %c0_33 = arith.constant 0 : index
    %80 = vector.load %arg4[%c7, %c0_32, %c0_33] : memref<9x128x128xbf16, #tpu.memory_space<vmem>>, vector<1x128x128xbf16>
    %81 = vector.shape_cast %80 : vector<1x128x128xbf16> to vector<128x128xbf16>
    %cst_34 = arith.constant dense<0.000000e+00> : vector<128x128xf32>
    %82 = tpu.matmul %79, %81, %cst_34 {dimension_numbers = #tpu.dot_dimension_numbers<[1], [0], [0], [1], [0, 0, 1, 1], [], []>} : vector<128x128xbf16>, vector<128x128xbf16>, vector<128x128xf32> -> vector<128x128xf32>
    %83 = arith.addf %78, %82 : vector<128x128xf32>
    %84 = vector.extract_strided_slice %42 {offsets = [32, 0], sizes = [128, 128], strides = [1, 1]} : vector<160x128xbf16> to vector<128x128xbf16>
    %c8 = arith.constant 8 : index
    %c0_35 = arith.constant 0 : index
    %c0_36 = arith.constant 0 : index
    %85 = vector.load %arg4[%c8, %c0_35, %c0_36] : memref<9x128x128xbf16, #tpu.memory_space<vmem>>, vector<1x128x128xbf16>
    %86 = vector.shape_cast %85 : vector<1x128x128xbf16> to vector<128x128xbf16>
    %cst_37 = arith.constant dense<0.000000e+00> : vector<128x128xf32>
    %87 = tpu.matmul %84, %86, %cst_37 {dimension_numbers = #tpu.dot_dimension_numbers<[1], [0], [0], [1], [0, 0, 1, 1], [], []>} : vector<128x128xbf16>, vector<128x128xbf16>, vector<128x128xf32> -> vector<128x128xf32>
    %88 = arith.addf %83, %87 : vector<128x128xf32>
    %89 = arith.truncf %88 : vector<128x128xf32> to vector<128x128xbf16>
    %c0_38 = arith.constant 0 : index
    %c0_39 = arith.constant 0 : index
    %c0_40 = arith.constant 0 : index
    %90 = vector.load %arg5[%c0_38, %c0_39, %c0_40] : memref<1x128x128xbf16, #tpu.memory_space<vmem>>, vector<1x128x128xbf16>
    %91 = vector.shape_cast %90 : vector<1x128x128xbf16> to vector<128x128xbf16>
    %92 = vector.shape_cast %89 : vector<128x128xbf16> to vector<1x128x128xbf16>
    tpu.vector_store %arg5[%c0_38, %c0_39, %c0_40], %92 {strides = array<i32>} : memref<1x128x128xbf16, #tpu.memory_space<vmem>>, vector<1x128x128xbf16>,
    %cst_41 = arith.constant dense<0.000000e+00> : vector<128xf32>
    %93 = vector.multi_reduction <add>, %88, %cst_41 [0] : vector<128x128xf32> to vector<128xf32>
    %94 = vector.shape_cast %93 : vector<128xf32> to vector<1x128xf32>
    %c0_42 = arith.constant 0 : index
    %c0_43 = arith.constant 0 : index
    %c0_44 = arith.constant 0 : index
    %c0_45 = arith.constant 0 : index
    %95 = vector.load %arg6[%c0_42, %c0_43, %c0_44, %c0_45] : memref<1x1x1x128xf32, #tpu.memory_space<vmem>>, vector<1x1x1x128xf32>
    %96 = vector.shape_cast %95 : vector<1x1x1x128xf32> to vector<1x128xf32>
    %97 = vector.shape_cast %94 : vector<1x128xf32> to vector<1x1x1x128xf32>
    tpu.vector_store %arg6[%c0_42, %c0_43, %c0_44, %c0_45], %97 {strides = array<i32>} : memref<1x1x1x128xf32, #tpu.memory_space<vmem>>, vector<1x1x1x128xf32>,
    %98 = arith.mulf %88, %88 : vector<128x128xf32>
    %cst_46 = arith.constant dense<0.000000e+00> : vector<128xf32>
    %99 = vector.multi_reduction <add>, %98, %cst_46 [0] : vector<128x128xf32> to vector<128xf32>
    %100 = vector.shape_cast %99 : vector<128xf32> to vector<1x128xf32>
    %c0_47 = arith.constant 0 : index
    %c0_48 = arith.constant 0 : index
    %c0_49 = arith.constant 0 : index
    %c0_50 = arith.constant 0 : index
    %101 = vector.load %arg7[%c0_47, %c0_48, %c0_49, %c0_50] : memref<1x1x1x128xf32, #tpu.memory_space<vmem>>, vector<1x1x1x128xf32>
    %102 = vector.shape_cast %101 : vector<1x1x1x128xf32> to vector<1x128xf32>
    %103 = vector.shape_cast %100 : vector<1x128xf32> to vector<1x1x1x128xf32>
    tpu.vector_store %arg7[%c0_47, %c0_48, %c0_49, %c0_50], %103 {strides = array<i32>} : memref<1x1x1x128xf32, #tpu.memory_space<vmem>>, vector<1x1x1x128xf32>,
    return
  }
  func.func @transform_1(%arg0: i32, %arg1: i32, %arg2: i32) -> (i32, i32, i32) {
    %c0_i32 = arith.constant 0 : i32
    %c0_i32_0 = arith.constant 0 : i32
    %c0_i32_1 = arith.constant 0 : i32
    return %c0_i32, %c0_i32_0, %arg2 : i32, i32, i32
  }
  func.func @transform_2(%arg0: i32, %arg1: i32, %arg2: i32) -> (i32, i32, i32) {
    %c0_i32 = arith.constant 0 : i32
    return %arg0, %arg1, %arg2 : i32, i32, i32
  }
  func.func @transform_3(%arg0: i32, %arg1: i32, %arg2: i32) -> (i32, i32, i32, i32) {
    %c0_i32 = arith.constant 0 : i32
    %c0_i32_0 = arith.constant 0 : i32
    return %arg0, %arg1, %c0_i32, %arg2 : i32, i32, i32, i32
  }
  func.func @transform_4(%arg0: i32, %arg1: i32, %arg2: i32) -> (i32, i32, i32, i32) {
    %c0_i32 = arith.constant 0 : i32
    %c0_i32_0 = arith.constant 0 : i32
    return %arg0, %arg1, %c0_i32, %arg2 : i32, i32, i32, i32
  }
}

</mosaic_0001>

<llo_original>
// kernel: tpu_custom_call.1
$region0: #{tpu_custom_call.1}
  #allocation0 [shape = 'u32[]', space=smem, size = 0x4, offset = 0x4, fixed_abs, tag = 'smem constant byte address 0x4 - core index']
  #allocation1 [shape = 'u32[144,128]{1,0:T(1,128)}', space=vmem, size = 0x12000, scoped, tag = 'internal scratch']
  #allocation2 [shape = 'bf16[10,16,128]{2,1,0:T(16,128)(2,1)}', space=vmem, size = 0xa000, scoped, tag = 'scratch operand']
  #allocation3 [shape = 's32[3]{0}', space=sflag, size = 0xc, scoped, tag = 'scratch operand']
  #allocation11 [shape = 's32[]', space=sflag, size = 0x4, offset = 0, fixed_abs, tag = 'sflag constant byte address 0x0 - dummy sync flag']
  #allocation12 [shape = 's32[]', space=sflag, size = 0x4, offset = 0, fixed_abs, tag = 'sflag constant byte address 0x0 - dummy sync flag']
  #allocation13 [shape = 'u32[]', space=smem, size = 0x4, offset = 0x44, fixed_abs, tag = 'smem constant byte address 0x44 - assertion arg 0']
  #allocation14 [shape = 'u32[]', space=smem, size = 0x4, offset = 0x48, fixed_abs, tag = 'smem constant byte address 0x48 - assertion arg 1']
  #allocation15 [shape = 's32[]', space=sflag, size = 0x4, offset = 0, fixed_abs, tag = 'sflag constant byte address 0x0 - dummy sync flag']
  #allocation16 [shape = 's32[]', space=sflag, size = 0x4, offset = 0, fixed_abs, tag = 'sflag constant byte address 0x0 - dummy sync flag']
  #allocation17 [shape = 's32[]', space=sflag, size = 0x4, offset = 0, fixed_abs, tag = 'sflag constant byte address 0x0 - dummy sync flag']
  #allocation18 [shape = 's32[]', space=sflag, size = 0x4, offset = 0, fixed_abs, tag = 'sflag constant byte address 0x0 - dummy sync flag']
  %s0 = inlined_call_operand.hbm [shape: bf16[2,16,16,128], index: 0, kind: input, shape index: {}]
  %s1 = inlined_call_operand.hbm [shape: bf16[9,128,128], index: 1, kind: input, shape index: {}]
  %s2 = inlined_call_operand.hbm [shape: bf16[2,256,128], index: 2, kind: output, shape index: {0}]
  %s3 = inlined_call_operand.hbm [shape: f32[2,2,1,128], index: 3, kind: output, shape index: {1}]
  %s4 = inlined_call_operand.hbm [shape: f32[2,2,1,128], index: 4, kind: output, shape index: {2}]
  %5 = xla_tuple %s2, %s3, %s4
  %s6 = sld [smem:[#allocation0]]
  $region81: #{tpu_custom_call.1} parent=0
    _
  %s8 = ssub.s32 1, %s6
  %s9 = scalar_select 0, %s8, %s6
  $region1: #{tpu_custom_call.1} parent=0
    #allocation4 [shape = 'u8[294912]{0}', space=vmem, size = 0x48000, scoped, tag = 'input window, operand 1, single buffered']
    #allocation5 [shape = 's32[2]{0}', space=sflag, size = 0x8, scoped, tag = 'scoped memory for tpu_custom_call.1']
    #allocation6 [shape = 's32[2]{0}', space=sflag, size = 0x8, scoped, tag = 'scoped memory for tpu_custom_call.1']
    #allocation7 [shape = 'u8[65536]{0}', space=vmem, size = 0x10000, scoped, tag = 'output window, operand 0']
    #allocation8 [shape = 'u8[1024]{0}', space=vmem, size = 0x400, scoped, tag = 'output window, operand 1']
    #allocation9 [shape = 's32[2]{0}', space=sflag, size = 0x8, scoped, tag = 'scoped memory for tpu_custom_call.1']
    #allocation10 [shape = 'u8[1024]{0}', space=vmem, size = 0x400, scoped, tag = 'output window, operand 2']
    %10 = vsyncpa [#allocation5], 0
    %11 = vsyncpa [#allocation6], 0
    %s12 = scalar_lea.sflag [#allocation6], 1
    %13 = vsyncpa %s12, 0
    %14 = vsyncpa [#allocation9], 0
    %s15 = scalar_lea.sflag [#allocation9], 1
    %16 = vsyncpa %s15, 0
    loop: start=0, step=1, limit=6
    $region2: #{tpu_custom_call.1} parent=1 // loop_pre_header
      _
    $region3: #{tpu_custom_call.1} parent=1 // loop_header
      %s18 = sphi 0, %s22
      %p19 = scmp.ge.s32.totalorder %s18, 6
      %s25 = sphi 0, %s44
      %s26 = sphi 0, %s40
      %s27 = sphi 0, %s36
      %s28 = sphi 0, %s25
      %s29 = sphi 0, %s26
      %s30 = sphi 0, %s27
      %s31 = sphi 0, %s28
      %s32 = sphi 0, %s29
      %s33 = sphi 0, %s30
      %s47 = sphi 0, %s49
      %s50 = sphi 0, %s47
      %s51 = sphi 0, %s50
      %s67 = sphi 0, %s51
      %s77 = sphi 0, %s79
      %s80 = sphi 0, %s77
      %s81 = sphi 0, %s80
      %s97 = sphi 0, %s81
      %s107 = sphi 0, %s109
      %s110 = sphi 0, %s107
      %s111 = sphi 0, %s110
      %s127 = sphi 0, %s111
      %s137 = sphi 0, %s139
      %s140 = sphi 0, %s137
      %s141 = sphi 0, %s140
      %s157 = sphi 0, %s141
    $region4: #{tpu_custom_call.1} parent=1 // loop_header_branch
      %21 = sbr.rel (%p19) target = $region8
    $region5: #{tpu_custom_call.1} parent=1 // loop_body
      %s23 = ssub.s32 %s18, 1
      %s24 = ssub.s32 %s18, 2
      %s34 = sadd.s32 1, %s27
      %p35 = scmp.ge.s32.totalorder %s34, 1
      %s36 = scalar_select %p35, 0, %s34
      %s37 = sadd.s32 1, %s26
      %s38 = scalar_select %p35, %s37, %s26
      %p39 = scmp.ge.s32.totalorder %s38, 2
      %s40 = scalar_select %p39, 0, %s38
      %s41 = sadd.s32 1, %s25
      %s42 = scalar_select %p39, %s41, %s25
      %p43 = scmp.ge.s32.totalorder %s42, 2
      %s44 = scalar_select %p43, 0, %s42
      %s45 = ssub.s32 %s27, %s36
      %p46 = scmp.eq.s32.totalorder %s45, 0
      %s48 = sadd.s32 %s47, 1
      %s49 = scalar_select %p46, %s47, %s48
      %p52 = pneg %p46
      %p53 = scmp.eq.s32.totalorder %s18, 3
      %p54 = por %p52, %p53
      %p55 = scmp.ne.s32.totalorder %s47, %s50
      %p56 = scmp.eq.s32.totalorder %s18, 0
      %p57 = por %p55, %p56
      %p58 = scmp.ne.s32.totalorder %s47, %s50
      %p59 = scmp.eq.s32.totalorder %s23, 3
      %p60 = por %p58, %p59
      %p61 = scmp.ne.s32.totalorder %s50, %s51
      %p62 = scmp.eq.s32.totalorder %s23, 0
      %p63 = por %p61, %p62
      %p64 = scmp.ne.s32.totalorder %s50, %s51
      %p65 = scmp.eq.s32.totalorder %s24, 3
      %p66 = por %p64, %p65
      %p68 = scmp.ne.s32.totalorder %s51, %s67
      %p69 = scmp.eq.s32.totalorder %s24, 0
      %p70 = por %p68, %p69
      %s71 = ssub.s32 %s25, %s44
      %s72 = ssub.s32 %s26, %s40
      %s73 = sor.u32 %s71, %s72
      %s74 = ssub.s32 %s27, %s36
      %s75 = sor.u32 %s73, %s74
      %p76 = scmp.eq.s32.totalorder %s75, 0
      %s78 = sadd.s32 %s77, 1
      %s79 = scalar_select %p76, %s77, %s78
      %p82 = pneg %p76
      %p83 = scmp.eq.s32.totalorder %s18, 3
      %p84 = por %p82, %p83
      %p85 = scmp.ne.s32.totalorder %s77, %s80
      %p86 = scmp.eq.s32.totalorder %s18, 0
      %p87 = por %p85, %p86
      %p88 = scmp.ne.s32.totalorder %s77, %s80
      %p89 = scmp.eq.s32.totalorder %s23, 3
      %p90 = por %p88, %p89
      %p91 = scmp.ne.s32.totalorder %s80, %s81
      %p92 = scmp.eq.s32.totalorder %s23, 0
      %p93 = por %p91, %p92
      %p94 = scmp.ne.s32.totalorder %s80, %s81
      %p95 = scmp.eq.s32.totalorder %s24, 3
      %p96 = por %p94, %p95
      %p98 = scmp.ne.s32.totalorder %s81, %s97
      %p99 = scmp.eq.s32.totalorder %s24, 0
      %p100 = por %p98, %p99
      %s101 = ssub.s32 %s25, %s44
      %s102 = ssub.s32 %s26, %s40
      %s103 = sor.u32 %s101, %s102
      %s104 = ssub.s32 %s27, %s36
      %s105 = sor.u32 %s103, %s104
      %p106 = scmp.eq.s32.totalorder %s105, 0
      %s108 = sadd.s32 %s107, 1
      %s109 = scalar_select %p106, %s107, %s108
      %p112 = pneg %p106
      %p113 = scmp.eq.s32.totalorder %s18, 3
      %p114 = por %p112, %p113
      %p115 = scmp.ne.s32.totalorder %s107, %s110
      %p116 = scmp.eq.s32.totalorder %s18, 0
      %p117 = por %p115, %p116
      %p118 = scmp.ne.s32.totalorder %s107, %s110
      %p119 = scmp.eq.s32.totalorder %s23, 3
      %p120 = por %p118, %p119
      %p121 = scmp.ne.s32.totalorder %s110, %s111
      %p122 = scmp.eq.s32.totalorder %s23, 0
      %p123 = por %p121, %p122
      %p124 = scmp.ne.s32.totalorder %s110, %s111
      %p125 = scmp.eq.s32.totalorder %s24, 3
      %p126 = por %p124, %p125
      %p128 = scmp.ne.s32.totalorder %s111, %s127
      %p129 = scmp.eq.s32.totalorder %s24, 0
      %p130 = por %p128, %p129
      %s131 = ssub.s32 %s25, %s44
      %s132 = ssub.s32 %s26, %s40
      %s133 = sor.u32 %s131, %s132
      %s134 = ssub.s32 %s27, %s36
      %s135 = sor.u32 %s133, %s134
      %p136 = scmp.eq.s32.totalorder %s135, 0
      %s138 = sadd.s32 %s137, 1
      %s139 = scalar_select %p136, %s137, %s138
      %p142 = pneg %p136
      %p143 = scmp.eq.s32.totalorder %s18, 3
      %p144 = por %p142, %p143
      %p145 = scmp.ne.s32.totalorder %s137, %s140
      %p146 = scmp.eq.s32.totalorder %s18, 0
      %p147 = por %p145, %p146
      %p148 = scmp.ne.s32.totalorder %s137, %s140
      %p149 = scmp.eq.s32.totalorder %s23, 3
      %p150 = por %p148, %p149
      %p151 = scmp.ne.s32.totalorder %s140, %s141
      %p152 = scmp.eq.s32.totalorder %s23, 0
      %p153 = por %p151, %p152
      %p154 = scmp.ne.s32.totalorder %s140, %s141
      %p155 = scmp.eq.s32.totalorder %s24, 3
      %p156 = por %p154, %p155
      %p158 = scmp.ne.s32.totalorder %s141, %s157
      %p159 = scmp.eq.s32.totalorder %s24, 0
      %p160 = por %p158, %p159
      %p161 = scmp.le.s32.totalorder 1, %s18
      %p162 = scmp.lt.s32.totalorder %s18, 5
      %p163 = pnand %p161, %p162
      %p164 = pneg %p163
      // Predicated region
      $region9: #{tpu_custom_call.1} parent=5 // pred_check
        _
      $region10: #{tpu_custom_call.1} parent=5 // pred_check_branch
        %166 = sbr.rel (%p163) target = $region12
      $region11: #{tpu_custom_call.1} parent=5 // pred_region
        %s167 = ssub.s32 %s18, 1
        // Predicated region
        $region13: #{tpu_custom_call.1} parent=11 // pred_check
          %p168 = pneg %p63
        $region14: #{tpu_custom_call.1} parent=11 // pred_check_branch
          %170 = sbr.rel (%p168) target = $region16
        $region15: #{tpu_custom_call.1} parent=11 // pred_region
          %s172 = ssub.s32 9216, 9216
          %173 = vsyncadd [#allocation5], %s172
          %s174 = smul.addr %s30, 64
          %s175 = scalar_lea.hbm %s1, %s174
          %s176 = sshll.u32 [#allocation4], 4
          %s177 = int_to_ptr.vmem [resolvable:$true] %s176
          %182 = dma.hbm_to_vmem [thread:$0]  %s175, 9216, %s177, [#allocation5], 64, 64, 4
        $region16: #{tpu_custom_call.1} parent=11 // pred_fallthru
          _
      $region12: #{tpu_custom_call.1} parent=5 // pred_fallthru
        _
      %p183 = scmp.lt.s32.totalorder %s18, 4
      // Predicated region
      $region17: #{tpu_custom_call.1} parent=5 // pred_check
        %p184 = pneg %p183
      $region18: #{tpu_custom_call.1} parent=5 // pred_check_branch
        %186 = sbr.rel (%p184) target = $region20
      $region19: #{tpu_custom_call.1} parent=5 // pred_region
        _
      $region20: #{tpu_custom_call.1} parent=5 // pred_fallthru
        _
      %p187 = scmp.le.s32.totalorder 1, %s18
      %p188 = scmp.lt.s32.totalorder %s18, 5
      %p189 = pnand %p187, %p188
      %p190 = pneg %p189
      // Predicated region
      $region21: #{tpu_custom_call.1} parent=5 // pred_check
        _
      $region22: #{tpu_custom_call.1} parent=5 // pred_check_branch
        %192 = sbr.rel (%p189) target = $region24
      $region23: #{tpu_custom_call.1} parent=5 // pred_region
        %s193 = ssub.s32 %s18, 1
        // Predicated region
        $region25: #{tpu_custom_call.1} parent=23 // pred_check
          %p194 = pneg %p63
        $region26: #{tpu_custom_call.1} parent=23 // pred_check_branch
          %196 = sbr.rel (%p194) target = $region28
        $region27: #{tpu_custom_call.1} parent=23 // pred_region
          %197 = dma.done [#allocation5], 9216
        $region28: #{tpu_custom_call.1} parent=23 // pred_fallthru
          _
        %p198 = pneg %p63
        %p199 = pneg %p60
        %p200 = pneg %p93
        %p201 = pneg %p90
        %s202 = sand.u32 %s80, 1
        %s203 = scalar_lea.sflag [#allocation6], %s202
        %s204 = sand.u32 %s80, 1
        %s205 = smul.addr %s204, 64
        %s206 = scalar_lea.vmem [#allocation7], %s205
        %p207 = pneg %p123
        %p208 = pneg %p120
        %s209 = sand.u32 %s23, 1
        %s210 = scalar_lea.sflag [#allocation9], %s209
        %s211 = sand.u32 %s110, 1
        %s212 = scalar_lea.vmem [#allocation8], %s211
        %p213 = pneg %p153
        %p214 = pneg %p150
        %s215 = sand.u32 %s23, 1
        %s216 = scalar_lea.sflag [#allocation9], %s215
        %s217 = sand.u32 %s140, 1
        %s218 = scalar_lea.vmem [#allocation10], %s217
        %s219 = smul.u32 16, %s29
        %p221 = scmp.eq.s32.totalorder %s30, 0
        // Predicated region
        $region29: #{tpu_custom_call.1} parent=23 // pred_check
          %p222 = pneg %p221
        $region30: #{tpu_custom_call.1} parent=23 // pred_check_branch
          %224 = sbr.rel (%p222) target = $region32
        $region31: #{tpu_custom_call.1} parent=23 // pred_region
          %s225 = smul.u32 %s29, 8
          %s226 = ssub.s32 %s225, 1
          %p227 = scmp.gt.s32.totalorder %s226, 0
          %s228 = scalar_select %p227, %s226, 0
          %s229 = sadd.s32 %s225, 8
          %p230 = scmp.lt.s32.totalorder %s229, 15
          %s231 = scalar_select %p230, %s229, 15
          %s232 = smul.u32 %s225, 2
          %s233 = smul.u32 %s28, 32
          %s234 = sadd.s32 %s232, %s233
          %s235 = smul.addr %s234, 64
          %s236 = scalar_lea.hbm %s0, %s235
          %s237 = scalar_lea.vmem [#allocation2], 8
          // Predicated region
          $region33: #{tpu_custom_call.1} parent=31 // pred_check
            _
          $region34: #{tpu_custom_call.1} parent=31 // pred_check_branch
            %239 = sbr.rel target = $region36
          $region35: #{tpu_custom_call.1} parent=31 // pred_region
            %240 = sst [smem:[#allocation13]] [#allocation12]
            %241 = sst [smem:[#allocation14]] [#allocation11]
          $region36: #{tpu_custom_call.1} parent=31 // pred_fallthru
            _
          %243 = shalt.err (0)
          %s245 = sshll.u32 %s237, 4
          %s246 = int_to_ptr.vmem [resolvable:$true] %s245
          %248 = dma.hbm_to_vmem [thread:$0]  %s236, 1024, %s246, [#allocation3]
          %s249 = smul.u32 %s228, 2
          %s250 = sadd.s32 %s249, %s233
          %s251 = smul.addr %s250, 64
          %s252 = scalar_lea.hbm %s0, %s251
          %s253 = scalar_lea.sflag [#allocation3], 1
          // Predicated region
          $region37: #{tpu_custom_call.1} parent=31 // pred_check
            _
          $region38: #{tpu_custom_call.1} parent=31 // pred_check_branch
            %255 = sbr.rel target = $region40
          $region39: #{tpu_custom_call.1} parent=31 // pred_region
            %256 = sst [smem:[#allocation13]] [#allocation16]
            %257 = sst [smem:[#allocation14]] [#allocation15]
          $region40: #{tpu_custom_call.1} parent=31 // pred_fallthru
            _
          %259 = shalt.err (0)
          %s261 = sshll.u32 [#allocation2], 4
          %s262 = int_to_ptr.vmem [resolvable:$true] %s261
          %264 = dma.hbm_to_vmem [thread:$0]  %s252, 128, %s262, %s253
          %s265 = smul.u32 %s231, 2
          %s266 = sadd.s32 %s265, %s233
          %s267 = smul.addr %s266, 64
          %s268 = scalar_lea.hbm %s0, %s267
          %s269 = scalar_lea.vmem [#allocation2], 72
          %s270 = scalar_lea.sflag [#allocation3], 2
          // Predicated region
          $region41: #{tpu_custom_call.1} parent=31 // pred_check
            _
          $region42: #{tpu_custom_call.1} parent=31 // pred_check_branch
            %272 = sbr.rel target = $region44
          $region43: #{tpu_custom_call.1} parent=31 // pred_region
            %273 = sst [smem:[#allocation13]] [#allocation18]
            %274 = sst [smem:[#allocation14]] [#allocation17]
          $region44: #{tpu_custom_call.1} parent=31 // pred_fallthru
            _
          %276 = shalt.err (0)
          %s278 = sshll.u32 %s269, 4
          %s279 = int_to_ptr.vmem [resolvable:$true] %s278
          %281 = dma.hbm_to_vmem [thread:$0]  %s268, 128, %s279, %s270
          %s282 = smul.u32 4, 8
          %s283 = smul.u32 %s282, 2
          %s284 = smul.u32 %s283, 1
          %s285 = sshll.u32 %s284, 4
          %286 = dma.done [#allocation3], %s285
          %s287 = smul.u32 4, 1
          %s288 = smul.u32 %s287, 2
          %s289 = smul.u32 %s288, 1
          %s290 = sshll.u32 %s289, 4
          %291 = dma.done %s253, %s290
          %s292 = sshll.u32 %s289, 4
          %293 = dma.done %s270, %s292
          %p294 = scmp.eq.s32.totalorder %s29, 0
          // Predicated region
          $region45: #{tpu_custom_call.1} parent=31 // pred_check
            %p295 = pneg %p294
          $region46: #{tpu_custom_call.1} parent=31 // pred_check_branch
            %297 = sbr.rel (%p295) target = $region48
          $region47: #{tpu_custom_call.1} parent=31 // pred_region
            %298 = vst [vmem:[#allocation2] sm:$0xff] 0
          $region48: #{tpu_custom_call.1} parent=31 // pred_fallthru
            _
          %p299 = scmp.eq.s32.totalorder %s29, 1
          // Predicated region
          $region49: #{tpu_custom_call.1} parent=31 // pred_check
            %p300 = pneg %p299
          $region50: #{tpu_custom_call.1} parent=31 // pred_check_branch
            %302 = sbr.rel (%p300) target = $region52
          $region51: #{tpu_custom_call.1} parent=31 // pred_region
            %303 = vst [vmem:[%s269] sm:$0xff] 0
          $region52: #{tpu_custom_call.1} parent=31 // pred_fallthru
            _
        $region32: #{tpu_custom_call.1} parent=23 // pred_fallthru
          _
        %v304 = vld [vmem:[#allocation2] sm:$0xff]
        %v305 = vld [vmem:[#allocation2 + $0x8] sm:$0xff]
        %v306 = vld [vmem:[#allocation2 + $0x10] sm:$0xff]
        %v307 = vld [vmem:[#allocation2 + $0x18] sm:$0xff]
        %v308 = vld [vmem:[#allocation2 + $0x20] sm:$0xff]
        %v309 = vld [vmem:[#allocation2 + $0x28] sm:$0xff]
        %v310 = vld [vmem:[#allocation2 + $0x30] sm:$0xff]
        %v311 = vld [vmem:[#allocation2 + $0x38] sm:$0xff]
        %v312 = vld [vmem:[#allocation2 + $0x40] sm:$0xff]
        %v313 = vld [vmem:[#allocation2 + $0x48] sm:$0xff]
        %v314 = vunpack.c.l.bf16 %v304
        %v315 = vunpack.c.h.bf16 %v304
        %v316 = vunpack.c.l.bf16 %v305
        %v317 = vunpack.c.h.bf16 %v305
        %v318 = vunpack.c.l.bf16 %v306
        %v319 = vunpack.c.h.bf16 %v306
        %v320 = vunpack.c.l.bf16 %v307
        %v321 = vunpack.c.h.bf16 %v307
        %v322 = vunpack.c.l.bf16 %v308
        %v323 = vunpack.c.h.bf16 %v308
        %v324 = vunpack.c.l.bf16 %v309
        %v325 = vunpack.c.h.bf16 %v309
        %v326 = vunpack.c.l.bf16 %v310
        %v327 = vunpack.c.h.bf16 %v310
        %v328 = vunpack.c.l.bf16 %v311
        %v329 = vunpack.c.h.bf16 %v311
        %v330 = vunpack.c.l.bf16 %v312
        %v331 = vunpack.c.h.bf16 %v312
        %v332 = vunpack.c.l.bf16 %v313
        %v333 = vunpack.c.h.bf16 %v313
        %v334 = vlaneseq
        %v335 = vshrl.u32 %v334, 7
        %v336 = vadd.s32 %v335, 8
        %v337 = vadd.s32 %v335, 16
        %v338 = vadd.s32 %v335, 24
        %v339 = vadd.s32 %v335, 32
        %v340 = vadd.s32 %v335, 40
        %v341 = vadd.s32 %v335, 48
        %v342 = vadd.s32 %v335, 56
        %v343 = vadd.s32 %v335, 64
        %v344 = vadd.s32 %v335, 72
        %v345 = vadd.s32 %v335, 80
        %v346 = vadd.s32 %v335, 88
        %v347 = vadd.s32 %v335, 96
        %v348 = vadd.s32 %v335, 104
        %v349 = vadd.s32 %v335, 112
        %v350 = vadd.s32 %v335, 120
        %v351 = vadd.s32 %v335, 128
        %v352 = vadd.s32 %v335, 136
        %v353 = vadd.s32 %v335, 144
        %v354 = vadd.s32 %v335, 152
        %vm355 = vcmp.lt.s32.totalorder %v335, 0
        %v356 = vsub.s32 0, %v335
        %v357 = vsel %vm355, %v356, %v335
        %v358 = vshrl.u32 %v357, 4
        %v359 = vand.u32 %v357, 15
        %v360 = vsub.s32 0, %v359
        %v361 = vsel %vm355, %v360, %v359
        %vm362 = vcmp.lt.s32.totalorder %v336, 0
        %v363 = vsub.s32 0, %v336
        %v364 = vsel %vm362, %v363, %v336
        %v365 = vshrl.u32 %v364, 4
        %v366 = vand.u32 %v364, 15
        %v367 = vsub.s32 0, %v366
        %v368 = vsel %vm362, %v367, %v366
        %vm369 = vcmp.lt.s32.totalorder %v337, 0
        %v370 = vsub.s32 0, %v337
        %v371 = vsel %vm369, %v370, %v337
        %v372 = vshrl.u32 %v371, 4
        %v373 = vand.u32 %v371, 15
        %v374 = vsub.s32 0, %v373
        %v375 = vsel %vm369, %v374, %v373
        %vm376 = vcmp.lt.s32.totalorder %v338, 0
        %v377 = vsub.s32 0, %v338
        %v378 = vsel %vm376, %v377, %v338
        %v379 = vshrl.u32 %v378, 4
        %v380 = vand.u32 %v378, 15
        %v381 = vsub.s32 0, %v380
        %v382 = vsel %vm376, %v381, %v380
        %vm383 = vcmp.lt.s32.totalorder %v339, 0
        %v384 = vsub.s32 0, %v339
        %v385 = vsel %vm383, %v384, %v339
        %v386 = vshrl.u32 %v385, 4
        %v387 = vand.u32 %v385, 15
        %v388 = vsub.s32 0, %v387
        %v389 = vsel %vm383, %v388, %v387
        %vm390 = vcmp.lt.s32.totalorder %v340, 0
        %v391 = vsub.s32 0, %v340
        %v392 = vsel %vm390, %v391, %v340
        %v393 = vshrl.u32 %v392, 4
        %v394 = vand.u32 %v392, 15
        %v395 = vsub.s32 0, %v394
        %v396 = vsel %vm390, %v395, %v394
        %vm397 = vcmp.lt.s32.totalorder %v341, 0
        %v398 = vsub.s32 0, %v341
        %v399 = vsel %vm397, %v398, %v341
        %v400 = vshrl.u32 %v399, 4
        %v401 = vand.u32 %v399, 15
        %v402 = vsub.s32 0, %v401
        %v403 = vsel %vm397, %v402, %v401
        %vm404 = vcmp.lt.s32.totalorder %v342, 0
        %v405 = vsub.s32 0, %v342
        %v406 = vsel %vm404, %v405, %v342
        %v407 = vshrl.u32 %v406, 4
        %v408 = vand.u32 %v406, 15
        %v409 = vsub.s32 0, %v408
        %v410 = vsel %vm404, %v409, %v408
        %vm411 = vcmp.lt.s32.totalorder %v343, 0
        %v412 = vsub.s32 0, %v343
        %v413 = vsel %vm411, %v412, %v343
        %v414 = vshrl.u32 %v413, 4
        %v415 = vand.u32 %v413, 15
        %v416 = vsub.s32 0, %v415
        %v417 = vsel %vm411, %v416, %v415
        %vm418 = vcmp.lt.s32.totalorder %v344, 0
        %v419 = vsub.s32 0, %v344
        %v420 = vsel %vm418, %v419, %v344
        %v421 = vshrl.u32 %v420, 4
        %v422 = vand.u32 %v420, 15
        %v423 = vsub.s32 0, %v422
        %v424 = vsel %vm418, %v423, %v422
        %vm425 = vcmp.lt.s32.totalorder %v345, 0
        %v426 = vsub.s32 0, %v345
        %v427 = vsel %vm425, %v426, %v345
        %v428 = vshrl.u32 %v427, 4
        %v429 = vand.u32 %v427, 15
        %v430 = vsub.s32 0, %v429
        %v431 = vsel %vm425, %v430, %v429
        %vm432 = vcmp.lt.s32.totalorder %v346, 0
        %v433 = vsub.s32 0, %v346
        %v434 = vsel %vm432, %v433, %v346
        %v435 = vshrl.u32 %v434, 4
        %v436 = vand.u32 %v434, 15
        %v437 = vsub.s32 0, %v436
        %v438 = vsel %vm432, %v437, %v436
        %vm439 = vcmp.lt.s32.totalorder %v347, 0
        %v440 = vsub.s32 0, %v347
        %v441 = vsel %vm439, %v440, %v347
        %v442 = vshrl.u32 %v441, 4
        %v443 = vand.u32 %v441, 15
        %v444 = vsub.s32 0, %v443
        %v445 = vsel %vm439, %v444, %v443
        %vm446 = vcmp.lt.s32.totalorder %v348, 0
        %v447 = vsub.s32 0, %v348
        %v448 = vsel %vm446, %v447, %v348
        %v449 = vshrl.u32 %v448, 4
        %v450 = vand.u32 %v448, 15
        %v451 = vsub.s32 0, %v450
        %v452 = vsel %vm446, %v451, %v450
        %vm453 = vcmp.lt.s32.totalorder %v349, 0
        %v454 = vsub.s32 0, %v349
        %v455 = vsel %vm453, %v454, %v349
        %v456 = vshrl.u32 %v455, 4
        %v457 = vand.u32 %v455, 15
        %v458 = vsub.s32 0, %v457
        %v459 = vsel %vm453, %v458, %v457
        %vm460 = vcmp.lt.s32.totalorder %v350, 0
        %v461 = vsub.s32 0, %v350
        %v462 = vsel %vm460, %v461, %v350
        %v463 = vshrl.u32 %v462, 4
        %v464 = vand.u32 %v462, 15
        %v465 = vsub.s32 0, %v464
        %v466 = vsel %vm460, %v465, %v464
        %vm467 = vcmp.lt.s32.totalorder %v351, 0
        %v468 = vsub.s32 0, %v351
        %v469 = vsel %vm467, %v468, %v351
        %v470 = vshrl.u32 %v469, 4
        %v471 = vand.u32 %v469, 15
        %v472 = vsub.s32 0, %v471
        %v473 = vsel %vm467, %v472, %v471
        %vm474 = vcmp.lt.s32.totalorder %v352, 0
        %v475 = vsub.s32 0, %v352
        %v476 = vsel %vm474, %v475, %v352
        %v477 = vshrl.u32 %v476, 4
        %v478 = vand.u32 %v476, 15
        %v479 = vsub.s32 0, %v478
        %v480 = vsel %vm474, %v479, %v478
        %vm481 = vcmp.lt.s32.totalorder %v353, 0
        %v482 = vsub.s32 0, %v353
        %v483 = vsel %vm481, %v482, %v353
        %v484 = vshrl.u32 %v483, 4
        %v485 = vand.u32 %v483, 15
        %v486 = vsub.s32 0, %v485
        %v487 = vsel %vm481, %v486, %v485
        %vm488 = vcmp.lt.s32.totalorder %v354, 0
        %v489 = vsub.s32 0, %v354
        %v490 = vsel %vm488, %v489, %v354
        %v491 = vshrl.u32 %v490, 4
        %v492 = vand.u32 %v490, 15
        %v493 = vsub.s32 0, %v492
        %v494 = vsel %vm488, %v493, %v492
        %vm495 = vcmp.ne.s32.totalorder %v361, 0
        %vm496 = vcmp.ne.s32.totalorder %v368, 0
        %vm497 = vcmp.ne.s32.totalorder %v375, 0
        %vm498 = vcmp.ne.s32.totalorder %v382, 0
        %vm499 = vcmp.ne.s32.totalorder %v389, 0
        %vm500 = vcmp.ne.s32.totalorder %v396, 0
        %vm501 = vcmp.ne.s32.totalorder %v403, 0
        %vm502 = vcmp.ne.s32.totalorder %v410, 0
        %vm503 = vcmp.ne.s32.totalorder %v417, 0
        %vm504 = vcmp.ne.s32.totalorder %v424, 0
        %vm505 = vcmp.ne.s32.totalorder %v431, 0
        %vm506 = vcmp.ne.s32.totalorder %v438, 0
        %vm507 = vcmp.ne.s32.totalorder %v445, 0
        %vm508 = vcmp.ne.s32.totalorder %v452, 0
        %vm509 = vcmp.ne.s32.totalorder %v459, 0
        %vm510 = vcmp.ne.s32.totalorder %v466, 0
        %vm511 = vcmp.ne.s32.totalorder %v473, 0
        %vm512 = vcmp.ne.s32.totalorder %v480, 0
        %vm513 = vcmp.ne.s32.totalorder %v487, 0
        %vm514 = vcmp.ne.s32.totalorder %v494, 0
        %vm515 = vcmp.lt.s32.totalorder %v361, 0
        %vm516 = vcmp.lt.s32.totalorder %v368, 0
        %vm517 = vcmp.lt.s32.totalorder %v375, 0
        %vm518 = vcmp.lt.s32.totalorder %v382, 0
        %vm519 = vcmp.lt.s32.totalorder %v389, 0
        %vm520 = vcmp.lt.s32.totalorder %v396, 0
        %vm521 = vcmp.lt.s32.totalorder %v403, 0
        %vm522 = vcmp.lt.s32.totalorder %v410, 0
        %vm523 = vcmp.lt.s32.totalorder %v417, 0
        %vm524 = vcmp.lt.s32.totalorder %v424, 0
        %vm525 = vcmp.lt.s32.totalorder %v431, 0
        %vm526 = vcmp.lt.s32.totalorder %v438, 0
        %vm527 = vcmp.lt.s32.totalorder %v445, 0
        %vm528 = vcmp.lt.s32.totalorder %v452, 0
        %vm529 = vcmp.lt.s32.totalorder %v459, 0
        %vm530 = vcmp.lt.s32.totalorder %v466, 0
        %vm531 = vcmp.lt.s32.totalorder %v473, 0
        %vm532 = vcmp.lt.s32.totalorder %v480, 0
        %vm533 = vcmp.lt.s32.totalorder %v487, 0
        %vm534 = vcmp.lt.s32.totalorder %v494, 0
        %vm535 = vmand %vm515, %vm495
        %vm536 = vmand %vm516, %vm496
        %vm537 = vmand %vm517, %vm497
        %vm538 = vmand %vm518, %vm498
        %vm539 = vmand %vm519, %vm499
        %vm540 = vmand %vm520, %vm500
        %vm541 = vmand %vm521, %vm501
        %vm542 = vmand %vm522, %vm502
        %vm543 = vmand %vm523, %vm503
        %vm544 = vmand %vm524, %vm504
        %vm545 = vmand %vm525, %vm505
        %vm546 = vmand %vm526, %vm506
        %vm547 = vmand %vm527, %vm507
        %vm548 = vmand %vm528, %vm508
        %vm549 = vmand %vm529, %vm509
        %vm550 = vmand %vm530, %vm510
        %vm551 = vmand %vm531, %vm511
        %vm552 = vmand %vm532, %vm512
        %vm553 = vmand %vm533, %vm513
        %vm554 = vmand %vm534, %vm514
        %v555 = vadd.s32 %v361, 16
        %v556 = vadd.s32 %v368, 16
        %v557 = vadd.s32 %v375, 16
        %v558 = vadd.s32 %v382, 16
        %v559 = vadd.s32 %v389, 16
        %v560 = vadd.s32 %v396, 16
        %v561 = vadd.s32 %v403, 16
        %v562 = vadd.s32 %v410, 16
        %v563 = vadd.s32 %v417, 16
        %v564 = vadd.s32 %v424, 16
        %v565 = vadd.s32 %v431, 16
        %v566 = vadd.s32 %v438, 16
        %v567 = vadd.s32 %v445, 16
        %v568 = vadd.s32 %v452, 16
        %v569 = vadd.s32 %v459, 16
        %v570 = vadd.s32 %v466, 16
        %v571 = vadd.s32 %v473, 16
        %v572 = vadd.s32 %v480, 16
        %v573 = vadd.s32 %v487, 16
        %v574 = vadd.s32 %v494, 16
        %v575 = vsel %vm535, %v555, %v361
        %v576 = vsel %vm536, %v556, %v368
        %v577 = vsel %vm537, %v557, %v375
        %v578 = vsel %vm538, %v558, %v382
        %v579 = vsel %vm539, %v559, %v389
        %v580 = vsel %vm540, %v560, %v396
        %v581 = vsel %vm541, %v561, %v403
        %v582 = vsel %vm542, %v562, %v410
        %v583 = vsel %vm543, %v563, %v417
        %v584 = vsel %vm544, %v564, %v424
        %v585 = vsel %vm545, %v565, %v431
        %v586 = vsel %vm546, %v566, %v438
        %v587 = vsel %vm547, %v567, %v445
        %v588 = vsel %vm548, %v568, %v452
        %v589 = vsel %vm549, %v569, %v459
        %v590 = vsel %vm550, %v570, %v466
        %v591 = vsel %vm551, %v571, %v473
        %v592 = vsel %vm552, %v572, %v480
        %v593 = vsel %vm553, %v573, %v487
        %v594 = vsel %vm554, %v574, %v494
        %vm595 = vcmp.eq.s32.totalorder %v575, 0
        %vm596 = vcmp.eq.s32.totalorder %v576, 0
        %vm597 = vcmp.eq.s32.totalorder %v577, 0
        %vm598 = vcmp.eq.s32.totalorder %v578, 0
        %vm599 = vcmp.eq.s32.totalorder %v579, 0
        %vm600 = vcmp.eq.s32.totalorder %v580, 0
        %vm601 = vcmp.eq.s32.totalorder %v581, 0
        %vm602 = vcmp.eq.s32.totalorder %v582, 0
        %vm603 = vcmp.eq.s32.totalorder %v583, 0
        %vm604 = vcmp.eq.s32.totalorder %v584, 0
        %vm605 = vcmp.eq.s32.totalorder %v585, 0
        %vm606 = vcmp.eq.s32.totalorder %v586, 0
        %vm607 = vcmp.eq.s32.totalorder %v587, 0
        %vm608 = vcmp.eq.s32.totalorder %v588, 0
        %vm609 = vcmp.eq.s32.totalorder %v589, 0
        %vm610 = vcmp.eq.s32.totalorder %v590, 0
        %vm611 = vcmp.eq.s32.totalorder %v591, 0
        %vm612 = vcmp.eq.s32.totalorder %v592, 0
        %vm613 = vcmp.eq.s32.totalorder %v593, 0
        %vm614 = vcmp.eq.s32.totalorder %v594, 0
        %v616 = vrot.slane %v333, 7
        %vm637 = vcmask 1040384
        %v638 = vrot.slane %v314, 7
        %v639 = vrot.slane %v315, 7
        %v640 = vsel %vm637, %v638, %v639
        %v641 = vrot.slane %v316, 7
        %v642 = vsel %vm637, %v639, %v641
        %v643 = vrot.slane %v317, 7
        %v644 = vsel %vm637, %v641, %v643
        %v645 = vrot.slane %v318, 7
        %v646 = vsel %vm637, %v643, %v645
        %v647 = vrot.slane %v319, 7
        %v648 = vsel %vm637, %v645, %v647
        %v649 = vrot.slane %v320, 7
        %v650 = vsel %vm637, %v647, %v649
        %v651 = vrot.slane %v321, 7
        %v652 = vsel %vm637, %v649, %v651
        %v653 = vrot.slane %v322, 7
        %v654 = vsel %vm637, %v651, %v653
        %v655 = vrot.slane %v323, 7
        %v656 = vsel %vm637, %v653, %v655
        %v657 = vrot.slane %v324, 7
        %v658 = vsel %vm637, %v655, %v657
        %v659 = vrot.slane %v325, 7
        %v660 = vsel %vm637, %v657, %v659
        %v661 = vrot.slane %v326, 7
        %v662 = vsel %vm637, %v659, %v661
        %v663 = vrot.slane %v327, 7
        %v664 = vsel %vm637, %v661, %v663
        %v665 = vrot.slane %v328, 7
        %v666 = vsel %vm637, %v663, %v665
        %v667 = vrot.slane %v329, 7
        %v668 = vsel %vm637, %v665, %v667
        %v669 = vrot.slane %v330, 7
        %v670 = vsel %vm637, %v667, %v669
        %v671 = vrot.slane %v331, 7
        %v672 = vsel %vm637, %v669, %v671
        %v673 = vrot.slane %v332, 7
        %v674 = vsel %vm637, %v671, %v673
        %v675 = vsel %vm637, %v673, %v616
        %v696 = vsel %vm637, %v616, %v638
        %v697 = vsel %vm595, 1, 0
        %v698 = vsel %vm596, 1, 0
        %v699 = vsel %vm597, 1, 0
        %v700 = vsel %vm598, 1, 0
        %v701 = vsel %vm599, 1, 0
        %v702 = vsel %vm600, 1, 0
        %v703 = vsel %vm601, 1, 0
        %v704 = vsel %vm602, 1, 0
        %v705 = vsel %vm603, 1, 0
        %v706 = vsel %vm604, 1, 0
        %v707 = vsel %vm605, 1, 0
        %v708 = vsel %vm606, 1, 0
        %v709 = vsel %vm607, 1, 0
        %v710 = vsel %vm608, 1, 0
        %v711 = vsel %vm609, 1, 0
        %v712 = vsel %vm610, 1, 0
        %v713 = vsel %vm611, 1, 0
        %v714 = vsel %vm612, 1, 0
        %v715 = vsel %vm613, 1, 0
        %v716 = vsel %vm614, 1, 0
        %vm717 = vcmp.eq.s32.totalorder %v697, 1
        %vm718 = vcmp.eq.s32.totalorder %v698, 1
        %vm719 = vcmp.eq.s32.totalorder %v699, 1
        %vm720 = vcmp.eq.s32.totalorder %v700, 1
        %vm721 = vcmp.eq.s32.totalorder %v701, 1
        %vm722 = vcmp.eq.s32.totalorder %v702, 1
        %vm723 = vcmp.eq.s32.totalorder %v703, 1
        %vm724 = vcmp.eq.s32.totalorder %v704, 1
        %vm725 = vcmp.eq.s32.totalorder %v705, 1
        %vm726 = vcmp.eq.s32.totalorder %v706, 1
        %vm727 = vcmp.eq.s32.totalorder %v707, 1
        %vm728 = vcmp.eq.s32.totalorder %v708, 1
        %vm729 = vcmp.eq.s32.totalorder %v709, 1
        %vm730 = vcmp.eq.s32.totalorder %v710, 1
        %vm731 = vcmp.eq.s32.totalorder %v711, 1
        %vm732 = vcmp.eq.s32.totalorder %v712, 1
        %vm733 = vcmp.eq.s32.totalorder %v713, 1
        %vm734 = vcmp.eq.s32.totalorder %v714, 1
        %vm735 = vcmp.eq.s32.totalorder %v715, 1
        %vm736 = vcmp.eq.s32.totalorder %v716, 1
        %v737 = vsel %vm717, 0.0, %v696
        %v738 = vsel %vm718, 0.0, %v640
        %v739 = vsel %vm719, 0.0, %v642
        %v740 = vsel %vm720, 0.0, %v644
        %v741 = vsel %vm721, 0.0, %v646
        %v742 = vsel %vm722, 0.0, %v648
        %v743 = vsel %vm723, 0.0, %v650
        %v744 = vsel %vm724, 0.0, %v652
        %v745 = vsel %vm725, 0.0, %v654
        %v746 = vsel %vm726, 0.0, %v656
        %v747 = vsel %vm727, 0.0, %v658
        %v748 = vsel %vm728, 0.0, %v660
        %v749 = vsel %vm729, 0.0, %v662
        %v750 = vsel %vm730, 0.0, %v664
        %v751 = vsel %vm731, 0.0, %v666
        %v752 = vsel %vm732, 0.0, %v668
        %v753 = vsel %vm733, 0.0, %v670
        %v754 = vsel %vm734, 0.0, %v672
        %v755 = vsel %vm735, 0.0, %v674
        %v756 = vsel %vm736, 0.0, %v675
        %v757 = vpack.c.bf16 %v738, %v737
        %v758 = vpack.c.bf16 %v740, %v739
        %v759 = vpack.c.bf16 %v742, %v741
        %v760 = vpack.c.bf16 %v744, %v743
        %v761 = vpack.c.bf16 %v746, %v745
        %v762 = vpack.c.bf16 %v748, %v747
        %v763 = vpack.c.bf16 %v750, %v749
        %v764 = vpack.c.bf16 %v752, %v751
        %v765 = vpack.c.bf16 %v754, %v753
        %v766 = vpack.c.bf16 %v756, %v755
        %vm767 = vcmp.eq.s32.totalorder %v575, 15
        %vm768 = vcmp.eq.s32.totalorder %v576, 15
        %vm769 = vcmp.eq.s32.totalorder %v577, 15
        %vm770 = vcmp.eq.s32.totalorder %v578, 15
        %vm771 = vcmp.eq.s32.totalorder %v579, 15
        %vm772 = vcmp.eq.s32.totalorder %v580, 15
        %vm773 = vcmp.eq.s32.totalorder %v581, 15
        %vm774 = vcmp.eq.s32.totalorder %v582, 15
        %vm775 = vcmp.eq.s32.totalorder %v583, 15
        %vm776 = vcmp.eq.s32.totalorder %v584, 15
        %vm777 = vcmp.eq.s32.totalorder %v585, 15
        %vm778 = vcmp.eq.s32.totalorder %v586, 15
        %vm779 = vcmp.eq.s32.totalorder %v587, 15
        %vm780 = vcmp.eq.s32.totalorder %v588, 15
        %vm781 = vcmp.eq.s32.totalorder %v589, 15
        %vm782 = vcmp.eq.s32.totalorder %v590, 15
        %vm783 = vcmp.eq.s32.totalorder %v591, 15
        %vm784 = vcmp.eq.s32.totalorder %v592, 15
        %vm785 = vcmp.eq.s32.totalorder %v593, 15
        %vm786 = vcmp.eq.s32.totalorder %v594, 15
        %vm787 = vcmask 1046528
        %v788 = vrot.slane %v314, 1
        %v789 = vrot.slane %v315, 1
        %v790 = vsel %vm787, %v788, %v789
        %v791 = vrot.slane %v316, 1
        %v792 = vsel %vm787, %v789, %v791
        %v793 = vrot.slane %v317, 1
        %v794 = vsel %vm787, %v791, %v793
        %v795 = vrot.slane %v318, 1
        %v796 = vsel %vm787, %v793, %v795
        %v797 = vrot.slane %v319, 1
        %v798 = vsel %vm787, %v795, %v797
        %v799 = vrot.slane %v320, 1
        %v800 = vsel %vm787, %v797, %v799
        %v801 = vrot.slane %v321, 1
        %v802 = vsel %vm787, %v799, %v801
        %v803 = vrot.slane %v322, 1
        %v804 = vsel %vm787, %v801, %v803
        %v805 = vrot.slane %v323, 1
        %v806 = vsel %vm787, %v803, %v805
        %v807 = vrot.slane %v324, 1
        %v808 = vsel %vm787, %v805, %v807
        %v809 = vrot.slane %v325, 1
        %v810 = vsel %vm787, %v807, %v809
        %v811 = vrot.slane %v326, 1
        %v812 = vsel %vm787, %v809, %v811
        %v813 = vrot.slane %v327, 1
        %v814 = vsel %vm787, %v811, %v813
        %v815 = vrot.slane %v328, 1
        %v816 = vsel %vm787, %v813, %v815
        %v817 = vrot.slane %v329, 1
        %v818 = vsel %vm787, %v815, %v817
        %v819 = vrot.slane %v330, 1
        %v820 = vsel %vm787, %v817, %v819
        %v821 = vrot.slane %v331, 1
        %v822 = vsel %vm787, %v819, %v821
        %v823 = vrot.slane %v332, 1
        %v824 = vsel %vm787, %v821, %v823
        %v825 = vrot.slane %v333, 1
        %v826 = vsel %vm787, %v823, %v825
        %v848 = vsel %vm787, %v825, %v788
        %v849 = vsel %vm767, 1, 0
        %v850 = vsel %vm768, 1, 0
        %v851 = vsel %vm769, 1, 0
        %v852 = vsel %vm770, 1, 0
        %v853 = vsel %vm771, 1, 0
        %v854 = vsel %vm772, 1, 0
        %v855 = vsel %vm773, 1, 0
        %v856 = vsel %vm774, 1, 0
        %v857 = vsel %vm775, 1, 0
        %v858 = vsel %vm776, 1, 0
        %v859 = vsel %vm777, 1, 0
        %v860 = vsel %vm778, 1, 0
        %v861 = vsel %vm779, 1, 0
        %v862 = vsel %vm780, 1, 0
        %v863 = vsel %vm781, 1, 0
        %v864 = vsel %vm782, 1, 0
        %v865 = vsel %vm783, 1, 0
        %v866 = vsel %vm784, 1, 0
        %v867 = vsel %vm785, 1, 0
        %v868 = vsel %vm786, 1, 0
        %vm869 = vcmp.eq.s32.totalorder %v849, 1
        %vm870 = vcmp.eq.s32.totalorder %v850, 1
        %vm871 = vcmp.eq.s32.totalorder %v851, 1
        %vm872 = vcmp.eq.s32.totalorder %v852, 1
        %vm873 = vcmp.eq.s32.totalorder %v853, 1
        %vm874 = vcmp.eq.s32.totalorder %v854, 1
        %vm875 = vcmp.eq.s32.totalorder %v855, 1
        %vm876 = vcmp.eq.s32.totalorder %v856, 1
        %vm877 = vcmp.eq.s32.totalorder %v857, 1
        %vm878 = vcmp.eq.s32.totalorder %v858, 1
        %vm879 = vcmp.eq.s32.totalorder %v859, 1
        %vm880 = vcmp.eq.s32.totalorder %v860, 1
        %vm881 = vcmp.eq.s32.totalorder %v861, 1
        %vm882 = vcmp.eq.s32.totalorder %v862, 1
        %vm883 = vcmp.eq.s32.totalorder %v863, 1
        %vm884 = vcmp.eq.s32.totalorder %v864, 1
        %vm885 = vcmp.eq.s32.totalorder %v865, 1
        %vm886 = vcmp.eq.s32.totalorder %v866, 1
        %vm887 = vcmp.eq.s32.totalorder %v867, 1
        %vm888 = vcmp.eq.s32.totalorder %v868, 1
        %v889 = vsel %vm869, 0.0, %v790
        %v890 = vsel %vm870, 0.0, %v792
        %v891 = vsel %vm871, 0.0, %v794
        %v892 = vsel %vm872, 0.0, %v796
        %v893 = vsel %vm873, 0.0, %v798
        %v894 = vsel %vm874, 0.0, %v800
        %v895 = vsel %vm875, 0.0, %v802
        %v896 = vsel %vm876, 0.0, %v804
        %v897 = vsel %vm877, 0.0, %v806
        %v898 = vsel %vm878, 0.0, %v808
        %v899 = vsel %vm879, 0.0, %v810
        %v900 = vsel %vm880, 0.0, %v812
        %v901 = vsel %vm881, 0.0, %v814
        %v902 = vsel %vm882, 0.0, %v816
        %v903 = vsel %vm883, 0.0, %v818
        %v904 = vsel %vm884, 0.0, %v820
        %v905 = vsel %vm885, 0.0, %v822
        %v906 = vsel %vm886, 0.0, %v824
        %v907 = vsel %vm887, 0.0, %v826
        %v908 = vsel %vm888, 0.0, %v848
        %v909 = vpack.c.bf16 %v890, %v889
        %v910 = vpack.c.bf16 %v892, %v891
        %v911 = vpack.c.bf16 %v894, %v893
        %v912 = vpack.c.bf16 %v896, %v895
        %v913 = vpack.c.bf16 %v898, %v897
        %v914 = vpack.c.bf16 %v900, %v899
        %v915 = vpack.c.bf16 %v902, %v901
        %v916 = vpack.c.bf16 %v904, %v903
        %v917 = vpack.c.bf16 %v906, %v905
        %v918 = vpack.c.bf16 %v908, %v907
        %v919 = vld [vmem:[#allocation4] sm:$0xf]
        %v920 = vld [vmem:[#allocation4 + $0x4] sm:$0xf]
        %v921 = vld [vmem:[#allocation4 + $0x8] sm:$0xf]
        %v922 = vld [vmem:[#allocation4 + $0xc] sm:$0xf]
        %v923 = vld [vmem:[#allocation4 + $0x10] sm:$0xf]
        %v924 = vld [vmem:[#allocation4 + $0x14] sm:$0xf]
        %v925 = vld [vmem:[#allocation4 + $0x18] sm:$0xf]
        %v926 = vld [vmem:[#allocation4 + $0x1c] sm:$0xf]
        %v927 = vld [vmem:[#allocation4 + $0x20] sm:$0xf]
        %v928 = vld [vmem:[#allocation4 + $0x24] sm:$0xf]
        %v929 = vld [vmem:[#allocation4 + $0x28] sm:$0xf]
        %v930 = vld [vmem:[#allocation4 + $0x2c] sm:$0xf]
        %v931 = vld [vmem:[#allocation4 + $0x30] sm:$0xf]
        %v932 = vld [vmem:[#allocation4 + $0x34] sm:$0xf]
        %v933 = vld [vmem:[#allocation4 + $0x38] sm:$0xf]
        %v934 = vld [vmem:[#allocation4 + $0x3c] sm:$0xf]
        %s935 = scalar_lea.vmem [#allocation4], 64
        %v936 = vld [vmem:[%s935] sm:$0xf]
        %v937 = vld [vmem:[%s935 + $0x4] sm:$0xf]
        %v938 = vld [vmem:[%s935 + $0x8] sm:$0xf]
        %v939 = vld [vmem:[%s935 + $0xc] sm:$0xf]
        %v940 = vld [vmem:[%s935 + $0x10] sm:$0xf]
        %v941 = vld [vmem:[%s935 + $0x14] sm:$0xf]
        %v942 = vld [vmem:[%s935 + $0x18] sm:$0xf]
        %v943 = vld [vmem:[%s935 + $0x1c] sm:$0xf]
        %v944 = vld [vmem:[%s935 + $0x20] sm:$0xf]
        %v945 = vld [vmem:[%s935 + $0x24] sm:$0xf]
        %v946 = vld [vmem:[%s935 + $0x28] sm:$0xf]
        %v947 = vld [vmem:[%s935 + $0x2c] sm:$0xf]
        %v948 = vld [vmem:[%s935 + $0x30] sm:$0xf]
        %v949 = vld [vmem:[%s935 + $0x34] sm:$0xf]
        %v950 = vld [vmem:[%s935 + $0x38] sm:$0xf]
        %v951 = vld [vmem:[%s935 + $0x3c] sm:$0xf]
        %v968 = vunpack.c.l.b16 %v936
        %v969 = vunpack.c.l.b16 %v937
        %v970 = vunpack.c.l.b16 %v938
        %v971 = vunpack.c.l.b16 %v939
        %v972 = vunpack.c.l.b16 %v940
        %v973 = vunpack.c.l.b16 %v941
        %v974 = vunpack.c.l.b16 %v942
        %v975 = vunpack.c.l.b16 %v943
        %v976 = vunpack.c.l.b16 %v944
        %v977 = vunpack.c.l.b16 %v945
        %v978 = vunpack.c.l.b16 %v946
        %v979 = vunpack.c.l.b16 %v947
        %v980 = vunpack.c.l.b16 %v948
        %v981 = vunpack.c.l.b16 %v949
        %v982 = vunpack.c.l.b16 %v950
        %v983 = vunpack.c.l.b16 %v951
        %v984 = vpack.c.b16 %v969, %v968
        %v985 = vpack.c.b16 %v971, %v970
        %v986 = vpack.c.b16 %v973, %v972
        %v987 = vpack.c.b16 %v975, %v974
        %v988 = vpack.c.b16 %v977, %v976
        %v989 = vpack.c.b16 %v979, %v978
        %v990 = vpack.c.b16 %v981, %v980
        %v991 = vpack.c.b16 %v983, %v982
        %1000 = vmatprep.subr.bf16.mxu0 0
        %1001 = vmatpush1.bf16.msra.mxu0 %v984
        %1002 = vmatprep.subr.bf16.mxu0 0
        %1003 = vmatpush1.bf16.msra.mxu0 %v985
        %1004 = vmatprep.subr.bf16.mxu0 0
        %1005 = vmatpush1.bf16.msra.mxu0 %v986
        %1006 = vmatprep.subr.bf16.mxu0 0
        %1007 = vmatpush1.bf16.msra.mxu0 %v987
        %1008 = vmatprep.subr.bf16.mxu0 0
        %1009 = vmatpush1.bf16.msra.mxu0 %v988
        %1010 = vmatprep.subr.bf16.mxu0 0
        %1011 = vmatpush1.bf16.msra.mxu0 %v989
        %1012 = vmatprep.subr.bf16.mxu0 0
        %1013 = vmatpush1.bf16.msra.mxu0 %v990
        %1014 = vmatprep.subr.bf16.mxu0 0
        %1015 = vmatpush1.bf16.msra.mxu0 %v991
        %1016 = vmatprep.subr.bf16.mxu0 0
        %1017 = vmatpush1.bf16.msra.mxu0 0
        %1018 = vmatprep.subr.bf16.mxu0 0
        %1019 = vmatpush1.bf16.msra.mxu0 0
        %1020 = vmatprep.subr.bf16.mxu0 0
        %1021 = vmatpush1.bf16.msra.mxu0 0
        %1022 = vmatprep.subr.bf16.mxu0 0
        %1023 = vmatpush1.bf16.msra.mxu0 0
        %1024 = vmatprep.subr.bf16.mxu0 0
        %1025 = vmatpush1.bf16.msra.mxu0 0
        %1026 = vmatprep.subr.bf16.mxu0 0
        %1027 = vmatpush1.bf16.msra.mxu0 0
        %1028 = vmatprep.subr.bf16.mxu0 0
        %1029 = vmatpush1.bf16.msra.mxu0 0
        %1030 = vmatprep.subr.bf16.mxu0 0
        %1031 = vmatpush1.bf16.msra.mxu0 0
        %1032 = vmatprep.mubr.bf16.mxu0 0
        %1033 = vmatmul.mubr.bf16.gmra.mrb[0].mxu0 %v304
        %v1034 = vpop.f32.mrb[0].mxu0
        %v1035 = vadd.f32 0.0, %v1034
        %v1036 = vpop.f32.mrb[0].mxu0
        %v1037 = vpop.f32.mrb[0].mxu0
        %v1038 = vadd.f32 0.0, %v1037
        %v1039 = vpop.f32.mrb[0].mxu0
        %1040 = vmatprep.mubr.bf16.mxu0 0
        %1041 = vmatmul.mubr.bf16.gmra.mrb[0].mxu0 %v305
        %v1042 = vpop.f32.mrb[0].mxu0
        %v1043 = vadd.f32 0.0, %v1042
        %v1044 = vpop.f32.mrb[0].mxu0
        %v1045 = vpop.f32.mrb[0].mxu0
        %v1046 = vadd.f32 0.0, %v1045
        %v1047 = vpop.f32.mrb[0].mxu0
        %1048 = vmatprep.mubr.bf16.mxu0 0
        %1049 = vmatmul.mubr.bf16.gmra.mrb[0].mxu0 %v306
        %v1050 = vpop.f32.mrb[0].mxu0
        %v1051 = vadd.f32 0.0, %v1050
        %v1052 = vpop.f32.mrb[0].mxu0
        %v1053 = vpop.f32.mrb[0].mxu0
        %v1054 = vadd.f32 0.0, %v1053
        %v1055 = vpop.f32.mrb[0].mxu0
        %1056 = vmatprep.mubr.bf16.mxu0 0
        %1057 = vmatmul.mubr.bf16.gmra.mrb[0].mxu0 %v307
        %v1058 = vpop.f32.mrb[0].mxu0
        %v1059 = vadd.f32 0.0, %v1058
        %v1060 = vpop.f32.mrb[0].mxu0
        %v1061 = vpop.f32.mrb[0].mxu0
        %v1062 = vadd.f32 0.0, %v1061
        %v1063 = vpop.f32.mrb[0].mxu0
        %1064 = vmatprep.mubr.bf16.mxu0 0
        %1065 = vmatmul.mubr.bf16.gmra.mrb[0].mxu0 %v308
        %v1066 = vpop.f32.mrb[0].mxu0
        %v1067 = vadd.f32 0.0, %v1066
        %v1068 = vpop.f32.mrb[0].mxu0
        %v1069 = vpop.f32.mrb[0].mxu0
        %v1070 = vadd.f32 0.0, %v1069
        %v1071 = vpop.f32.mrb[0].mxu0
        %1072 = vmatprep.mubr.bf16.mxu0 0
        %1073 = vmatmul.mubr.bf16.gmra.mrb[0].mxu0 %v309
        %v1074 = vpop.f32.mrb[0].mxu0
        %v1075 = vadd.f32 0.0, %v1074
        %v1076 = vpop.f32.mrb[0].mxu0
        %v1077 = vpop.f32.mrb[0].mxu0
        %v1078 = vadd.f32 0.0, %v1077
        %v1079 = vpop.f32.mrb[0].mxu0
        %1080 = vmatprep.mubr.bf16.mxu0 0
        %1081 = vmatmul.mubr.bf16.gmra.mrb[0].mxu0 %v310
        %v1082 = vpop.f32.mrb[0].mxu0
        %v1083 = vadd.f32 0.0, %v1082
        %v1084 = vpop.f32.mrb[0].mxu0
        %v1085 = vpop.f32.mrb[0].mxu0
        %v1086 = vadd.f32 0.0, %v1085
        %v1087 = vpop.f32.mrb[0].mxu0
        %1088 = vmatprep.mubr.bf16.mxu0 0
        %1089 = vmatmul.mubr.bf16.gmra.mrb[0].mxu0 %v311
        %v1090 = vpop.f32.mrb[0].mxu0
        %v1091 = vadd.f32 0.0, %v1090
        %v1092 = vpop.f32.mrb[0].mxu0
        %v1093 = vpop.f32.mrb[0].mxu0
        %v1094 = vadd.f32 0.0, %v1093
        %v1095 = vpop.f32.mrb[0].mxu0
        %1096 = vdwg.mxu0
        %v1113 = vunpack.c.l.b16 %v919
        %v1114 = vunpack.c.l.b16 %v920
        %v1115 = vunpack.c.l.b16 %v921
        %v1116 = vunpack.c.l.b16 %v922
        %v1117 = vunpack.c.l.b16 %v923
        %v1118 = vunpack.c.l.b16 %v924
        %v1119 = vunpack.c.l.b16 %v925
        %v1120 = vunpack.c.l.b16 %v926
        %v1121 = vunpack.c.l.b16 %v927
        %v1122 = vunpack.c.l.b16 %v928
        %v1123 = vunpack.c.l.b16 %v929
        %v1124 = vunpack.c.l.b16 %v930
        %v1125 = vunpack.c.l.b16 %v931
        %v1126 = vunpack.c.l.b16 %v932
        %v1127 = vunpack.c.l.b16 %v933
        %v1128 = vunpack.c.l.b16 %v934
        %v1129 = vpack.c.b16 %v1114, %v1113
        %v1130 = vpack.c.b16 %v1116, %v1115
        %v1131 = vpack.c.b16 %v1118, %v1117
        %v1132 = vpack.c.b16 %v1120, %v1119
        %v1133 = vpack.c.b16 %v1122, %v1121
        %v1134 = vpack.c.b16 %v1124, %v1123
        %v1135 = vpack.c.b16 %v1126, %v1125
        %v1136 = vpack.c.b16 %v1128, %v1127
        %1145 = vmatprep.subr.bf16.mxu0 0
        %1146 = vmatpush1.bf16.msra.mxu0 %v1129
        %1147 = vmatprep.subr.bf16.mxu0 0
        %1148 = vmatpush1.bf16.msra.mxu0 %v1130
        %1149 = vmatprep.subr.bf16.mxu0 0
        %1150 = vmatpush1.bf16.msra.mxu0 %v1131
        %1151 = vmatprep.subr.bf16.mxu0 0
        %1152 = vmatpush1.bf16.msra.mxu0 %v1132
        %1153 = vmatprep.subr.bf16.mxu0 0
        %1154 = vmatpush1.bf16.msra.mxu0 %v1133
        %1155 = vmatprep.subr.bf16.mxu0 0
        %1156 = vmatpush1.bf16.msra.mxu0 %v1134
        %1157 = vmatprep.subr.bf16.mxu0 0
        %1158 = vmatpush1.bf16.msra.mxu0 %v1135
        %1159 = vmatprep.subr.bf16.mxu0 0
        %1160 = vmatpush1.bf16.msra.mxu0 %v1136
        %1161 = vmatprep.subr.bf16.mxu0 0
        %1162 = vmatpush1.bf16.msra.mxu0 0
        %1163 = vmatprep.subr.bf16.mxu0 0
        %1164 = vmatpush1.bf16.msra.mxu0 0
        %1165 = vmatprep.subr.bf16.mxu0 0
        %1166 = vmatpush1.bf16.msra.mxu0 0
        %1167 = vmatprep.subr.bf16.mxu0 0
        %1168 = vmatpush1.bf16.msra.mxu0 0
        %1169 = vmatprep.subr.bf16.mxu0 0
        %1170 = vmatpush1.bf16.msra.mxu0 0
        %1171 = vmatprep.subr.bf16.mxu0 0
        %1172 = vmatpush1.bf16.msra.mxu0 0
        %1173 = vmatprep.subr.bf16.mxu0 0
        %1174 = vmatpush1.bf16.msra.mxu0 0
        %1175 = vmatprep.subr.bf16.mxu0 0
        %1176 = vmatpush1.bf16.msra.mxu0 0
        %1177 = vmatprep.mubr.bf16.mxu0 0
        %1178 = vmatmul.mubr.bf16.gmra.mrb[0].mxu0 %v757
        %v1179 = vpop.f32.mrb[0].mxu0
        %v1180 = vadd.f32 %v1035, %v1179
        %v1181 = vpop.f32.mrb[0].mxu0
        %v1182 = vpop.f32.mrb[0].mxu0
        %v1183 = vadd.f32 %v1038, %v1182
        %v1184 = vpop.f32.mrb[0].mxu0
        %1185 = vmatprep.mubr.bf16.mxu0 0
        %1186 = vmatmul.mubr.bf16.gmra.mrb[0].mxu0 %v758
        %v1187 = vpop.f32.mrb[0].mxu0
        %v1188 = vadd.f32 %v1043, %v1187
        %v1189 = vpop.f32.mrb[0].mxu0
        %v1190 = vpop.f32.mrb[0].mxu0
        %v1191 = vadd.f32 %v1046, %v1190
        %v1192 = vpop.f32.mrb[0].mxu0
        %1193 = vmatprep.mubr.bf16.mxu0 0
        %1194 = vmatmul.mubr.bf16.gmra.mrb[0].mxu0 %v759
        %v1195 = vpop.f32.mrb[0].mxu0
        %v1196 = vadd.f32 %v1051, %v1195
        %v1197 = vpop.f32.mrb[0].mxu0
        %v1198 = vpop.f32.mrb[0].mxu0
        %v1199 = vadd.f32 %v1054, %v1198
        %v1200 = vpop.f32.mrb[0].mxu0
        %1201 = vmatprep.mubr.bf16.mxu0 0
        %1202 = vmatmul.mubr.bf16.gmra.mrb[0].mxu0 %v760
        %v1203 = vpop.f32.mrb[0].mxu0
        %v1204 = vadd.f32 %v1059, %v1203
        %v1205 = vpop.f32.mrb[0].mxu0
        %v1206 = vpop.f32.mrb[0].mxu0
        %v1207 = vadd.f32 %v1062, %v1206
        %v1208 = vpop.f32.mrb[0].mxu0
        %1209 = vmatprep.mubr.bf16.mxu0 0
        %1210 = vmatmul.mubr.bf16.gmra.mrb[0].mxu0 %v761
        %v1211 = vpop.f32.mrb[0].mxu0
        %v1212 = vadd.f32 %v1067, %v1211
        %v1213 = vpop.f32.mrb[0].mxu0
        %v1214 = vpop.f32.mrb[0].mxu0
        %v1215 = vadd.f32 %v1070, %v1214
        %v1216 = vpop.f32.mrb[0].mxu0
        %1217 = vmatprep.mubr.bf16.mxu0 0
        %1218 = vmatmul.mubr.bf16.gmra.mrb[0].mxu0 %v762
        %v1219 = vpop.f32.mrb[0].mxu0
        %v1220 = vadd.f32 %v1075, %v1219
        %v1221 = vpop.f32.mrb[0].mxu0
        %v1222 = vpop.f32.mrb[0].mxu0
        %v1223 = vadd.f32 %v1078, %v1222
        %v1224 = vpop.f32.mrb[0].mxu0
        %1225 = vmatprep.mubr.bf16.mxu0 0
        %1226 = vmatmul.mubr.bf16.gmra.mrb[0].mxu0 %v763
        %v1227 = vpop.f32.mrb[0].mxu0
        %v1228 = vadd.f32 %v1083, %v1227
        %v1229 = vpop.f32.mrb[0].mxu0
        %v1230 = vpop.f32.mrb[0].mxu0
        %v1231 = vadd.f32 %v1086, %v1230
        %v1232 = vpop.f32.mrb[0].mxu0
        %1233 = vmatprep.mubr.bf16.mxu0 0
        %1234 = vmatmul.mubr.bf16.gmra.mrb[0].mxu0 %v764
        %v1235 = vpop.f32.mrb[0].mxu0
        %v1236 = vadd.f32 %v1091, %v1235
        %v1237 = vpop.f32.mrb[0].mxu0
        %v1238 = vpop.f32.mrb[0].mxu0
        %v1239 = vadd.f32 %v1094, %v1238
        %v1240 = vpop.f32.mrb[0].mxu0
        %1241 = vdwg.mxu0
        %s1242 = scalar_lea.vmem [#allocation4], 128
        %v1243 = vld [vmem:[%s1242] sm:$0xf]
        %v1244 = vld [vmem:[%s1242 + $0x4] sm:$0xf]
        %v1245 = vld [vmem:[%s1242 + $0x8] sm:$0xf]
        %v1246 = vld [vmem:[%s1242 + $0xc] sm:$0xf]
        %v1247 = vld [vmem:[%s1242 + $0x10] sm:$0xf]
        %v1248 = vld [vmem:[%s1242 + $0x14] sm:$0xf]
        %v1249 = vld [vmem:[%s1242 + $0x18] sm:$0xf]
        %v1250 = vld [vmem:[%s1242 + $0x1c] sm:$0xf]
        %v1251 = vld [vmem:[%s1242 + $0x20] sm:$0xf]
        %v1252 = vld [vmem:[%s1242 + $0x24] sm:$0xf]
        %v1253 = vld [vmem:[%s1242 + $0x28] sm:$0xf]
        %v1254 = vld [vmem:[%s1242 + $0x2c] sm:$0xf]
        %v1255 = vld [vmem:[%s1242 + $0x30] sm:$0xf]
        %v1256 = vld [vmem:[%s1242 + $0x34] sm:$0xf]
        %v1257 = vld [vmem:[%s1242 + $0x38] sm:$0xf]
        %v1258 = vld [vmem:[%s1242 + $0x3c] sm:$0xf]
        %v1275 = vunpack.c.l.b16 %v1243
        %v1276 = vunpack.c.l.b16 %v1244
        %v1277 = vunpack.c.l.b16 %v1245
        %v1278 = vunpack.c.l.b16 %v1246
        %v1279 = vunpack.c.l.b16 %v1247
        %v1280 = vunpack.c.l.b16 %v1248
        %v1281 = vunpack.c.l.b16 %v1249
        %v1282 = vunpack.c.l.b16 %v1250
        %v1283 = vunpack.c.l.b16 %v1251
        %v1284 = vunpack.c.l.b16 %v1252
        %v1285 = vunpack.c.l.b16 %v1253
        %v1286 = vunpack.c.l.b16 %v1254
        %v1287 = vunpack.c.l.b16 %v1255
        %v1288 = vunpack.c.l.b16 %v1256
        %v1289 = vunpack.c.l.b16 %v1257
        %v1290 = vunpack.c.l.b16 %v1258
        %v1291 = vpack.c.b16 %v1276, %v1275
        %v1292 = vpack.c.b16 %v1278, %v1277
        %v1293 = vpack.c.b16 %v1280, %v1279
        %v1294 = vpack.c.b16 %v1282, %v1281
        %v1295 = vpack.c.b16 %v1284, %v1283
        %v1296 = vpack.c.b16 %v1286, %v1285
        %v1297 = vpack.c.b16 %v1288, %v1287
        %v1298 = vpack.c.b16 %v1290, %v1289
        %1307 = vmatprep.subr.bf16.mxu0 0
        %1308 = vmatpush1.bf16.msra.mxu0 %v1291
        %1309 = vmatprep.subr.bf16.mxu0 0
        %1310 = vmatpush1.bf16.msra.mxu0 %v1292
        %1311 = vmatprep.subr.bf16.mxu0 0
        %1312 = vmatpush1.bf16.msra.mxu0 %v1293
        %1313 = vmatprep.subr.bf16.mxu0 0
        %1314 = vmatpush1.bf16.msra.mxu0 %v1294
        %1315 = vmatprep.subr.bf16.mxu0 0
        %1316 = vmatpush1.bf16.msra.mxu0 %v1295
        %1317 = vmatprep.subr.bf16.mxu0 0
        %1318 = vmatpush1.bf16.msra.mxu0 %v1296
        %1319 = vmatprep.subr.bf16.mxu0 0
        %1320 = vmatpush1.bf16.msra.mxu0 %v1297
        %1321 = vmatprep.subr.bf16.mxu0 0
        %1322 = vmatpush1.bf16.msra.mxu0 %v1298
        %1323 = vmatprep.subr.bf16.mxu0 0
        %1324 = vmatpush1.bf16.msra.mxu0 0
        %1325 = vmatprep.subr.bf16.mxu0 0
        %1326 = vmatpush1.bf16.msra.mxu0 0
        %1327 = vmatprep.subr.bf16.mxu0 0
        %1328 = vmatpush1.bf16.msra.mxu0 0
        %1329 = vmatprep.subr.bf16.mxu0 0
        %1330 = vmatpush1.bf16.msra.mxu0 0
        %1331 = vmatprep.subr.bf16.mxu0 0
        %1332 = vmatpush1.bf16.msra.mxu0 0
        %1333 = vmatprep.subr.bf16.mxu0 0
        %1334 = vmatpush1.bf16.msra.mxu0 0
        %1335 = vmatprep.subr.bf16.mxu0 0
        %1336 = vmatpush1.bf16.msra.mxu0 0
        %1337 = vmatprep.subr.bf16.mxu0 0
        %1338 = vmatpush1.bf16.msra.mxu0 0
        %1339 = vmatprep.mubr.bf16.mxu0 0
        %1340 = vmatmul.mubr.bf16.gmra.mrb[0].mxu0 %v909
        %v1341 = vpop.f32.mrb[0].mxu0
        %v1342 = vadd.f32 0.0, %v1341
        %v1343 = vpop.f32.mrb[0].mxu0
        %v1344 = vpop.f32.mrb[0].mxu0
        %v1345 = vadd.f32 0.0, %v1344
        %v1346 = vpop.f32.mrb[0].mxu0
        %1347 = vmatprep.mubr.bf16.mxu0 0
        %1348 = vmatmul.mubr.bf16.gmra.mrb[0].mxu0 %v910
        %v1349 = vpop.f32.mrb[0].mxu0
        %v1350 = vadd.f32 0.0, %v1349
        %v1351 = vpop.f32.mrb[0].mxu0
        %v1352 = vpop.f32.mrb[0].mxu0
        %v1353 = vadd.f32 0.0, %v1352
        %v1354 = vpop.f32.mrb[0].mxu0
        %1355 = vmatprep.mubr.bf16.mxu0 0
        %1356 = vmatmul.mubr.bf16.gmra.mrb[0].mxu0 %v911
        %v1357 = vpop.f32.mrb[0].mxu0
        %v1358 = vadd.f32 0.0, %v1357
        %v1359 = vpop.f32.mrb[0].mxu0
        %v1360 = vpop.f32.mrb[0].mxu0
        %v1361 = vadd.f32 0.0, %v1360
        %v1362 = vpop.f32.mrb[0].mxu0
        %1363 = vmatprep.mubr.bf16.mxu0 0
        %1364 = vmatmul.mubr.bf16.gmra.mrb[0].mxu0 %v912
        %v1365 = vpop.f32.mrb[0].mxu0
        %v1366 = vadd.f32 0.0, %v1365
        %v1367 = vpop.f32.mrb[0].mxu0
        %v1368 = vpop.f32.mrb[0].mxu0
        %v1369 = vadd.f32 0.0, %v1368
        %v1370 = vpop.f32.mrb[0].mxu0
        %1371 = vmatprep.mubr.bf16.mxu0 0
        %1372 = vmatmul.mubr.bf16.gmra.mrb[0].mxu0 %v913
        %v1373 = vpop.f32.mrb[0].mxu0
        %v1374 = vadd.f32 0.0, %v1373
        %v1375 = vpop.f32.mrb[0].mxu0
        %v1376 = vpop.f32.mrb[0].mxu0
        %v1377 = vadd.f32 0.0, %v1376
        %v1378 = vpop.f32.mrb[0].mxu0
        %1379 = vmatprep.mubr.bf16.mxu0 0
        %1380 = vmatmul.mubr.bf16.gmra.mrb[0].mxu0 %v914
        %v1381 = vpop.f32.mrb[0].mxu0
        %v1382 = vadd.f32 0.0, %v1381
        %v1383 = vpop.f32.mrb[0].mxu0
        %v1384 = vpop.f32.mrb[0].mxu0
        %v1385 = vadd.f32 0.0, %v1384
        %v1386 = vpop.f32.mrb[0].mxu0
        %1387 = vmatprep.mubr.bf16.mxu0 0
        %1388 = vmatmul.mubr.bf16.gmra.mrb[0].mxu0 %v915
        %v1389 = vpop.f32.mrb[0].mxu0
        %v1390 = vadd.f32 0.0, %v1389
        %v1391 = vpop.f32.mrb[0].mxu0
        %v1392 = vpop.f32.mrb[0].mxu0
        %v1393 = vadd.f32 0.0, %v1392
        %v1394 = vpop.f32.mrb[0].mxu0
        %1395 = vmatprep.mubr.bf16.mxu0 0
        %1396 = vmatmul.mubr.bf16.gmra.mrb[0].mxu0 %v916
        %v1397 = vpop.f32.mrb[0].mxu0
        %v1398 = vadd.f32 0.0, %v1397
        %v1399 = vpop.f32.mrb[0].mxu0
        %v1400 = vpop.f32.mrb[0].mxu0
        %v1401 = vadd.f32 0.0, %v1400
        %v1402 = vpop.f32.mrb[0].mxu0
        %1403 = vdwg.mxu0
        %v1404 = vadd.f32 %v1180, %v1342
        %v1405 = vadd.f32 %v1183, %v1345
        %v1406 = vadd.f32 %v1188, %v1350
        %v1407 = vadd.f32 %v1191, %v1353
        %v1408 = vadd.f32 %v1196, %v1358
        %v1409 = vadd.f32 %v1199, %v1361
        %v1410 = vadd.f32 %v1204, %v1366
        %v1411 = vadd.f32 %v1207, %v1369
        %v1412 = vadd.f32 %v1212, %v1374
        %v1413 = vadd.f32 %v1215, %v1377
        %v1414 = vadd.f32 %v1220, %v1382
        %v1415 = vadd.f32 %v1223, %v1385
        %v1416 = vadd.f32 %v1228, %v1390
        %v1417 = vadd.f32 %v1231, %v1393
        %v1418 = vadd.f32 %v1236, %v1398
        %v1419 = vadd.f32 %v1239, %v1401
        %s1420 = scalar_lea.vmem [#allocation4], 192
        %v1421 = vld [vmem:[%s1420] sm:$0xf]
        %v1422 = vld [vmem:[%s1420 + $0x4] sm:$0xf]
        %v1423 = vld [vmem:[%s1420 + $0x8] sm:$0xf]
        %v1424 = vld [vmem:[%s1420 + $0xc] sm:$0xf]
        %v1425 = vld [vmem:[%s1420 + $0x10] sm:$0xf]
        %v1426 = vld [vmem:[%s1420 + $0x14] sm:$0xf]
        %v1427 = vld [vmem:[%s1420 + $0x18] sm:$0xf]
        %v1428 = vld [vmem:[%s1420 + $0x1c] sm:$0xf]
        %v1429 = vld [vmem:[%s1420 + $0x20] sm:$0xf]
        %v1430 = vld [vmem:[%s1420 + $0x24] sm:$0xf]
        %v1431 = vld [vmem:[%s1420 + $0x28] sm:$0xf]
        %v1432 = vld [vmem:[%s1420 + $0x2c] sm:$0xf]
        %v1433 = vld [vmem:[%s1420 + $0x30] sm:$0xf]
        %v1434 = vld [vmem:[%s1420 + $0x34] sm:$0xf]
        %v1435 = vld [vmem:[%s1420 + $0x38] sm:$0xf]
        %v1436 = vld [vmem:[%s1420 + $0x3c] sm:$0xf]
        %v1453 = vunpack.c.l.b16 %v1421
        %v1454 = vunpack.c.l.b16 %v1422
        %v1455 = vunpack.c.l.b16 %v1423
        %v1456 = vunpack.c.l.b16 %v1424
        %v1457 = vunpack.c.l.b16 %v1425
        %v1458 = vunpack.c.l.b16 %v1426
        %v1459 = vunpack.c.l.b16 %v1427
        %v1460 = vunpack.c.l.b16 %v1428
        %v1461 = vunpack.c.l.b16 %v1429
        %v1462 = vunpack.c.l.b16 %v1430
        %v1463 = vunpack.c.l.b16 %v1431
        %v1464 = vunpack.c.l.b16 %v1432
        %v1465 = vunpack.c.l.b16 %v1433
        %v1466 = vunpack.c.l.b16 %v1434
        %v1467 = vunpack.c.l.b16 %v1435
        %v1468 = vunpack.c.l.b16 %v1436
        %v1469 = vpack.c.b16 %v1454, %v1453
        %v1470 = vpack.c.b16 %v1456, %v1455
        %v1471 = vpack.c.b16 %v1458, %v1457
        %v1472 = vpack.c.b16 %v1460, %v1459
        %v1473 = vpack.c.b16 %v1462, %v1461
        %v1474 = vpack.c.b16 %v1464, %v1463
        %v1475 = vpack.c.b16 %v1466, %v1465
        %v1476 = vpack.c.b16 %v1468, %v1467
        %1485 = vmatprep.subr.bf16.mxu0 0
        %1486 = vmatpush1.bf16.msra.mxu0 %v1469
        %1487 = vmatprep.subr.bf16.mxu0 0
        %1488 = vmatpush1.bf16.msra.mxu0 %v1470
        %1489 = vmatprep.subr.bf16.mxu0 0
        %1490 = vmatpush1.bf16.msra.mxu0 %v1471
        %1491 = vmatprep.subr.bf16.mxu0 0
        %1492 = vmatpush1.bf16.msra.mxu0 %v1472
        %1493 = vmatprep.subr.bf16.mxu0 0
        %1494 = vmatpush1.bf16.msra.mxu0 %v1473
        %1495 = vmatprep.subr.bf16.mxu0 0
        %1496 = vmatpush1.bf16.msra.mxu0 %v1474
        %1497 = vmatprep.subr.bf16.mxu0 0
        %1498 = vmatpush1.bf16.msra.mxu0 %v1475
        %1499 = vmatprep.subr.bf16.mxu0 0
        %1500 = vmatpush1.bf16.msra.mxu0 %v1476
        %1501 = vmatprep.subr.bf16.mxu0 0
        %1502 = vmatpush1.bf16.msra.mxu0 0
        %1503 = vmatprep.subr.bf16.mxu0 0
        %1504 = vmatpush1.bf16.msra.mxu0 0
        %1505 = vmatprep.subr.bf16.mxu0 0
        %1506 = vmatpush1.bf16.msra.mxu0 0
        %1507 = vmatprep.subr.bf16.mxu0 0
        %1508 = vmatpush1.bf16.msra.mxu0 0
        %1509 = vmatprep.subr.bf16.mxu0 0
        %1510 = vmatpush1.bf16.msra.mxu0 0
        %1511 = vmatprep.subr.bf16.mxu0 0
        %1512 = vmatpush1.bf16.msra.mxu0 0
        %1513 = vmatprep.subr.bf16.mxu0 0
        %1514 = vmatpush1.bf16.msra.mxu0 0
        %1515 = vmatprep.subr.bf16.mxu0 0
        %1516 = vmatpush1.bf16.msra.mxu0 0
        %1517 = vmatprep.mubr.bf16.mxu0 0
        %1518 = vmatmul.mubr.bf16.gmra.mrb[0].mxu0 %v758
        %v1519 = vpop.f32.mrb[0].mxu0
        %v1520 = vadd.f32 0.0, %v1519
        %v1521 = vpop.f32.mrb[0].mxu0
        %v1522 = vpop.f32.mrb[0].mxu0
        %v1523 = vadd.f32 0.0, %v1522
        %v1524 = vpop.f32.mrb[0].mxu0
        %1525 = vmatprep.mubr.bf16.mxu0 0
        %1526 = vmatmul.mubr.bf16.gmra.mrb[0].mxu0 %v759
        %v1527 = vpop.f32.mrb[0].mxu0
        %v1528 = vadd.f32 0.0, %v1527
        %v1529 = vpop.f32.mrb[0].mxu0
        %v1530 = vpop.f32.mrb[0].mxu0
        %v1531 = vadd.f32 0.0, %v1530
        %v1532 = vpop.f32.mrb[0].mxu0
        %1533 = vmatprep.mubr.bf16.mxu0 0
        %1534 = vmatmul.mubr.bf16.gmra.mrb[0].mxu0 %v760
        %v1535 = vpop.f32.mrb[0].mxu0
        %v1536 = vadd.f32 0.0, %v1535
        %v1537 = vpop.f32.mrb[0].mxu0
        %v1538 = vpop.f32.mrb[0].mxu0
        %v1539 = vadd.f32 0.0, %v1538
        %v1540 = vpop.f32.mrb[0].mxu0
        %1541 = vmatprep.mubr.bf16.mxu0 0
        %1542 = vmatmul.mubr.bf16.gmra.mrb[0].mxu0 %v761
        %v1543 = vpop.f32.mrb[0].mxu0
        %v1544 = vadd.f32 0.0, %v1543
        %v1545 = vpop.f32.mrb[0].mxu0
        %v1546 = vpop.f32.mrb[0].mxu0
        %v1547 = vadd.f32 0.0, %v1546
        %v1548 = vpop.f32.mrb[0].mxu0
        %1549 = vmatprep.mubr.bf16.mxu0 0
        %1550 = vmatmul.mubr.bf16.gmra.mrb[0].mxu0 %v762
        %v1551 = vpop.f32.mrb[0].mxu0
        %v1552 = vadd.f32 0.0, %v1551
        %v1553 = vpop.f32.mrb[0].mxu0
        %v1554 = vpop.f32.mrb[0].mxu0
        %v1555 = vadd.f32 0.0, %v1554
        %v1556 = vpop.f32.mrb[0].mxu0
        %1557 = vmatprep.mubr.bf16.mxu0 0
        %1558 = vmatmul.mubr.bf16.gmra.mrb[0].mxu0 %v763
        %v1559 = vpop.f32.mrb[0].mxu0
        %v1560 = vadd.f32 0.0, %v1559
        %v1561 = vpop.f32.mrb[0].mxu0
        %v1562 = vpop.f32.mrb[0].mxu0
        %v1563 = vadd.f32 0.0, %v1562
        %v1564 = vpop.f32.mrb[0].mxu0
        %1565 = vmatprep.mubr.bf16.mxu0 0
        %1566 = vmatmul.mubr.bf16.gmra.mrb[0].mxu0 %v764
        %v1567 = vpop.f32.mrb[0].mxu0
        %v1568 = vadd.f32 0.0, %v1567
        %v1569 = vpop.f32.mrb[0].mxu0
        %v1570 = vpop.f32.mrb[0].mxu0
        %v1571 = vadd.f32 0.0, %v1570
        %v1572 = vpop.f32.mrb[0].mxu0
        %1573 = vmatprep.mubr.bf16.mxu0 0
        %1574 = vmatmul.mubr.bf16.gmra.mrb[0].mxu0 %v765
        %v1575 = vpop.f32.mrb[0].mxu0
        %v1576 = vadd.f32 0.0, %v1575
        %v1577 = vpop.f32.mrb[0].mxu0
        %v1578 = vpop.f32.mrb[0].mxu0
        %v1579 = vadd.f32 0.0, %v1578
        %v1580 = vpop.f32.mrb[0].mxu0
        %1581 = vdwg.mxu0
        %v1582 = vadd.f32 %v1404, %v1520
        %v1583 = vadd.f32 %v1405, %v1523
        %v1584 = vadd.f32 %v1406, %v1528
        %v1585 = vadd.f32 %v1407, %v1531
        %v1586 = vadd.f32 %v1408, %v1536
        %v1587 = vadd.f32 %v1409, %v1539
        %v1588 = vadd.f32 %v1410, %v1544
        %v1589 = vadd.f32 %v1411, %v1547
        %v1590 = vadd.f32 %v1412, %v1552
        %v1591 = vadd.f32 %v1413, %v1555
        %v1592 = vadd.f32 %v1414, %v1560
        %v1593 = vadd.f32 %v1415, %v1563
        %v1594 = vadd.f32 %v1416, %v1568
        %v1595 = vadd.f32 %v1417, %v1571
        %v1596 = vadd.f32 %v1418, %v1576
        %v1597 = vadd.f32 %v1419, %v1579
        %s1598 = scalar_lea.vmem [#allocation4], 256
        %v1599 = vld [vmem:[%s1598] sm:$0xf]
        %v1600 = vld [vmem:[%s1598 + $0x4] sm:$0xf]
        %v1601 = vld [vmem:[%s1598 + $0x8] sm:$0xf]
        %v1602 = vld [vmem:[%s1598 + $0xc] sm:$0xf]
        %v1603 = vld [vmem:[%s1598 + $0x10] sm:$0xf]
        %v1604 = vld [vmem:[%s1598 + $0x14] sm:$0xf]
        %v1605 = vld [vmem:[%s1598 + $0x18] sm:$0xf]
        %v1606 = vld [vmem:[%s1598 + $0x1c] sm:$0xf]
        %v1607 = vld [vmem:[%s1598 + $0x20] sm:$0xf]
        %v1608 = vld [vmem:[%s1598 + $0x24] sm:$0xf]
        %v1609 = vld [vmem:[%s1598 + $0x28] sm:$0xf]
        %v1610 = vld [vmem:[%s1598 + $0x2c] sm:$0xf]
        %v1611 = vld [vmem:[%s1598 + $0x30] sm:$0xf]
        %v1612 = vld [vmem:[%s1598 + $0x34] sm:$0xf]
        %v1613 = vld [vmem:[%s1598 + $0x38] sm:$0xf]
        %v1614 = vld [vmem:[%s1598 + $0x3c] sm:$0xf]
        %v1631 = vunpack.c.l.b16 %v1599
        %v1632 = vunpack.c.l.b16 %v1600
        %v1633 = vunpack.c.l.b16 %v1601
        %v1634 = vunpack.c.l.b16 %v1602
        %v1635 = vunpack.c.l.b16 %v1603
        %v1636 = vunpack.c.l.b16 %v1604
        %v1637 = vunpack.c.l.b16 %v1605
        %v1638 = vunpack.c.l.b16 %v1606
        %v1639 = vunpack.c.l.b16 %v1607
        %v1640 = vunpack.c.l.b16 %v1608
        %v1641 = vunpack.c.l.b16 %v1609
        %v1642 = vunpack.c.l.b16 %v1610
        %v1643 = vunpack.c.l.b16 %v1611
        %v1644 = vunpack.c.l.b16 %v1612
        %v1645 = vunpack.c.l.b16 %v1613
        %v1646 = vunpack.c.l.b16 %v1614
        %v1647 = vpack.c.b16 %v1632, %v1631
        %v1648 = vpack.c.b16 %v1634, %v1633
        %v1649 = vpack.c.b16 %v1636, %v1635
        %v1650 = vpack.c.b16 %v1638, %v1637
        %v1651 = vpack.c.b16 %v1640, %v1639
        %v1652 = vpack.c.b16 %v1642, %v1641
        %v1653 = vpack.c.b16 %v1644, %v1643
        %v1654 = vpack.c.b16 %v1646, %v1645
        %1663 = vmatprep.subr.bf16.mxu0 0
        %1664 = vmatpush1.bf16.msra.mxu0 %v1647
        %1665 = vmatprep.subr.bf16.mxu0 0
        %1666 = vmatpush1.bf16.msra.mxu0 %v1648
        %1667 = vmatprep.subr.bf16.mxu0 0
        %1668 = vmatpush1.bf16.msra.mxu0 %v1649
        %1669 = vmatprep.subr.bf16.mxu0 0
        %1670 = vmatpush1.bf16.msra.mxu0 %v1650
        %1671 = vmatprep.subr.bf16.mxu0 0
        %1672 = vmatpush1.bf16.msra.mxu0 %v1651
        %1673 = vmatprep.subr.bf16.mxu0 0
        %1674 = vmatpush1.bf16.msra.mxu0 %v1652
        %1675 = vmatprep.subr.bf16.mxu0 0
        %1676 = vmatpush1.bf16.msra.mxu0 %v1653
        %1677 = vmatprep.subr.bf16.mxu0 0
        %1678 = vmatpush1.bf16.msra.mxu0 %v1654
        %1679 = vmatprep.subr.bf16.mxu0 0
        %1680 = vmatpush1.bf16.msra.mxu0 0
        %1681 = vmatprep.subr.bf16.mxu0 0
        %1682 = vmatpush1.bf16.msra.mxu0 0
        %1683 = vmatprep.subr.bf16.mxu0 0
        %1684 = vmatpush1.bf16.msra.mxu0 0
        %1685 = vmatprep.subr.bf16.mxu0 0
        %1686 = vmatpush1.bf16.msra.mxu0 0
        %1687 = vmatprep.subr.bf16.mxu0 0
        %1688 = vmatpush1.bf16.msra.mxu0 0
        %1689 = vmatprep.subr.bf16.mxu0 0
        %1690 = vmatpush1.bf16.msra.mxu0 0
        %1691 = vmatprep.subr.bf16.mxu0 0
        %1692 = vmatpush1.bf16.msra.mxu0 0
        %1693 = vmatprep.subr.bf16.mxu0 0
        %1694 = vmatpush1.bf16.msra.mxu0 0
        %1695 = vmatprep.mubr.bf16.mxu0 0
        %1696 = vmatmul.mubr.bf16.gmra.mrb[0].mxu0 %v305
        %v1697 = vpop.f32.mrb[0].mxu0
        %v1698 = vadd.f32 0.0, %v1697
        %v1699 = vpop.f32.mrb[0].mxu0
        %v1700 = vpop.f32.mrb[0].mxu0
        %v1701 = vadd.f32 0.0, %v1700
        %v1702 = vpop.f32.mrb[0].mxu0
        %1703 = vmatprep.mubr.bf16.mxu0 0
        %1704 = vmatmul.mubr.bf16.gmra.mrb[0].mxu0 %v306
        %v1705 = vpop.f32.mrb[0].mxu0
        %v1706 = vadd.f32 0.0, %v1705
        %v1707 = vpop.f32.mrb[0].mxu0
        %v1708 = vpop.f32.mrb[0].mxu0
        %v1709 = vadd.f32 0.0, %v1708
        %v1710 = vpop.f32.mrb[0].mxu0
        %1711 = vmatprep.mubr.bf16.mxu0 0
        %1712 = vmatmul.mubr.bf16.gmra.mrb[0].mxu0 %v307
        %v1713 = vpop.f32.mrb[0].mxu0
        %v1714 = vadd.f32 0.0, %v1713
        %v1715 = vpop.f32.mrb[0].mxu0
        %v1716 = vpop.f32.mrb[0].mxu0
        %v1717 = vadd.f32 0.0, %v1716
        %v1718 = vpop.f32.mrb[0].mxu0
        %1719 = vmatprep.mubr.bf16.mxu0 0
        %1720 = vmatmul.mubr.bf16.gmra.mrb[0].mxu0 %v308
        %v1721 = vpop.f32.mrb[0].mxu0
        %v1722 = vadd.f32 0.0, %v1721
        %v1723 = vpop.f32.mrb[0].mxu0
        %v1724 = vpop.f32.mrb[0].mxu0
        %v1725 = vadd.f32 0.0, %v1724
        %v1726 = vpop.f32.mrb[0].mxu0
        %1727 = vmatprep.mubr.bf16.mxu0 0
        %1728 = vmatmul.mubr.bf16.gmra.mrb[0].mxu0 %v309
        %v1729 = vpop.f32.mrb[0].mxu0
        %v1730 = vadd.f32 0.0, %v1729
        %v1731 = vpop.f32.mrb[0].mxu0
        %v1732 = vpop.f32.mrb[0].mxu0
        %v1733 = vadd.f32 0.0, %v1732
        %v1734 = vpop.f32.mrb[0].mxu0
        %1735 = vmatprep.mubr.bf16.mxu0 0
        %1736 = vmatmul.mubr.bf16.gmra.mrb[0].mxu0 %v310
        %v1737 = vpop.f32.mrb[0].mxu0
        %v1738 = vadd.f32 0.0, %v1737
        %v1739 = vpop.f32.mrb[0].mxu0
        %v1740 = vpop.f32.mrb[0].mxu0
        %v1741 = vadd.f32 0.0, %v1740
        %v1742 = vpop.f32.mrb[0].mxu0
        %1743 = vmatprep.mubr.bf16.mxu0 0
        %1744 = vmatmul.mubr.bf16.gmra.mrb[0].mxu0 %v311
        %v1745 = vpop.f32.mrb[0].mxu0
        %v1746 = vadd.f32 0.0, %v1745
        %v1747 = vpop.f32.mrb[0].mxu0
        %v1748 = vpop.f32.mrb[0].mxu0
        %v1749 = vadd.f32 0.0, %v1748
        %v1750 = vpop.f32.mrb[0].mxu0
        %1751 = vmatprep.mubr.bf16.mxu0 0
        %1752 = vmatmul.mubr.bf16.gmra.mrb[0].mxu0 %v312
        %v1753 = vpop.f32.mrb[0].mxu0
        %v1754 = vadd.f32 0.0, %v1753
        %v1755 = vpop.f32.mrb[0].mxu0
        %v1756 = vpop.f32.mrb[0].mxu0
        %v1757 = vadd.f32 0.0, %v1756
        %v1758 = vpop.f32.mrb[0].mxu0
        %1759 = vdwg.mxu0
        %v1760 = vadd.f32 %v1582, %v1698
        %v1761 = vadd.f32 %v1583, %v1701
        %v1762 = vadd.f32 %v1584, %v1706
        %v1763 = vadd.f32 %v1585, %v1709
        %v1764 = vadd.f32 %v1586, %v1714
        %v1765 = vadd.f32 %v1587, %v1717
        %v1766 = vadd.f32 %v1588, %v1722
        %v1767 = vadd.f32 %v1589, %v1725
        %v1768 = vadd.f32 %v1590, %v1730
        %v1769 = vadd.f32 %v1591, %v1733
        %v1770 = vadd.f32 %v1592, %v1738
        %v1771 = vadd.f32 %v1593, %v1741
        %v1772 = vadd.f32 %v1594, %v1746
        %v1773 = vadd.f32 %v1595, %v1749
        %v1774 = vadd.f32 %v1596, %v1754
        %v1775 = vadd.f32 %v1597, %v1757
        %s1776 = scalar_lea.vmem [#allocation4], 320
        %v1777 = vld [vmem:[%s1776] sm:$0xf]
        %v1778 = vld [vmem:[%s1776 + $0x4] sm:$0xf]
        %v1779 = vld [vmem:[%s1776 + $0x8] sm:$0xf]
        %v1780 = vld [vmem:[%s1776 + $0xc] sm:$0xf]
        %v1781 = vld [vmem:[%s1776 + $0x10] sm:$0xf]
        %v1782 = vld [vmem:[%s1776 + $0x14] sm:$0xf]
        %v1783 = vld [vmem:[%s1776 + $0x18] sm:$0xf]
        %v1784 = vld [vmem:[%s1776 + $0x1c] sm:$0xf]
        %v1785 = vld [vmem:[%s1776 + $0x20] sm:$0xf]
        %v1786 = vld [vmem:[%s1776 + $0x24] sm:$0xf]
        %v1787 = vld [vmem:[%s1776 + $0x28] sm:$0xf]
        %v1788 = vld [vmem:[%s1776 + $0x2c] sm:$0xf]
        %v1789 = vld [vmem:[%s1776 + $0x30] sm:$0xf]
        %v1790 = vld [vmem:[%s1776 + $0x34] sm:$0xf]
        %v1791 = vld [vmem:[%s1776 + $0x38] sm:$0xf]
        %v1792 = vld [vmem:[%s1776 + $0x3c] sm:$0xf]
        %v1809 = vunpack.c.l.b16 %v1777
        %v1810 = vunpack.c.l.b16 %v1778
        %v1811 = vunpack.c.l.b16 %v1779
        %v1812 = vunpack.c.l.b16 %v1780
        %v1813 = vunpack.c.l.b16 %v1781
        %v1814 = vunpack.c.l.b16 %v1782
        %v1815 = vunpack.c.l.b16 %v1783
        %v1816 = vunpack.c.l.b16 %v1784
        %v1817 = vunpack.c.l.b16 %v1785
        %v1818 = vunpack.c.l.b16 %v1786
        %v1819 = vunpack.c.l.b16 %v1787
        %v1820 = vunpack.c.l.b16 %v1788
        %v1821 = vunpack.c.l.b16 %v1789
        %v1822 = vunpack.c.l.b16 %v1790
        %v1823 = vunpack.c.l.b16 %v1791
        %v1824 = vunpack.c.l.b16 %v1792
        %v1825 = vpack.c.b16 %v1810, %v1809
        %v1826 = vpack.c.b16 %v1812, %v1811
        %v1827 = vpack.c.b16 %v1814, %v1813
        %v1828 = vpack.c.b16 %v1816, %v1815
        %v1829 = vpack.c.b16 %v1818, %v1817
        %v1830 = vpack.c.b16 %v1820, %v1819
        %v1831 = vpack.c.b16 %v1822, %v1821
        %v1832 = vpack.c.b16 %v1824, %v1823
        %1841 = vmatprep.subr.bf16.mxu0 0
        %1842 = vmatpush1.bf16.msra.mxu0 %v1825
        %1843 = vmatprep.subr.bf16.mxu0 0
        %1844 = vmatpush1.bf16.msra.mxu0 %v1826
        %1845 = vmatprep.subr.bf16.mxu0 0
        %1846 = vmatpush1.bf16.msra.mxu0 %v1827
        %1847 = vmatprep.subr.bf16.mxu0 0
        %1848 = vmatpush1.bf16.msra.mxu0 %v1828
        %1849 = vmatprep.subr.bf16.mxu0 0
        %1850 = vmatpush1.bf16.msra.mxu0 %v1829
        %1851 = vmatprep.subr.bf16.mxu0 0
        %1852 = vmatpush1.bf16.msra.mxu0 %v1830
        %1853 = vmatprep.subr.bf16.mxu0 0
        %1854 = vmatpush1.bf16.msra.mxu0 %v1831
        %1855 = vmatprep.subr.bf16.mxu0 0
        %1856 = vmatpush1.bf16.msra.mxu0 %v1832
        %1857 = vmatprep.subr.bf16.mxu0 0
        %1858 = vmatpush1.bf16.msra.mxu0 0
        %1859 = vmatprep.subr.bf16.mxu0 0
        %1860 = vmatpush1.bf16.msra.mxu0 0
        %1861 = vmatprep.subr.bf16.mxu0 0
        %1862 = vmatpush1.bf16.msra.mxu0 0
        %1863 = vmatprep.subr.bf16.mxu0 0
        %1864 = vmatpush1.bf16.msra.mxu0 0
        %1865 = vmatprep.subr.bf16.mxu0 0
        %1866 = vmatpush1.bf16.msra.mxu0 0
        %1867 = vmatprep.subr.bf16.mxu0 0
        %1868 = vmatpush1.bf16.msra.mxu0 0
        %1869 = vmatprep.subr.bf16.mxu0 0
        %1870 = vmatpush1.bf16.msra.mxu0 0
        %1871 = vmatprep.subr.bf16.mxu0 0
        %1872 = vmatpush1.bf16.msra.mxu0 0
        %1873 = vmatprep.mubr.bf16.mxu0 0
        %1874 = vmatmul.mubr.bf16.gmra.mrb[0].mxu0 %v910
        %v1875 = vpop.f32.mrb[0].mxu0
        %v1876 = vadd.f32 0.0, %v1875
        %v1877 = vpop.f32.mrb[0].mxu0
        %v1878 = vpop.f32.mrb[0].mxu0
        %v1879 = vadd.f32 0.0, %v1878
        %v1880 = vpop.f32.mrb[0].mxu0
        %1881 = vmatprep.mubr.bf16.mxu0 0
        %1882 = vmatmul.mubr.bf16.gmra.mrb[0].mxu0 %v911
        %v1883 = vpop.f32.mrb[0].mxu0
        %v1884 = vadd.f32 0.0, %v1883
        %v1885 = vpop.f32.mrb[0].mxu0
        %v1886 = vpop.f32.mrb[0].mxu0
        %v1887 = vadd.f32 0.0, %v1886
        %v1888 = vpop.f32.mrb[0].mxu0
        %1889 = vmatprep.mubr.bf16.mxu0 0
        %1890 = vmatmul.mubr.bf16.gmra.mrb[0].mxu0 %v912
        %v1891 = vpop.f32.mrb[0].mxu0
        %v1892 = vadd.f32 0.0, %v1891
        %v1893 = vpop.f32.mrb[0].mxu0
        %v1894 = vpop.f32.mrb[0].mxu0
        %v1895 = vadd.f32 0.0, %v1894
        %v1896 = vpop.f32.mrb[0].mxu0
        %1897 = vmatprep.mubr.bf16.mxu0 0
        %1898 = vmatmul.mubr.bf16.gmra.mrb[0].mxu0 %v913
        %v1899 = vpop.f32.mrb[0].mxu0
        %v1900 = vadd.f32 0.0, %v1899
        %v1901 = vpop.f32.mrb[0].mxu0
        %v1902 = vpop.f32.mrb[0].mxu0
        %v1903 = vadd.f32 0.0, %v1902
        %v1904 = vpop.f32.mrb[0].mxu0
        %1905 = vmatprep.mubr.bf16.mxu0 0
        %1906 = vmatmul.mubr.bf16.gmra.mrb[0].mxu0 %v914
        %v1907 = vpop.f32.mrb[0].mxu0
        %v1908 = vadd.f32 0.0, %v1907
        %v1909 = vpop.f32.mrb[0].mxu0
        %v1910 = vpop.f32.mrb[0].mxu0
        %v1911 = vadd.f32 0.0, %v1910
        %v1912 = vpop.f32.mrb[0].mxu0
        %1913 = vmatprep.mubr.bf16.mxu0 0
        %1914 = vmatmul.mubr.bf16.gmra.mrb[0].mxu0 %v915
        %v1915 = vpop.f32.mrb[0].mxu0
        %v1916 = vadd.f32 0.0, %v1915
        %v1917 = vpop.f32.mrb[0].mxu0
        %v1918 = vpop.f32.mrb[0].mxu0
        %v1919 = vadd.f32 0.0, %v1918
        %v1920 = vpop.f32.mrb[0].mxu0
        %1921 = vmatprep.mubr.bf16.mxu0 0
        %1922 = vmatmul.mubr.bf16.gmra.mrb[0].mxu0 %v916
        %v1923 = vpop.f32.mrb[0].mxu0
        %v1924 = vadd.f32 0.0, %v1923
        %v1925 = vpop.f32.mrb[0].mxu0
        %v1926 = vpop.f32.mrb[0].mxu0
        %v1927 = vadd.f32 0.0, %v1926
        %v1928 = vpop.f32.mrb[0].mxu0
        %1929 = vmatprep.mubr.bf16.mxu0 0
        %1930 = vmatmul.mubr.bf16.gmra.mrb[0].mxu0 %v917
        %v1931 = vpop.f32.mrb[0].mxu0
        %v1932 = vadd.f32 0.0, %v1931
        %v1933 = vpop.f32.mrb[0].mxu0
        %v1934 = vpop.f32.mrb[0].mxu0
        %v1935 = vadd.f32 0.0, %v1934
        %v1936 = vpop.f32.mrb[0].mxu0
        %1937 = vdwg.mxu0
        %v1938 = vadd.f32 %v1760, %v1876
        %v1939 = vadd.f32 %v1761, %v1879
        %v1940 = vadd.f32 %v1762, %v1884
        %v1941 = vadd.f32 %v1763, %v1887
        %v1942 = vadd.f32 %v1764, %v1892
        %v1943 = vadd.f32 %v1765, %v1895
        %v1944 = vadd.f32 %v1766, %v1900
        %v1945 = vadd.f32 %v1767, %v1903
        %v1946 = vadd.f32 %v1768, %v1908
        %v1947 = vadd.f32 %v1769, %v1911
        %v1948 = vadd.f32 %v1770, %v1916
        %v1949 = vadd.f32 %v1771, %v1919
        %v1950 = vadd.f32 %v1772, %v1924
        %v1951 = vadd.f32 %v1773, %v1927
        %v1952 = vadd.f32 %v1774, %v1932
        %v1953 = vadd.f32 %v1775, %v1935
        %s1954 = scalar_lea.vmem [#allocation4], 384
        %v1955 = vld [vmem:[%s1954] sm:$0xf]
        %v1956 = vld [vmem:[%s1954 + $0x4] sm:$0xf]
        %v1957 = vld [vmem:[%s1954 + $0x8] sm:$0xf]
        %v1958 = vld [vmem:[%s1954 + $0xc] sm:$0xf]
        %v1959 = vld [vmem:[%s1954 + $0x10] sm:$0xf]
        %v1960 = vld [vmem:[%s1954 + $0x14] sm:$0xf]
        %v1961 = vld [vmem:[%s1954 + $0x18] sm:$0xf]
        %v1962 = vld [vmem:[%s1954 + $0x1c] sm:$0xf]
        %v1963 = vld [vmem:[%s1954 + $0x20] sm:$0xf]
        %v1964 = vld [vmem:[%s1954 + $0x24] sm:$0xf]
        %v1965 = vld [vmem:[%s1954 + $0x28] sm:$0xf]
        %v1966 = vld [vmem:[%s1954 + $0x2c] sm:$0xf]
        %v1967 = vld [vmem:[%s1954 + $0x30] sm:$0xf]
        %v1968 = vld [vmem:[%s1954 + $0x34] sm:$0xf]
        %v1969 = vld [vmem:[%s1954 + $0x38] sm:$0xf]
        %v1970 = vld [vmem:[%s1954 + $0x3c] sm:$0xf]
        %v1987 = vunpack.c.l.b16 %v1955
        %v1988 = vunpack.c.l.b16 %v1956
        %v1989 = vunpack.c.l.b16 %v1957
        %v1990 = vunpack.c.l.b16 %v1958
        %v1991 = vunpack.c.l.b16 %v1959
        %v1992 = vunpack.c.l.b16 %v1960
        %v1993 = vunpack.c.l.b16 %v1961
        %v1994 = vunpack.c.l.b16 %v1962
        %v1995 = vunpack.c.l.b16 %v1963
        %v1996 = vunpack.c.l.b16 %v1964
        %v1997 = vunpack.c.l.b16 %v1965
        %v1998 = vunpack.c.l.b16 %v1966
        %v1999 = vunpack.c.l.b16 %v1967
        %v2000 = vunpack.c.l.b16 %v1968
        %v2001 = vunpack.c.l.b16 %v1969
        %v2002 = vunpack.c.l.b16 %v1970
        %v2003 = vpack.c.b16 %v1988, %v1987
        %v2004 = vpack.c.b16 %v1990, %v1989
        %v2005 = vpack.c.b16 %v1992, %v1991
        %v2006 = vpack.c.b16 %v1994, %v1993
        %v2007 = vpack.c.b16 %v1996, %v1995
        %v2008 = vpack.c.b16 %v1998, %v1997
        %v2009 = vpack.c.b16 %v2000, %v1999
        %v2010 = vpack.c.b16 %v2002, %v2001
        %2019 = vmatprep.subr.bf16.mxu0 0
        %2020 = vmatpush1.bf16.msra.mxu0 %v2003
        %2021 = vmatprep.subr.bf16.mxu0 0
        %2022 = vmatpush1.bf16.msra.mxu0 %v2004
        %2023 = vmatprep.subr.bf16.mxu0 0
        %2024 = vmatpush1.bf16.msra.mxu0 %v2005
        %2025 = vmatprep.subr.bf16.mxu0 0
        %2026 = vmatpush1.bf16.msra.mxu0 %v2006
        %2027 = vmatprep.subr.bf16.mxu0 0
        %2028 = vmatpush1.bf16.msra.mxu0 %v2007
        %2029 = vmatprep.subr.bf16.mxu0 0
        %2030 = vmatpush1.bf16.msra.mxu0 %v2008
        %2031 = vmatprep.subr.bf16.mxu0 0
        %2032 = vmatpush1.bf16.msra.mxu0 %v2009
        %2033 = vmatprep.subr.bf16.mxu0 0
        %2034 = vmatpush1.bf16.msra.mxu0 %v2010
        %2035 = vmatprep.subr.bf16.mxu0 0
        %2036 = vmatpush1.bf16.msra.mxu0 0
        %2037 = vmatprep.subr.bf16.mxu0 0
        %2038 = vmatpush1.bf16.msra.mxu0 0
        %2039 = vmatprep.subr.bf16.mxu0 0
        %2040 = vmatpush1.bf16.msra.mxu0 0
        %2041 = vmatprep.subr.bf16.mxu0 0
        %2042 = vmatpush1.bf16.msra.mxu0 0
        %2043 = vmatprep.subr.bf16.mxu0 0
        %2044 = vmatpush1.bf16.msra.mxu0 0
        %2045 = vmatprep.subr.bf16.mxu0 0
        %2046 = vmatpush1.bf16.msra.mxu0 0
        %2047 = vmatprep.subr.bf16.mxu0 0
        %2048 = vmatpush1.bf16.msra.mxu0 0
        %2049 = vmatprep.subr.bf16.mxu0 0
        %2050 = vmatpush1.bf16.msra.mxu0 0
        %2051 = vmatprep.mubr.bf16.mxu0 0
        %2052 = vmatmul.mubr.bf16.gmra.mrb[0].mxu0 %v759
        %v2053 = vpop.f32.mrb[0].mxu0
        %v2054 = vadd.f32 0.0, %v2053
        %v2055 = vpop.f32.mrb[0].mxu0
        %v2056 = vpop.f32.mrb[0].mxu0
        %v2057 = vadd.f32 0.0, %v2056
        %v2058 = vpop.f32.mrb[0].mxu0
        %2059 = vmatprep.mubr.bf16.mxu0 0
        %2060 = vmatmul.mubr.bf16.gmra.mrb[0].mxu0 %v760
        %v2061 = vpop.f32.mrb[0].mxu0
        %v2062 = vadd.f32 0.0, %v2061
        %v2063 = vpop.f32.mrb[0].mxu0
        %v2064 = vpop.f32.mrb[0].mxu0
        %v2065 = vadd.f32 0.0, %v2064
        %v2066 = vpop.f32.mrb[0].mxu0
        %2067 = vmatprep.mubr.bf16.mxu0 0
        %2068 = vmatmul.mubr.bf16.gmra.mrb[0].mxu0 %v761
        %v2069 = vpop.f32.mrb[0].mxu0
        %v2070 = vadd.f32 0.0, %v2069
        %v2071 = vpop.f32.mrb[0].mxu0
        %v2072 = vpop.f32.mrb[0].mxu0
        %v2073 = vadd.f32 0.0, %v2072
        %v2074 = vpop.f32.mrb[0].mxu0
        %2075 = vmatprep.mubr.bf16.mxu0 0
        %2076 = vmatmul.mubr.bf16.gmra.mrb[0].mxu0 %v762
        %v2077 = vpop.f32.mrb[0].mxu0
        %v2078 = vadd.f32 0.0, %v2077
        %v2079 = vpop.f32.mrb[0].mxu0
        %v2080 = vpop.f32.mrb[0].mxu0
        %v2081 = vadd.f32 0.0, %v2080
        %v2082 = vpop.f32.mrb[0].mxu0
        %2083 = vmatprep.mubr.bf16.mxu0 0
        %2084 = vmatmul.mubr.bf16.gmra.mrb[0].mxu0 %v763
        %v2085 = vpop.f32.mrb[0].mxu0
        %v2086 = vadd.f32 0.0, %v2085
        %v2087 = vpop.f32.mrb[0].mxu0
        %v2088 = vpop.f32.mrb[0].mxu0
        %v2089 = vadd.f32 0.0, %v2088
        %v2090 = vpop.f32.mrb[0].mxu0
        %2091 = vmatprep.mubr.bf16.mxu0 0
        %2092 = vmatmul.mubr.bf16.gmra.mrb[0].mxu0 %v764
        %v2093 = vpop.f32.mrb[0].mxu0
        %v2094 = vadd.f32 0.0, %v2093
        %v2095 = vpop.f32.mrb[0].mxu0
        %v2096 = vpop.f32.mrb[0].mxu0
        %v2097 = vadd.f32 0.0, %v2096
        %v2098 = vpop.f32.mrb[0].mxu0
        %2099 = vmatprep.mubr.bf16.mxu0 0
        %2100 = vmatmul.mubr.bf16.gmra.mrb[0].mxu0 %v765
        %v2101 = vpop.f32.mrb[0].mxu0
        %v2102 = vadd.f32 0.0, %v2101
        %v2103 = vpop.f32.mrb[0].mxu0
        %v2104 = vpop.f32.mrb[0].mxu0
        %v2105 = vadd.f32 0.0, %v2104
        %v2106 = vpop.f32.mrb[0].mxu0
        %2107 = vmatprep.mubr.bf16.mxu0 0
        %2108 = vmatmul.mubr.bf16.gmra.mrb[0].mxu0 %v766
        %v2109 = vpop.f32.mrb[0].mxu0
        %v2110 = vadd.f32 0.0, %v2109
        %v2111 = vpop.f32.mrb[0].mxu0
        %v2112 = vpop.f32.mrb[0].mxu0
        %v2113 = vadd.f32 0.0, %v2112
        %v2114 = vpop.f32.mrb[0].mxu0
        %2115 = vdwg.mxu0
        %v2116 = vadd.f32 %v1938, %v2054
        %v2117 = vadd.f32 %v1939, %v2057
        %v2118 = vadd.f32 %v1940, %v2062
        %v2119 = vadd.f32 %v1941, %v2065
        %v2120 = vadd.f32 %v1942, %v2070
        %v2121 = vadd.f32 %v1943, %v2073
        %v2122 = vadd.f32 %v1944, %v2078
        %v2123 = vadd.f32 %v1945, %v2081
        %v2124 = vadd.f32 %v1946, %v2086
        %v2125 = vadd.f32 %v1947, %v2089
        %v2126 = vadd.f32 %v1948, %v2094
        %v2127 = vadd.f32 %v1949, %v2097
        %v2128 = vadd.f32 %v1950, %v2102
        %v2129 = vadd.f32 %v1951, %v2105
        %v2130 = vadd.f32 %v1952, %v2110
        %v2131 = vadd.f32 %v1953, %v2113
        %s2132 = scalar_lea.vmem [#allocation4], 448
        %v2133 = vld [vmem:[%s2132] sm:$0xf]
        %v2134 = vld [vmem:[%s2132 + $0x4] sm:$0xf]
        %v2135 = vld [vmem:[%s2132 + $0x8] sm:$0xf]
        %v2136 = vld [vmem:[%s2132 + $0xc] sm:$0xf]
        %v2137 = vld [vmem:[%s2132 + $0x10] sm:$0xf]
        %v2138 = vld [vmem:[%s2132 + $0x14] sm:$0xf]
        %v2139 = vld [vmem:[%s2132 + $0x18] sm:$0xf]
        %v2140 = vld [vmem:[%s2132 + $0x1c] sm:$0xf]
        %v2141 = vld [vmem:[%s2132 + $0x20] sm:$0xf]
        %v2142 = vld [vmem:[%s2132 + $0x24] sm:$0xf]
        %v2143 = vld [vmem:[%s2132 + $0x28] sm:$0xf]
        %v2144 = vld [vmem:[%s2132 + $0x2c] sm:$0xf]
        %v2145 = vld [vmem:[%s2132 + $0x30] sm:$0xf]
        %v2146 = vld [vmem:[%s2132 + $0x34] sm:$0xf]
        %v2147 = vld [vmem:[%s2132 + $0x38] sm:$0xf]
        %v2148 = vld [vmem:[%s2132 + $0x3c] sm:$0xf]
        %v2165 = vunpack.c.l.b16 %v2133
        %v2166 = vunpack.c.l.b16 %v2134
        %v2167 = vunpack.c.l.b16 %v2135
        %v2168 = vunpack.c.l.b16 %v2136
        %v2169 = vunpack.c.l.b16 %v2137
        %v2170 = vunpack.c.l.b16 %v2138
        %v2171 = vunpack.c.l.b16 %v2139
        %v2172 = vunpack.c.l.b16 %v2140
        %v2173 = vunpack.c.l.b16 %v2141
        %v2174 = vunpack.c.l.b16 %v2142
        %v2175 = vunpack.c.l.b16 %v2143
        %v2176 = vunpack.c.l.b16 %v2144
        %v2177 = vunpack.c.l.b16 %v2145
        %v2178 = vunpack.c.l.b16 %v2146
        %v2179 = vunpack.c.l.b16 %v2147
        %v2180 = vunpack.c.l.b16 %v2148
        %v2181 = vpack.c.b16 %v2166, %v2165
        %v2182 = vpack.c.b16 %v2168, %v2167
        %v2183 = vpack.c.b16 %v2170, %v2169
        %v2184 = vpack.c.b16 %v2172, %v2171
        %v2185 = vpack.c.b16 %v2174, %v2173
        %v2186 = vpack.c.b16 %v2176, %v2175
        %v2187 = vpack.c.b16 %v2178, %v2177
        %v2188 = vpack.c.b16 %v2180, %v2179
        %2197 = vmatprep.subr.bf16.mxu0 0
        %2198 = vmatpush1.bf16.msra.mxu0 %v2181
        %2199 = vmatprep.subr.bf16.mxu0 0
        %2200 = vmatpush1.bf16.msra.mxu0 %v2182
        %2201 = vmatprep.subr.bf16.mxu0 0
        %2202 = vmatpush1.bf16.msra.mxu0 %v2183
        %2203 = vmatprep.subr.bf16.mxu0 0
        %2204 = vmatpush1.bf16.msra.mxu0 %v2184
        %2205 = vmatprep.subr.bf16.mxu0 0
        %2206 = vmatpush1.bf16.msra.mxu0 %v2185
        %2207 = vmatprep.subr.bf16.mxu0 0
        %2208 = vmatpush1.bf16.msra.mxu0 %v2186
        %2209 = vmatprep.subr.bf16.mxu0 0
        %2210 = vmatpush1.bf16.msra.mxu0 %v2187
        %2211 = vmatprep.subr.bf16.mxu0 0
        %2212 = vmatpush1.bf16.msra.mxu0 %v2188
        %2213 = vmatprep.subr.bf16.mxu0 0
        %2214 = vmatpush1.bf16.msra.mxu0 0
        %2215 = vmatprep.subr.bf16.mxu0 0
        %2216 = vmatpush1.bf16.msra.mxu0 0
        %2217 = vmatprep.subr.bf16.mxu0 0
        %2218 = vmatpush1.bf16.msra.mxu0 0
        %2219 = vmatprep.subr.bf16.mxu0 0
        %2220 = vmatpush1.bf16.msra.mxu0 0
        %2221 = vmatprep.subr.bf16.mxu0 0
        %2222 = vmatpush1.bf16.msra.mxu0 0
        %2223 = vmatprep.subr.bf16.mxu0 0
        %2224 = vmatpush1.bf16.msra.mxu0 0
        %2225 = vmatprep.subr.bf16.mxu0 0
        %2226 = vmatpush1.bf16.msra.mxu0 0
        %2227 = vmatprep.subr.bf16.mxu0 0
        %2228 = vmatpush1.bf16.msra.mxu0 0
        %2229 = vmatprep.mubr.bf16.mxu0 0
        %2230 = vmatmul.mubr.bf16.gmra.mrb[0].mxu0 %v306
        %v2231 = vpop.f32.mrb[0].mxu0
        %v2232 = vadd.f32 0.0, %v2231
        %v2233 = vpop.f32.mrb[0].mxu0
        %v2234 = vpop.f32.mrb[0].mxu0
        %v2235 = vadd.f32 0.0, %v2234
        %v2236 = vpop.f32.mrb[0].mxu0
        %2237 = vmatprep.mubr.bf16.mxu0 0
        %2238 = vmatmul.mubr.bf16.gmra.mrb[0].mxu0 %v307
        %v2239 = vpop.f32.mrb[0].mxu0
        %v2240 = vadd.f32 0.0, %v2239
        %v2241 = vpop.f32.mrb[0].mxu0
        %v2242 = vpop.f32.mrb[0].mxu0
        %v2243 = vadd.f32 0.0, %v2242
        %v2244 = vpop.f32.mrb[0].mxu0
        %2245 = vmatprep.mubr.bf16.mxu0 0
        %2246 = vmatmul.mubr.bf16.gmra.mrb[0].mxu0 %v308
        %v2247 = vpop.f32.mrb[0].mxu0
        %v2248 = vadd.f32 0.0, %v2247
        %v2249 = vpop.f32.mrb[0].mxu0
        %v2250 = vpop.f32.mrb[0].mxu0
        %v2251 = vadd.f32 0.0, %v2250
        %v2252 = vpop.f32.mrb[0].mxu0
        %2253 = vmatprep.mubr.bf16.mxu0 0
        %2254 = vmatmul.mubr.bf16.gmra.mrb[0].mxu0 %v309
        %v2255 = vpop.f32.mrb[0].mxu0
        %v2256 = vadd.f32 0.0, %v2255
        %v2257 = vpop.f32.mrb[0].mxu0
        %v2258 = vpop.f32.mrb[0].mxu0
        %v2259 = vadd.f32 0.0, %v2258
        %v2260 = vpop.f32.mrb[0].mxu0
        %2261 = vmatprep.mubr.bf16.mxu0 0
        %2262 = vmatmul.mubr.bf16.gmra.mrb[0].mxu0 %v310
        %v2263 = vpop.f32.mrb[0].mxu0
        %v2264 = vadd.f32 0.0, %v2263
        %v2265 = vpop.f32.mrb[0].mxu0
        %v2266 = vpop.f32.mrb[0].mxu0
        %v2267 = vadd.f32 0.0, %v2266
        %v2268 = vpop.f32.mrb[0].mxu0
        %2269 = vmatprep.mubr.bf16.mxu0 0
        %2270 = vmatmul.mubr.bf16.gmra.mrb[0].mxu0 %v311
        %v2271 = vpop.f32.mrb[0].mxu0
        %v2272 = vadd.f32 0.0, %v2271
        %v2273 = vpop.f32.mrb[0].mxu0
        %v2274 = vpop.f32.mrb[0].mxu0
        %v2275 = vadd.f32 0.0, %v2274
        %v2276 = vpop.f32.mrb[0].mxu0
        %2277 = vmatprep.mubr.bf16.mxu0 0
        %2278 = vmatmul.mubr.bf16.gmra.mrb[0].mxu0 %v312
        %v2279 = vpop.f32.mrb[0].mxu0
        %v2280 = vadd.f32 0.0, %v2279
        %v2281 = vpop.f32.mrb[0].mxu0
        %v2282 = vpop.f32.mrb[0].mxu0
        %v2283 = vadd.f32 0.0, %v2282
        %v2284 = vpop.f32.mrb[0].mxu0
        %2285 = vmatprep.mubr.bf16.mxu0 0
        %2286 = vmatmul.mubr.bf16.gmra.mrb[0].mxu0 %v313
        %v2287 = vpop.f32.mrb[0].mxu0
        %v2288 = vadd.f32 0.0, %v2287
        %v2289 = vpop.f32.mrb[0].mxu0
        %v2290 = vpop.f32.mrb[0].mxu0
        %v2291 = vadd.f32 0.0, %v2290
        %v2292 = vpop.f32.mrb[0].mxu0
        %2293 = vdwg.mxu0
        %v2294 = vadd.f32 %v2116, %v2232
        %v2295 = vadd.f32 %v2117, %v2235
        %v2296 = vadd.f32 %v2118, %v2240
        %v2297 = vadd.f32 %v2119, %v2243
        %v2298 = vadd.f32 %v2120, %v2248
        %v2299 = vadd.f32 %v2121, %v2251
        %v2300 = vadd.f32 %v2122, %v2256
        %v2301 = vadd.f32 %v2123, %v2259
        %v2302 = vadd.f32 %v2124, %v2264
        %v2303 = vadd.f32 %v2125, %v2267
        %v2304 = vadd.f32 %v2126, %v2272
        %v2305 = vadd.f32 %v2127, %v2275
        %v2306 = vadd.f32 %v2128, %v2280
        %v2307 = vadd.f32 %v2129, %v2283
        %v2308 = vadd.f32 %v2130, %v2288
        %v2309 = vadd.f32 %v2131, %v2291
        %s2310 = scalar_lea.vmem [#allocation4], 512
        %v2311 = vld [vmem:[%s2310] sm:$0xf]
        %v2312 = vld [vmem:[%s2310 + $0x4] sm:$0xf]
        %v2313 = vld [vmem:[%s2310 + $0x8] sm:$0xf]
        %v2314 = vld [vmem:[%s2310 + $0xc] sm:$0xf]
        %v2315 = vld [vmem:[%s2310 + $0x10] sm:$0xf]
        %v2316 = vld [vmem:[%s2310 + $0x14] sm:$0xf]
        %v2317 = vld [vmem:[%s2310 + $0x18] sm:$0xf]
        %v2318 = vld [vmem:[%s2310 + $0x1c] sm:$0xf]
        %v2319 = vld [vmem:[%s2310 + $0x20] sm:$0xf]
        %v2320 = vld [vmem:[%s2310 + $0x24] sm:$0xf]
        %v2321 = vld [vmem:[%s2310 + $0x28] sm:$0xf]
        %v2322 = vld [vmem:[%s2310 + $0x2c] sm:$0xf]
        %v2323 = vld [vmem:[%s2310 + $0x30] sm:$0xf]
        %v2324 = vld [vmem:[%s2310 + $0x34] sm:$0xf]
        %v2325 = vld [vmem:[%s2310 + $0x38] sm:$0xf]
        %v2326 = vld [vmem:[%s2310 + $0x3c] sm:$0xf]
        %v2343 = vunpack.c.l.b16 %v2311
        %v2344 = vunpack.c.l.b16 %v2312
        %v2345 = vunpack.c.l.b16 %v2313
        %v2346 = vunpack.c.l.b16 %v2314
        %v2347 = vunpack.c.l.b16 %v2315
        %v2348 = vunpack.c.l.b16 %v2316
        %v2349 = vunpack.c.l.b16 %v2317
        %v2350 = vunpack.c.l.b16 %v2318
        %v2351 = vunpack.c.l.b16 %v2319
        %v2352 = vunpack.c.l.b16 %v2320
        %v2353 = vunpack.c.l.b16 %v2321
        %v2354 = vunpack.c.l.b16 %v2322
        %v2355 = vunpack.c.l.b16 %v2323
        %v2356 = vunpack.c.l.b16 %v2324
        %v2357 = vunpack.c.l.b16 %v2325
        %v2358 = vunpack.c.l.b16 %v2326
        %v2359 = vpack.c.b16 %v2344, %v2343
        %v2360 = vpack.c.b16 %v2346, %v2345
        %v2361 = vpack.c.b16 %v2348, %v2347
        %v2362 = vpack.c.b16 %v2350, %v2349
        %v2363 = vpack.c.b16 %v2352, %v2351
        %v2364 = vpack.c.b16 %v2354, %v2353
        %v2365 = vpack.c.b16 %v2356, %v2355
        %v2366 = vpack.c.b16 %v2358, %v2357
        %2375 = vmatprep.subr.bf16.mxu0 0
        %2376 = vmatpush1.bf16.msra.mxu0 %v2359
        %2377 = vmatprep.subr.bf16.mxu0 0
        %2378 = vmatpush1.bf16.msra.mxu0 %v2360
        %2379 = vmatprep.subr.bf16.mxu0 0
        %2380 = vmatpush1.bf16.msra.mxu0 %v2361
        %2381 = vmatprep.subr.bf16.mxu0 0
        %2382 = vmatpush1.bf16.msra.mxu0 %v2362
        %2383 = vmatprep.subr.bf16.mxu0 0
        %2384 = vmatpush1.bf16.msra.mxu0 %v2363
        %2385 = vmatprep.subr.bf16.mxu0 0
        %2386 = vmatpush1.bf16.msra.mxu0 %v2364
        %2387 = vmatprep.subr.bf16.mxu0 0
        %2388 = vmatpush1.bf16.msra.mxu0 %v2365
        %2389 = vmatprep.subr.bf16.mxu0 0
        %2390 = vmatpush1.bf16.msra.mxu0 %v2366
        %2391 = vmatprep.subr.bf16.mxu0 0
        %2392 = vmatpush1.bf16.msra.mxu0 0
        %2393 = vmatprep.subr.bf16.mxu0 0
        %2394 = vmatpush1.bf16.msra.mxu0 0
        %2395 = vmatprep.subr.bf16.mxu0 0
        %2396 = vmatpush1.bf16.msra.mxu0 0
        %2397 = vmatprep.subr.bf16.mxu0 0
        %2398 = vmatpush1.bf16.msra.mxu0 0
        %2399 = vmatprep.subr.bf16.mxu0 0
        %2400 = vmatpush1.bf16.msra.mxu0 0
        %2401 = vmatprep.subr.bf16.mxu0 0
        %2402 = vmatpush1.bf16.msra.mxu0 0
        %2403 = vmatprep.subr.bf16.mxu0 0
        %2404 = vmatpush1.bf16.msra.mxu0 0
        %2405 = vmatprep.subr.bf16.mxu0 0
        %2406 = vmatpush1.bf16.msra.mxu0 0
        %2407 = vmatprep.mubr.bf16.mxu0 0
        %2408 = vmatmul.mubr.bf16.gmra.mrb[0].mxu0 %v911
        %v2409 = vpop.f32.mrb[0].mxu0
        %v2410 = vadd.f32 0.0, %v2409
        %v2411 = vpop.f32.mrb[0].mxu0
        %v2412 = vpop.f32.mrb[0].mxu0
        %v2413 = vadd.f32 0.0, %v2412
        %v2414 = vpop.f32.mrb[0].mxu0
        %2415 = vmatprep.mubr.bf16.mxu0 0
        %2416 = vmatmul.mubr.bf16.gmra.mrb[0].mxu0 %v912
        %v2417 = vpop.f32.mrb[0].mxu0
        %v2418 = vadd.f32 0.0, %v2417
        %v2419 = vpop.f32.mrb[0].mxu0
        %v2420 = vpop.f32.mrb[0].mxu0
        %v2421 = vadd.f32 0.0, %v2420
        %v2422 = vpop.f32.mrb[0].mxu0
        %2423 = vmatprep.mubr.bf16.mxu0 0
        %2424 = vmatmul.mubr.bf16.gmra.mrb[0].mxu0 %v913
        %v2425 = vpop.f32.mrb[0].mxu0
        %v2426 = vadd.f32 0.0, %v2425
        %v2427 = vpop.f32.mrb[0].mxu0
        %v2428 = vpop.f32.mrb[0].mxu0
        %v2429 = vadd.f32 0.0, %v2428
        %v2430 = vpop.f32.mrb[0].mxu0
        %2431 = vmatprep.mubr.bf16.mxu0 0
        %2432 = vmatmul.mubr.bf16.gmra.mrb[0].mxu0 %v914
        %v2433 = vpop.f32.mrb[0].mxu0
        %v2434 = vadd.f32 0.0, %v2433
        %v2435 = vpop.f32.mrb[0].mxu0
        %v2436 = vpop.f32.mrb[0].mxu0
        %v2437 = vadd.f32 0.0, %v2436
        %v2438 = vpop.f32.mrb[0].mxu0
        %2439 = vmatprep.mubr.bf16.mxu0 0
        %2440 = vmatmul.mubr.bf16.gmra.mrb[0].mxu0 %v915
        %v2441 = vpop.f32.mrb[0].mxu0
        %v2442 = vadd.f32 0.0, %v2441
        %v2443 = vpop.f32.mrb[0].mxu0
        %v2444 = vpop.f32.mrb[0].mxu0
        %v2445 = vadd.f32 0.0, %v2444
        %v2446 = vpop.f32.mrb[0].mxu0
        %2447 = vmatprep.mubr.bf16.mxu0 0
        %2448 = vmatmul.mubr.bf16.gmra.mrb[0].mxu0 %v916
        %v2449 = vpop.f32.mrb[0].mxu0
        %v2450 = vadd.f32 0.0, %v2449
        %v2451 = vpop.f32.mrb[0].mxu0
        %v2452 = vpop.f32.mrb[0].mxu0
        %v2453 = vadd.f32 0.0, %v2452
        %v2454 = vpop.f32.mrb[0].mxu0
        %2455 = vmatprep.mubr.bf16.mxu0 0
        %2456 = vmatmul.mubr.bf16.gmra.mrb[0].mxu0 %v917
        %v2457 = vpop.f32.mrb[0].mxu0
        %v2458 = vadd.f32 0.0, %v2457
        %v2459 = vpop.f32.mrb[0].mxu0
        %v2460 = vpop.f32.mrb[0].mxu0
        %v2461 = vadd.f32 0.0, %v2460
        %v2462 = vpop.f32.mrb[0].mxu0
        %2463 = vmatprep.mubr.bf16.mxu0 0
        %2464 = vmatmul.mubr.bf16.gmra.mrb[0].mxu0 %v918
        %v2465 = vpop.f32.mrb[0].mxu0
        %v2466 = vadd.f32 0.0, %v2465
        %v2467 = vpop.f32.mrb[0].mxu0
        %v2468 = vpop.f32.mrb[0].mxu0
        %v2469 = vadd.f32 0.0, %v2468
        %v2470 = vpop.f32.mrb[0].mxu0
        %2471 = vdwg.mxu0
        %v2472 = vadd.f32 %v2294, %v2410
        %v2473 = vadd.f32 %v2295, %v2413
        %v2474 = vadd.f32 %v2296, %v2418
        %v2475 = vadd.f32 %v2297, %v2421
        %v2476 = vadd.f32 %v2298, %v2426
        %v2477 = vadd.f32 %v2299, %v2429
        %v2478 = vadd.f32 %v2300, %v2434
        %v2479 = vadd.f32 %v2301, %v2437
        %v2480 = vadd.f32 %v2302, %v2442
        %v2481 = vadd.f32 %v2303, %v2445
        %v2482 = vadd.f32 %v2304, %v2450
        %v2483 = vadd.f32 %v2305, %v2453
        %v2484 = vadd.f32 %v2306, %v2458
        %v2485 = vadd.f32 %v2307, %v2461
        %v2486 = vadd.f32 %v2308, %v2466
        %v2487 = vadd.f32 %v2309, %v2469
        %v2488 = vpack.c.bf16 %v2473, %v2472
        %v2489 = vpack.c.bf16 %v2475, %v2474
        %v2490 = vpack.c.bf16 %v2477, %v2476
        %v2491 = vpack.c.bf16 %v2479, %v2478
        %v2492 = vpack.c.bf16 %v2481, %v2480
        %v2493 = vpack.c.bf16 %v2483, %v2482
        %v2494 = vpack.c.bf16 %v2485, %v2484
        %v2495 = vpack.c.bf16 %v2487, %v2486
        %v2504 = vunpack.c.l.b16 %v2488
        %v2505 = vunpack.c.h.b16 %v2488
        %v2506 = vunpack.c.l.b16 %v2489
        %v2507 = vunpack.c.h.b16 %v2489
        %v2508 = vunpack.c.l.b16 %v2490
        %v2509 = vunpack.c.h.b16 %v2490
        %v2510 = vunpack.c.l.b16 %v2491
        %v2511 = vunpack.c.h.b16 %v2491
        %v2512 = vunpack.c.l.b16 %v2492
        %v2513 = vunpack.c.h.b16 %v2492
        %v2514 = vunpack.c.l.b16 %v2493
        %v2515 = vunpack.c.h.b16 %v2493
        %v2516 = vunpack.c.l.b16 %v2494
        %v2517 = vunpack.c.h.b16 %v2494
        %v2518 = vunpack.c.l.b16 %v2495
        %v2519 = vunpack.c.h.b16 %v2495
        %v2520 = vpack.c.b16 %v2504, %v2504
        %v2521 = vpack.c.b16 %v2505, %v2505
        %v2522 = vpack.c.b16 %v2506, %v2506
        %v2523 = vpack.c.b16 %v2507, %v2507
        %v2524 = vpack.c.b16 %v2508, %v2508
        %v2525 = vpack.c.b16 %v2509, %v2509
        %v2526 = vpack.c.b16 %v2510, %v2510
        %v2527 = vpack.c.b16 %v2511, %v2511
        %v2528 = vpack.c.b16 %v2512, %v2512
        %v2529 = vpack.c.b16 %v2513, %v2513
        %v2530 = vpack.c.b16 %v2514, %v2514
        %v2531 = vpack.c.b16 %v2515, %v2515
        %v2532 = vpack.c.b16 %v2516, %v2516
        %v2533 = vpack.c.b16 %v2517, %v2517
        %v2534 = vpack.c.b16 %v2518, %v2518
        %v2535 = vpack.c.b16 %v2519, %v2519
        %2552 = vst [vmem:[%s206] sm:$0xf] %v2520
        %2553 = vst [vmem:[%s206 + $0x4] sm:$0xf] %v2521
        %2554 = vst [vmem:[%s206 + $0x8] sm:$0xf] %v2522
        %2555 = vst [vmem:[%s206 + $0xc] sm:$0xf] %v2523
        %2556 = vst [vmem:[%s206 + $0x10] sm:$0xf] %v2524
        %2557 = vst [vmem:[%s206 + $0x14] sm:$0xf] %v2525
        %2558 = vst [vmem:[%s206 + $0x18] sm:$0xf] %v2526
        %2559 = vst [vmem:[%s206 + $0x1c] sm:$0xf] %v2527
        %2560 = vst [vmem:[%s206 + $0x20] sm:$0xf] %v2528
        %2561 = vst [vmem:[%s206 + $0x24] sm:$0xf] %v2529
        %2562 = vst [vmem:[%s206 + $0x28] sm:$0xf] %v2530
        %2563 = vst [vmem:[%s206 + $0x2c] sm:$0xf] %v2531
        %2564 = vst [vmem:[%s206 + $0x30] sm:$0xf] %v2532
        %2565 = vst [vmem:[%s206 + $0x34] sm:$0xf] %v2533
        %2566 = vst [vmem:[%s206 + $0x38] sm:$0xf] %v2534
        %2567 = vst [vmem:[%s206 + $0x3c] sm:$0xf] %v2535
        %v2568 = vadd.f32 %v2472, %v2473
        %v2569 = vadd.f32 %v2568, %v2474
        %v2570 = vadd.f32 %v2569, %v2475
        %v2571 = vadd.f32 %v2570, %v2476
        %v2572 = vadd.f32 %v2571, %v2477
        %v2573 = vadd.f32 %v2572, %v2478
        %v2574 = vadd.f32 %v2573, %v2479
        %v2575 = vadd.f32 %v2574, %v2480
        %v2576 = vadd.f32 %v2575, %v2481
        %v2577 = vadd.f32 %v2576, %v2482
        %v2578 = vadd.f32 %v2577, %v2483
        %v2579 = vadd.f32 %v2578, %v2484
        %v2580 = vadd.f32 %v2579, %v2485
        %v2581 = vadd.f32 %v2580, %v2486
        %v2582 = vadd.f32 %v2581, %v2487
        %v2583 = vrot.slane %v2582, 4
        %v2584 = vadd.f32 %v2582, %v2583
        %v2585 = vrot.slane %v2584, 2
        %v2586 = vadd.f32 %v2584, %v2585
        %v2587 = vrot.slane %v2586, 1
        %v2588 = vadd.f32 %v2586, %v2587
        %2589 = vst [vmem:[%s212] sm:$0x1] %v2588
        %v2590 = vmul.f32 %v2472, %v2472
        %v2591 = vmul.f32 %v2473, %v2473
        %v2592 = vmul.f32 %v2474, %v2474
        %v2593 = vmul.f32 %v2475, %v2475
        %v2594 = vmul.f32 %v2476, %v2476
        %v2595 = vmul.f32 %v2477, %v2477
        %v2596 = vmul.f32 %v2478, %v2478
        %v2597 = vmul.f32 %v2479, %v2479
        %v2598 = vmul.f32 %v2480, %v2480
        %v2599 = vmul.f32 %v2481, %v2481
        %v2600 = vmul.f32 %v2482, %v2482
        %v2601 = vmul.f32 %v2483, %v2483
        %v2602 = vmul.f32 %v2484, %v2484
        %v2603 = vmul.f32 %v2485, %v2485
        %v2604 = vmul.f32 %v2486, %v2486
        %v2605 = vmul.f32 %v2487, %v2487
        %v2606 = vadd.f32 %v2590, %v2591
        %v2607 = vadd.f32 %v2606, %v2592
        %v2608 = vadd.f32 %v2607, %v2593
        %v2609 = vadd.f32 %v2608, %v2594
        %v2610 = vadd.f32 %v2609, %v2595
        %v2611 = vadd.f32 %v2610, %v2596
        %v2612 = vadd.f32 %v2611, %v2597
        %v2613 = vadd.f32 %v2612, %v2598
        %v2614 = vadd.f32 %v2613, %v2599
        %v2615 = vadd.f32 %v2614, %v2600
        %v2616 = vadd.f32 %v2615, %v2601
        %v2617 = vadd.f32 %v2616, %v2602
        %v2618 = vadd.f32 %v2617, %v2603
        %v2619 = vadd.f32 %v2618, %v2604
        %v2620 = vadd.f32 %v2619, %v2605
        %v2621 = vrot.slane %v2620, 4
        %v2622 = vadd.f32 %v2620, %v2621
        %v2623 = vrot.slane %v2622, 2
        %v2624 = vadd.f32 %v2622, %v2623
        %v2625 = vrot.slane %v2624, 1
        %v2626 = vadd.f32 %v2624, %v2625
        %2627 = vst [vmem:[%s218] sm:$0x1] %v2626
        %s2628 = sand.u32 %s80, 1
        %s2629 = scalar_lea.sflag [#allocation6], %s2628
        %s2630 = sand.u32 %s80, 1
        %s2631 = smul.addr %s2630, 64
        %s2632 = scalar_lea.vmem [#allocation7], %s2631
        %s2633 = sand.u32 %s23, 1
        %s2634 = scalar_lea.sflag [#allocation9], %s2633
        %s2635 = sand.u32 %s110, 1
        %s2636 = scalar_lea.vmem [#allocation8], %s2635
        %s2637 = sand.u32 %s23, 1
        %s2638 = scalar_lea.sflag [#allocation9], %s2637
        %s2639 = sand.u32 %s140, 1
        %s2640 = scalar_lea.vmem [#allocation10], %s2639
        // Predicated region
        $region53: #{tpu_custom_call.1} parent=23 // pred_check
          %p2641 = pneg %p90
        $region54: #{tpu_custom_call.1} parent=23 // pred_check_branch
          %2643 = sbr.rel (%p2641) target = $region56
        $region55: #{tpu_custom_call.1} parent=23 // pred_region
          %s2644 = smul.u32 16, %s29
          %s2646 = ssub.s32 1024, 1024
          %2647 = vsyncadd %s2629, %s2646
          %s2648 = sadd.s32 %s30, %s2644
          %s2649 = smul.addr %s28, 32
          %s2650 = sadd.s32 %s2648, %s2649
          %s2651 = smul.addr %s2650, 64
          %s2652 = scalar_lea.hbm %s2, %s2651
          %s2653 = sshll.u32 %s2632, 4
          %s2654 = int_to_ptr.vmem [resolvable:$true] %s2653
          %2659 = dma.vmem_to_hbm [thread:$0]  %s2654, 1024, %s2652, %s2629, 64, 64, 4
        $region56: #{tpu_custom_call.1} parent=23 // pred_fallthru
          _
        // Predicated region
        $region57: #{tpu_custom_call.1} parent=23 // pred_check
          %p2660 = pneg %p120
        $region58: #{tpu_custom_call.1} parent=23 // pred_check_branch
          %2662 = sbr.rel (%p2660) target = $region60
        $region59: #{tpu_custom_call.1} parent=23 // pred_region
          %s2664 = ssub.s32 16, 16
          %2665 = vsyncadd %s2634, %s2664
          %s2666 = sadd.s32 %s30, %s29
          %s2667 = smul.addr %s28, 2
          %s2668 = sadd.s32 %s2666, %s2667
          %s2669 = smul.addr %s2668, 16
          %s2670 = scalar_lea.hbm %s3, %s2669
          %s2672 = sshll.u32 %s2636, 4
          %s2673 = int_to_ptr.vmem [resolvable:$true] %s2672
          %2675 = dma.vmem_to_hbm [thread:$0]  %s2673, 16, %s2670, %s2634
        $region60: #{tpu_custom_call.1} parent=23 // pred_fallthru
          _
        // Predicated region
        $region61: #{tpu_custom_call.1} parent=23 // pred_check
          %p2676 = pneg %p150
        $region62: #{tpu_custom_call.1} parent=23 // pred_check_branch
          %2678 = sbr.rel (%p2676) target = $region64
        $region63: #{tpu_custom_call.1} parent=23 // pred_region
          %s2680 = ssub.s32 16, 16
          %2681 = vsyncadd %s2638, %s2680
          %s2682 = sadd.s32 %s30, %s29
          %s2683 = smul.addr %s28, 2
          %s2684 = sadd.s32 %s2682, %s2683
          %s2685 = smul.addr %s2684, 16
          %s2686 = scalar_lea.hbm %s4, %s2685
          %s2688 = sshll.u32 %s2640, 4
          %s2689 = int_to_ptr.vmem [resolvable:$true] %s2688
          %2691 = dma.vmem_to_hbm [thread:$0]  %s2689, 16, %s2686, %s2638
        $region64: #{tpu_custom_call.1} parent=23 // pred_fallthru
          _
      $region24: #{tpu_custom_call.1} parent=5 // pred_fallthru
        _
      %p2692 = scmp.le.s32.totalorder 2, %s18
      // Predicated region
      $region65: #{tpu_custom_call.1} parent=5 // pred_check
        %p2693 = pneg %p2692
      $region66: #{tpu_custom_call.1} parent=5 // pred_check_branch
        %2695 = sbr.rel (%p2693) target = $region68
      $region67: #{tpu_custom_call.1} parent=5 // pred_region
        %s2696 = ssub.s32 %s18, 2
        // Predicated region
        $region69: #{tpu_custom_call.1} parent=67 // pred_check
          %p2697 = pneg %p96
        $region70: #{tpu_custom_call.1} parent=67 // pred_check_branch
          %2699 = sbr.rel (%p2697) target = $region72
        $region71: #{tpu_custom_call.1} parent=67 // pred_region
          %s2700 = sand.u32 %s81, 1
          %s2701 = scalar_lea.sflag [#allocation6], %s2700
          %s2702 = sand.u32 %s81, 1
          %s2703 = smul.addr %s2702, 64
          %s2704 = scalar_lea.vmem [#allocation7], %s2703
          %2705 = dma.done %s2701, 1024
        $region72: #{tpu_custom_call.1} parent=67 // pred_fallthru
          _
        // Predicated region
        $region73: #{tpu_custom_call.1} parent=67 // pred_check
          %p2706 = pneg %p126
        $region74: #{tpu_custom_call.1} parent=67 // pred_check_branch
          %2708 = sbr.rel (%p2706) target = $region76
        $region75: #{tpu_custom_call.1} parent=67 // pred_region
          %s2709 = sand.u32 %s24, 1
          %s2710 = scalar_lea.sflag [#allocation9], %s2709
          %s2711 = sand.u32 %s111, 1
          %s2712 = scalar_lea.vmem [#allocation8], %s2711
          %2713 = dma.done %s2710, 16
        $region76: #{tpu_custom_call.1} parent=67 // pred_fallthru
          _
        // Predicated region
        $region77: #{tpu_custom_call.1} parent=67 // pred_check
          %p2714 = pneg %p156
        $region78: #{tpu_custom_call.1} parent=67 // pred_check_branch
          %2716 = sbr.rel (%p2714) target = $region80
        $region79: #{tpu_custom_call.1} parent=67 // pred_region
          %s2717 = sand.u32 %s24, 1
          %s2718 = scalar_lea.sflag [#allocation9], %s2717
          %s2719 = sand.u32 %s141, 1
          %s2720 = scalar_lea.vmem [#allocation10], %s2719
          %2721 = dma.done %s2718, 16
        $region80: #{tpu_custom_call.1} parent=67 // pred_fallthru
          _
      $region68: #{tpu_custom_call.1} parent=5 // pred_fallthru
        _
    $region6: #{tpu_custom_call.1} parent=1 // loop_footer
      %s22 = sadd.s32 1, %s18
    $region7: #{tpu_custom_call.1} parent=1 // loop_footer_branch
      %17 = sbr.rel target = $region3
    $region8: #{tpu_custom_call.1} parent=1 // loop_exit
      _
    %2722 = vsyncpa [#allocation5], 1
    %s2723 = scalar_lea.sflag [#allocation5], 1
    %2724 = vsyncpa %s2723, 1
    %2725 = vsyncpa [#allocation6], 1
    %s2726 = scalar_lea.sflag [#allocation6], 1
    %2727 = vsyncpa %s2726, 1
    %2728 = vsyncpa [#allocation9], 1
    %s2729 = scalar_lea.sflag [#allocation9], 1
    %2730 = vsyncpa %s2729, 1
  %2731 = vsyncmov [#allocation3]
  %s2732 = vpop.sfrf %2731
  %p2733 = scmp.eq.s32.totalorder %s2732, 0
  %p2734 = pneg %p2733
  %2736 = shalt.err (%p2734)
  %s2737 = scalar_lea.sflag [#allocation3], 1
  %2738 = vsyncmov %s2737
  %s2739 = vpop.sfrf %2738
  %p2740 = scmp.eq.s32.totalorder %s2739, 0
  %p2741 = pneg %p2740
  %2743 = shalt.err (%p2741)
  %s2744 = scalar_lea.sflag [#allocation3], 2
  %2745 = vsyncmov %s2744
  %s2746 = vpop.sfrf %2745
  %p2747 = scmp.eq.s32.totalorder %s2746, 0
  %p2748 = pneg %p2747
  %2750 = shalt.err (%p2748)

</llo_original>
